<compile_context>
chip_gen: v7x
topology: tpu7x:2x2x1
jax: 0.10.0
libtpu: 0.0.40
codegen_flags: <defaults>
</compile_context>

<pallas_src>
import jax
import jax.numpy as jnp
from jax.experimental import pallas as pl
from jax.experimental.pallas import tpu as pltpu


def _round_up(x, m):
    return (x + m - 1) // m * m


def generator_mlp_kernel(x_ref,
                         w1_ref, b1_ref,
                         w2_ref, t2_ref,
                         w3_ref, t3_ref,
                         w4_ref, t4_ref,
                         w5_ref, b5_ref,
                         out_ref):
    """Fused generator MLP for one batch tile.

    BatchNorm is pre-folded into (w, t) in the wrapper, so every hidden layer
    is: bf16 MXU matmul (f32 accum) -> bf16 bias add -> max-based LeakyReLU,
    feeding the next matmul directly in bf16.  Last layer: f32 bias + tanh.
    """
    def dense_lrelu(h, w_ref, b_ref):
        acc = jnp.dot(h, w_ref[...], preferred_element_type=jnp.float32)
        a = acc.astype(jnp.bfloat16) + b_ref[...]      # bf16 epilogue (packed vregs)
        return jnp.maximum(a, a * 0.2)                 # LeakyReLU(0.2): single vmax

    h = dense_lrelu(x_ref[...], w1_ref, b1_ref)
    h = dense_lrelu(h, w2_ref, t2_ref)                 # BN folded into w2 / t2
    h = dense_lrelu(h, w3_ref, t3_ref)                 # BN folded into w3 / t3
    h = dense_lrelu(h, w4_ref, t4_ref)                 # BN folded into w4 / t4

    acc = jnp.dot(h, w5_ref[...], preferred_element_type=jnp.float32) + b5_ref[...]
    out_ref[...] = jnp.tanh(acc)                       # tanh -> EUP, f32 lane-dense store


def init_generator_params(key, latent_dim, class_dim, image_shape):
    """PyTorch-default-style init; raw weights kept in f32 (fold/cast per call)."""
    in_dim = latent_dim + class_dim
    k_pad = _round_up(in_dim, 128)       # MXU/lane-friendly contraction dim (layer 1)
    n_pad = _round_up(image_shape, 128)  # lane-dense output dim (last layer)

    dims = [(in_dim, 128), (128, 256), (256, 512), (512, 1024), (1024, image_shape)]
    keys = jax.random.split(key, 1 + 2 * len(dims))

    params = {
        # nn.Embedding(class_dim, class_dim): N(0, 1)
        "embed": jax.random.normal(keys[0], (class_dim, class_dim), jnp.float32),
        "image_shape": image_shape, "in_dim": in_dim,
        "k_pad": k_pad, "n_pad": n_pad,
    }

    for li, (fan_in, fan_out) in enumerate(dims):
        bound = 1.0 / (fan_in ** 0.5)
        w = jax.random.uniform(keys[1 + 2 * li], (fan_in, fan_out),
                               minval=-bound, maxval=bound, dtype=jnp.float32)
        b = jax.random.uniform(keys[2 + 2 * li], (1, fan_out),
                               minval=-bound, maxval=bound, dtype=jnp.float32)
        if li == 0:                       # zero-pad contraction dim -> k_pad
            w = jnp.pad(w, ((0, k_pad - fan_in), (0, 0)))
        if li == len(dims) - 1:           # zero-pad output dim -> n_pad
            w = jnp.pad(w, ((0, 0), (0, n_pad - fan_out)))
            b = jnp.pad(b, ((0, 0), (0, n_pad - fan_out)))
        params[f"w{li + 1}"] = w          # f32; fold/cast to bf16 in the wrapper
        params[f"b{li + 1}"] = b

    # BatchNorm1d defaults: gamma=1, beta=0, running_mean=0, running_var=1.
    for li, n in ((2, 256), (3, 512), (4, 1024)):
        params[f"bn{li}_gamma"] = jnp.ones((1, n), jnp.float32)
        params[f"bn{li}_beta"] = jnp.zeros((1, n), jnp.float32)
        params[f"bn{li}_mean"] = jnp.zeros((1, n), jnp.float32)
        params[f"bn{li}_var"] = jnp.ones((1, n), jnp.float32)
    return params


def generator_forward(params, z, labels, *, batch_tile=512, bn_eps=1e-5):
    """z: [B, latent_dim] f32, labels: [B] int32 -> img [B, image_shape] f32."""
    B = z.shape[0]
    in_dim, k_pad = params["in_dim"], params["k_pad"]
    image_shape, n_pad = params["image_shape"], params["n_pad"]

    # Glue: embedding lookup + concat (dim=1).
    emb = jnp.take(params["embed"], labels, axis=0)             # [B, class_dim]
    x = jnp.concatenate([z, emb], axis=1)                       # [B, in_dim]

    # Batch tile: multiple of 8, as large as possible, but split into >= 2
    # grid tiles whenever B allows so v7x's two TensorCores both get work.
    b_round = _round_up(B, 8)
    tb = min(batch_tile, b_round)
    if b_round // tb < 2 and tb > 8:
        tb = _round_up(-(-b_round // 2), 8)
    b_pad = _round_up(B, tb)

    # Pad K to a 128 multiple, cast activations to bf16 in the wrapper.
    x = jnp.pad(x, ((0, b_pad - B), (0, k_pad - in_dim))).astype(jnp.bfloat16)

    # Fold eval-mode BN running stats into the preceding Linear (f32 fold,
    # single bf16 cast): y = (xW + b) * s + (beta - mean*s),  s = gamma*rsqrt(var+eps)
    def fold_bn(li):
        s = params[f"bn{li}_gamma"] * jax.lax.rsqrt(params[f"bn{li}_var"] + bn_eps)
        t = params[f"bn{li}_beta"] + (params[f"b{li}"] - params[f"bn{li}_mean"]) * s
        w = params[f"w{li}"] * s                                # per-output-column scale
        return w.astype(jnp.bfloat16), t.astype(jnp.bfloat16)

    w1 = params["w1"].astype(jnp.bfloat16)
    b1 = params["b1"].astype(jnp.bfloat16)
    w2, t2 = fold_bn(2)
    w3, t3 = fold_bn(3)
    w4, t4 = fold_bn(4)
    w5 = params["w5"].astype(jnp.bfloat16)
    b5 = params["b5"]                                           # f32 (f32 tanh epilogue)

    operands = (x, w1, b1, w2, t2, w3, t3, w4, t4, w5, b5)

    # Weights/biases stay resident in VMEM across all batch tiles.
    resident = lambda a: pl.BlockSpec(a.shape, lambda i: (0,) * a.ndim)
    in_specs = [pl.BlockSpec((tb, k_pad), lambda i: (i, 0))] + \
               [resident(a) for a in operands[1:]]

    out = pl.pallas_call(
        generator_mlp_kernel,
        out_shape=jax.ShapeDtypeStruct((b_pad, n_pad), jnp.float32),
        grid=(b_pad // tb,),
        in_specs=in_specs,
        out_specs=pl.BlockSpec((tb, n_pad), lambda i: (i, 0)),
        compiler_params=pltpu.CompilerParams(
            dimension_semantics=("parallel",)),   # shard batch tiles across TCs
    )(*operands)

    # `img.view(B, -1)` in the reference is a no-op here; drop pad rows/cols.
    return out[:B, :image_shape]


if __name__ == "__main__":
    # Small, deterministic example consistent with the module's forward.
    latent_dim = 32
    class_dim = 16
    image_shape = 48
    batch = 8

    key = jax.random.PRNGKey(0)
    k_params, k_z, k_lab = jax.random.split(key, 3)

    params = init_generator_params(k_params, latent_dim, class_dim, image_shape)
    z = jax.random.normal(k_z, (batch, latent_dim), dtype=jnp.float32)
    labels = jax.random.randint(k_lab, (batch,), 0, class_dim, dtype=jnp.int32)

    img = generator_forward(params, z, labels)
    img = jax.block_until_ready(img)

    assert img.shape == (batch, image_shape)
    assert bool(jnp.all(jnp.isfinite(img)))
    assert bool(jnp.all((img >= -1.0) & (img <= 1.0)))   # Tanh range
    print("KERNEL_OK")
</pallas_src>

<mosaic_0001>
module attributes {stable_mosaic.version = 11 : i64} {
  func.func @generator_mlp_kernel(%arg0: i32, %arg1: memref<8x128xbf16, #tpu.memory_space<vmem>>, %arg2: memref<128x128xbf16, #tpu.memory_space<vmem>>, %arg3: memref<1x128xbf16, #tpu.memory_space<vmem>>, %arg4: memref<128x256xbf16, #tpu.memory_space<vmem>>, %arg5: memref<1x256xbf16, #tpu.memory_space<vmem>>, %arg6: memref<256x512xbf16, #tpu.memory_space<vmem>>, %arg7: memref<1x512xbf16, #tpu.memory_space<vmem>>, %arg8: memref<512x1024xbf16, #tpu.memory_space<vmem>>, %arg9: memref<1x1024xbf16, #tpu.memory_space<vmem>>, %arg10: memref<1024x128xbf16, #tpu.memory_space<vmem>>, %arg11: memref<1x128xf32, #tpu.memory_space<vmem>>, %arg12: memref<8x128xf32, #tpu.memory_space<vmem>>) attributes {dimension_semantics = [#tpu.dimension_semantics<parallel>], iteration_bounds = array<i64: 1>, scalar_prefetch = 0 : i64, scratch_operands = 0 : i64, tpu.core_type = #tpu.core_type<tc>, window_params = [{transform_indices = @transform_0, window_bounds = array<i64: 8, 128>}, {pipeline_mode = #tpu.pipeline_mode<synchronous>, transform_indices = @transform_1, window_bounds = array<i64: 128, 128>}, {pipeline_mode = #tpu.pipeline_mode<synchronous>, transform_indices = @transform_2, window_bounds = array<i64: 1, 128>}, {pipeline_mode = #tpu.pipeline_mode<synchronous>, transform_indices = @transform_3, window_bounds = array<i64: 128, 256>}, {pipeline_mode = #tpu.pipeline_mode<synchronous>, transform_indices = @transform_4, window_bounds = array<i64: 1, 256>}, {pipeline_mode = #tpu.pipeline_mode<synchronous>, transform_indices = @transform_5, window_bounds = array<i64: 256, 512>}, {pipeline_mode = #tpu.pipeline_mode<synchronous>, transform_indices = @transform_6, window_bounds = array<i64: 1, 512>}, {pipeline_mode = #tpu.pipeline_mode<synchronous>, transform_indices = @transform_7, window_bounds = array<i64: 512, 1024>}, {pipeline_mode = #tpu.pipeline_mode<synchronous>, transform_indices = @transform_8, window_bounds = array<i64: 1, 1024>}, {pipeline_mode = #tpu.pipeline_mode<synchronous>, transform_indices = @transform_9, window_bounds = array<i64: 1024, 128>}, {pipeline_mode = #tpu.pipeline_mode<synchronous>, transform_indices = @transform_10, window_bounds = array<i64: 1, 128>}, {transform_indices = @transform_11, window_bounds = array<i64: 8, 128>}]} {
    %c0 = arith.constant 0 : index
    %c0_0 = arith.constant 0 : index
    %0 = vector.load %arg1[%c0, %c0_0] : memref<8x128xbf16, #tpu.memory_space<vmem>>, vector<8x128xbf16>
    %c0_1 = arith.constant 0 : index
    %c0_2 = arith.constant 0 : index
    %1 = vector.load %arg2[%c0_1, %c0_2] : memref<128x128xbf16, #tpu.memory_space<vmem>>, vector<128x128xbf16>
    %cst = arith.constant dense<0.000000e+00> : vector<8x128xf32>
    %2 = tpu.matmul %0, %1, %cst {dimension_numbers = #tpu.dot_dimension_numbers<[1], [0], [0], [1], [0, 0, 1, 1], [], []>} : vector<8x128xbf16>, vector<128x128xbf16>, vector<8x128xf32> -> vector<8x128xf32>
    %3 = arith.truncf %2 : vector<8x128xf32> to vector<8x128xbf16>
    %c0_3 = arith.constant 0 : index
    %c0_4 = arith.constant 0 : index
    %4 = vector.load %arg3[%c0_3, %c0_4] : memref<1x128xbf16, #tpu.memory_space<vmem>>, vector<1x128xbf16>
    %5 = vector.broadcast %4 : vector<1x128xbf16> to vector<8x128xbf16>
    %6 = arith.addf %3, %5 : vector<8x128xbf16>
    %cst_5 = arith.constant 2.001950e-01 : bf16
    %7 = vector.broadcast %cst_5 : bf16 to vector<8x128xbf16>
    %8 = arith.mulf %6, %7 : vector<8x128xbf16>
    %9 = arith.maximumf %6, %8 : vector<8x128xbf16>
    %c0_6 = arith.constant 0 : index
    %c0_7 = arith.constant 0 : index
    %10 = vector.load %arg4[%c0_6, %c0_7] : memref<128x256xbf16, #tpu.memory_space<vmem>>, vector<128x256xbf16>
    %cst_8 = arith.constant dense<0.000000e+00> : vector<8x256xf32>
    %11 = tpu.matmul %9, %10, %cst_8 {dimension_numbers = #tpu.dot_dimension_numbers<[1], [0], [0], [1], [0, 0, 1, 1], [], []>} : vector<8x128xbf16>, vector<128x256xbf16>, vector<8x256xf32> -> vector<8x256xf32>
    %12 = arith.truncf %11 : vector<8x256xf32> to vector<8x256xbf16>
    %c0_9 = arith.constant 0 : index
    %c0_10 = arith.constant 0 : index
    %13 = vector.load %arg5[%c0_9, %c0_10] : memref<1x256xbf16, #tpu.memory_space<vmem>>, vector<1x256xbf16>
    %14 = vector.broadcast %13 : vector<1x256xbf16> to vector<8x256xbf16>
    %15 = arith.addf %12, %14 : vector<8x256xbf16>
    %cst_11 = arith.constant 2.001950e-01 : bf16
    %16 = vector.broadcast %cst_11 : bf16 to vector<8x256xbf16>
    %17 = arith.mulf %15, %16 : vector<8x256xbf16>
    %18 = arith.maximumf %15, %17 : vector<8x256xbf16>
    %c0_12 = arith.constant 0 : index
    %c0_13 = arith.constant 0 : index
    %19 = vector.load %arg6[%c0_12, %c0_13] : memref<256x512xbf16, #tpu.memory_space<vmem>>, vector<256x512xbf16>
    %cst_14 = arith.constant dense<0.000000e+00> : vector<8x512xf32>
    %20 = tpu.matmul %18, %19, %cst_14 {dimension_numbers = #tpu.dot_dimension_numbers<[1], [0], [0], [1], [0, 0, 1, 1], [], []>} : vector<8x256xbf16>, vector<256x512xbf16>, vector<8x512xf32> -> vector<8x512xf32>
    %21 = arith.truncf %20 : vector<8x512xf32> to vector<8x512xbf16>
    %c0_15 = arith.constant 0 : index
    %c0_16 = arith.constant 0 : index
    %22 = vector.load %arg7[%c0_15, %c0_16] : memref<1x512xbf16, #tpu.memory_space<vmem>>, vector<1x512xbf16>
    %23 = vector.broadcast %22 : vector<1x512xbf16> to vector<8x512xbf16>
    %24 = arith.addf %21, %23 : vector<8x512xbf16>
    %cst_17 = arith.constant 2.001950e-01 : bf16
    %25 = vector.broadcast %cst_17 : bf16 to vector<8x512xbf16>
    %26 = arith.mulf %24, %25 : vector<8x512xbf16>
    %27 = arith.maximumf %24, %26 : vector<8x512xbf16>
    %c0_18 = arith.constant 0 : index
    %c0_19 = arith.constant 0 : index
    %28 = vector.load %arg8[%c0_18, %c0_19] : memref<512x1024xbf16, #tpu.memory_space<vmem>>, vector<512x1024xbf16>
    %cst_20 = arith.constant dense<0.000000e+00> : vector<8x1024xf32>
    %29 = tpu.matmul %27, %28, %cst_20 {dimension_numbers = #tpu.dot_dimension_numbers<[1], [0], [0], [1], [0, 0, 1, 1], [], []>} : vector<8x512xbf16>, vector<512x1024xbf16>, vector<8x1024xf32> -> vector<8x1024xf32>
    %30 = arith.truncf %29 : vector<8x1024xf32> to vector<8x1024xbf16>
    %c0_21 = arith.constant 0 : index
    %c0_22 = arith.constant 0 : index
    %31 = vector.load %arg9[%c0_21, %c0_22] : memref<1x1024xbf16, #tpu.memory_space<vmem>>, vector<1x1024xbf16>
    %32 = vector.broadcast %31 : vector<1x1024xbf16> to vector<8x1024xbf16>
    %33 = arith.addf %30, %32 : vector<8x1024xbf16>
    %cst_23 = arith.constant 2.001950e-01 : bf16
    %34 = vector.broadcast %cst_23 : bf16 to vector<8x1024xbf16>
    %35 = arith.mulf %33, %34 : vector<8x1024xbf16>
    %36 = arith.maximumf %33, %35 : vector<8x1024xbf16>
    %c0_24 = arith.constant 0 : index
    %c0_25 = arith.constant 0 : index
    %37 = vector.load %arg10[%c0_24, %c0_25] : memref<1024x128xbf16, #tpu.memory_space<vmem>>, vector<1024x128xbf16>
    %cst_26 = arith.constant dense<0.000000e+00> : vector<8x128xf32>
    %38 = tpu.matmul %36, %37, %cst_26 {dimension_numbers = #tpu.dot_dimension_numbers<[1], [0], [0], [1], [0, 0, 1, 1], [], []>} : vector<8x1024xbf16>, vector<1024x128xbf16>, vector<8x128xf32> -> vector<8x128xf32>
    %c0_27 = arith.constant 0 : index
    %c0_28 = arith.constant 0 : index
    %39 = vector.load %arg11[%c0_27, %c0_28] : memref<1x128xf32, #tpu.memory_space<vmem>>, vector<1x128xf32>
    %40 = vector.broadcast %39 : vector<1x128xf32> to vector<8x128xf32>
    %41 = arith.addf %38, %40 : vector<8x128xf32>
    %42 = math.tanh %41 : vector<8x128xf32>
    %c0_29 = arith.constant 0 : index
    %c0_30 = arith.constant 0 : index
    %43 = vector.load %arg12[%c0_29, %c0_30] : memref<8x128xf32, #tpu.memory_space<vmem>>, vector<8x128xf32>
    tpu.vector_store %arg12[%c0_29, %c0_30], %42 {strides = array<i32>} : memref<8x128xf32, #tpu.memory_space<vmem>>, vector<8x128xf32>,
    return
  }
  func.func @transform_0(%arg0: i32) -> (i32, i32) {
    %c0_i32 = arith.constant 0 : i32
    %c0_i32_0 = arith.constant 0 : i32
    return %arg0, %c0_i32 : i32, i32
  }
  func.func @transform_1(%arg0: i32) -> (i32, i32) {
    %c0_i32 = arith.constant 0 : i32
    %c0_i32_0 = arith.constant 0 : i32
    %c0_i32_1 = arith.constant 0 : i32
    return %c0_i32, %c0_i32_0 : i32, i32
  }
  func.func @transform_2(%arg0: i32) -> (i32, i32) {
    %c0_i32 = arith.constant 0 : i32
    %c0_i32_0 = arith.constant 0 : i32
    %c0_i32_1 = arith.constant 0 : i32
    return %c0_i32, %c0_i32_0 : i32, i32
  }
  func.func @transform_3(%arg0: i32) -> (i32, i32) {
    %c0_i32 = arith.constant 0 : i32
    %c0_i32_0 = arith.constant 0 : i32
    %c0_i32_1 = arith.constant 0 : i32
    return %c0_i32, %c0_i32_0 : i32, i32
  }
  func.func @transform_4(%arg0: i32) -> (i32, i32) {
    %c0_i32 = arith.constant 0 : i32
    %c0_i32_0 = arith.constant 0 : i32
    %c0_i32_1 = arith.constant 0 : i32
    return %c0_i32, %c0_i32_0 : i32, i32
  }
  func.func @transform_5(%arg0: i32) -> (i32, i32) {
    %c0_i32 = arith.constant 0 : i32
    %c0_i32_0 = arith.constant 0 : i32
    %c0_i32_1 = arith.constant 0 : i32
    return %c0_i32, %c0_i32_0 : i32, i32
  }
  func.func @transform_6(%arg0: i32) -> (i32, i32) {
    %c0_i32 = arith.constant 0 : i32
    %c0_i32_0 = arith.constant 0 : i32
    %c0_i32_1 = arith.constant 0 : i32
    return %c0_i32, %c0_i32_0 : i32, i32
  }
  func.func @transform_7(%arg0: i32) -> (i32, i32) {
    %c0_i32 = arith.constant 0 : i32
    %c0_i32_0 = arith.constant 0 : i32
    %c0_i32_1 = arith.constant 0 : i32
    return %c0_i32, %c0_i32_0 : i32, i32
  }
  func.func @transform_8(%arg0: i32) -> (i32, i32) {
    %c0_i32 = arith.constant 0 : i32
    %c0_i32_0 = arith.constant 0 : i32
    %c0_i32_1 = arith.constant 0 : i32
    return %c0_i32, %c0_i32_0 : i32, i32
  }
  func.func @transform_9(%arg0: i32) -> (i32, i32) {
    %c0_i32 = arith.constant 0 : i32
    %c0_i32_0 = arith.constant 0 : i32
    %c0_i32_1 = arith.constant 0 : i32
    return %c0_i32, %c0_i32_0 : i32, i32
  }
  func.func @transform_10(%arg0: i32) -> (i32, i32) {
    %c0_i32 = arith.constant 0 : i32
    %c0_i32_0 = arith.constant 0 : i32
    %c0_i32_1 = arith.constant 0 : i32
    return %c0_i32, %c0_i32_0 : i32, i32
  }
  func.func @transform_11(%arg0: i32) -> (i32, i32) {
    %c0_i32 = arith.constant 0 : i32
    %c0_i32_0 = arith.constant 0 : i32
    return %arg0, %c0_i32 : i32, i32
  }
}

</mosaic_0001>

<llo_original>
// kernel: tpu_custom_call.1
$region0: #{tpu_custom_call.1}
  #allocation0 [shape = 'u32[]', space=smem, size = 0x4, offset = 0x4, fixed_abs, tag = 'smem constant byte address 0x4 - core index']
  #allocation1 [shape = 'u32[144,128]{1,0:T(1,128)}', space=vmem, size = 0x12000, scoped, tag = 'internal scratch']
  %s0 = inlined_call_operand.hbm [shape: bf16[8,128], index: 0, kind: input, shape index: {}]
  %s1 = inlined_call_operand.hbm [shape: bf16[128,128], index: 1, kind: input, shape index: {}]
  %s2 = inlined_call_operand.vmem [shape: bf16[1,128], index: 2, kind: input, shape index: {}]
  %s3 = inlined_call_operand.hbm [shape: bf16[128,256], index: 3, kind: input, shape index: {}]
  %s4 = inlined_call_operand.vmem [shape: bf16[1,256], index: 4, kind: input, shape index: {}]
  %s5 = inlined_call_operand.hbm [shape: bf16[256,512], index: 5, kind: input, shape index: {}]
  %s6 = inlined_call_operand.vmem [shape: bf16[1,512], index: 6, kind: input, shape index: {}]
  %s7 = inlined_call_operand.hbm [shape: bf16[512,1024], index: 7, kind: input, shape index: {}]
  %s8 = inlined_call_operand.vmem [shape: bf16[1,1024], index: 8, kind: input, shape index: {}]
  %s9 = inlined_call_operand.hbm [shape: bf16[1024,128], index: 9, kind: input, shape index: {}]
  %s10 = inlined_call_operand.vmem [shape: f32[1,128], index: 10, kind: input, shape index: {}]
  %s11 = inlined_call_operand.hbm [shape: f32[8,128], index: 11, kind: output, shape index: {}]
  %s12 = sld [smem:[#allocation0]]
  $region78: #{tpu_custom_call.1} parent=0
    _
  %s14 = ssub.s32 1, %s12
  %s15 = scalar_select 0, %s14, %s12
  $region1: #{tpu_custom_call.1} parent=0
    #allocation2 [shape = 'u8[2048]{0}', space=vmem, size = 0x800, scoped, tag = 'input window, operand 0, single buffered']
    #allocation3 [shape = 's32[1]{0}', space=sflag, size = 0x4, scoped, tag = 'scoped memory for tpu_custom_call.1']
    #allocation4 [shape = 's32[1]{0}', space=sflag, size = 0x4, scoped, tag = 'scoped memory for tpu_custom_call.1']
    #allocation5 [shape = 'u8[32768]{0}', space=vmem, size = 0x8000, scoped, tag = 'input window, operand 1, single buffered']
    #allocation6 [shape = 's32[1]{0}', space=sflag, size = 0x4, scoped, tag = 'scoped memory for tpu_custom_call.1']
    #allocation7 [shape = 'u8[65536]{0}', space=vmem, size = 0x10000, scoped, tag = 'input window, operand 3, single buffered']
    #allocation8 [shape = 'u8[262144]{0}', space=vmem, size = 0x40000, scoped, tag = 'input window, operand 5, single buffered']
    #allocation9 [shape = 's32[1]{0}', space=sflag, size = 0x4, scoped, tag = 'scoped memory for tpu_custom_call.1']
    #allocation10 [shape = 'u8[1048576]{0}', space=vmem, size = 0x100000, scoped, tag = 'input window, operand 7, single buffered']
    #allocation11 [shape = 'u8[262144]{0}', space=vmem, size = 0x40000, scoped, tag = 'input window, operand 9, single buffered']
    #allocation12 [shape = 's32[1]{0}', space=sflag, size = 0x4, scoped, tag = 'scoped memory for tpu_custom_call.1']
    #allocation13 [shape = 'u8[4096]{0}', space=vmem, size = 0x1000, scoped, tag = 'output window, operand 0, single buffered']
    %16 = vsyncpa [#allocation3], 0
    %17 = vsyncpa [#allocation6], 0
    %18 = vsyncpa [#allocation9], 0
    %19 = vsyncpa [#allocation12], 0
    %20 = vsyncpa [#allocation4], 0
    // Predicated region
    $region2: #{tpu_custom_call.1} parent=1 // pred_check
      _
    $region3: #{tpu_custom_call.1} parent=1 // pred_check_branch
      %22 = sbr.rel (0) target = $region5
    $region4: #{tpu_custom_call.1} parent=1 // pred_region
      %s24 = ssub.s32 64, 64
      %25 = vsyncadd [#allocation3], %s24
      %s27 = sshll.u32 [#allocation2], 4
      %s28 = int_to_ptr.vmem [resolvable:$true] %s27
      %30 = dma.hbm_to_vmem [thread:$0]  %s0, 64, %s28, [#allocation3]
    $region5: #{tpu_custom_call.1} parent=1 // pred_fallthru
      _
    // Predicated region
    $region6: #{tpu_custom_call.1} parent=1 // pred_check
      _
    $region7: #{tpu_custom_call.1} parent=1 // pred_check_branch
      %32 = sbr.rel (0) target = $region9
    $region8: #{tpu_custom_call.1} parent=1 // pred_region
      %s34 = ssub.s32 1024, 1024
      %35 = vsyncadd [#allocation6], %s34
      %s36 = sshll.u32 [#allocation5], 4
      %s37 = int_to_ptr.vmem [resolvable:$true] %s36
      %42 = dma.hbm_to_vmem [thread:$0]  %s1, 1024, %s37, [#allocation6], 64, 64, 4
    $region9: #{tpu_custom_call.1} parent=1 // pred_fallthru
      _
    // Predicated region
    $region10: #{tpu_custom_call.1} parent=1 // pred_check
      _
    $region11: #{tpu_custom_call.1} parent=1 // pred_check_branch
      %44 = sbr.rel (0) target = $region13
    $region12: #{tpu_custom_call.1} parent=1 // pred_region
      _
    $region13: #{tpu_custom_call.1} parent=1 // pred_fallthru
      _
    // Predicated region
    $region14: #{tpu_custom_call.1} parent=1 // pred_check
      _
    $region15: #{tpu_custom_call.1} parent=1 // pred_check_branch
      %46 = sbr.rel (0) target = $region17
    $region16: #{tpu_custom_call.1} parent=1 // pred_region
      %s48 = ssub.s32 2048, 2048
      %49 = vsyncadd [#allocation6], %s48
      %s50 = sshll.u32 [#allocation7], 4
      %s51 = int_to_ptr.vmem [resolvable:$true] %s50
      %56 = dma.hbm_to_vmem [thread:$0]  %s3, 2048, %s51, [#allocation6], 128, 128, 8
    $region17: #{tpu_custom_call.1} parent=1 // pred_fallthru
      _
    // Predicated region
    $region18: #{tpu_custom_call.1} parent=1 // pred_check
      _
    $region19: #{tpu_custom_call.1} parent=1 // pred_check_branch
      %58 = sbr.rel (0) target = $region21
    $region20: #{tpu_custom_call.1} parent=1 // pred_region
      _
    $region21: #{tpu_custom_call.1} parent=1 // pred_fallthru
      _
    // Predicated region
    $region22: #{tpu_custom_call.1} parent=1 // pred_check
      _
    $region23: #{tpu_custom_call.1} parent=1 // pred_check_branch
      %60 = sbr.rel (0) target = $region25
    $region24: #{tpu_custom_call.1} parent=1 // pred_region
      %s62 = ssub.s32 8192, 8192
      %63 = vsyncadd [#allocation9], %s62
      %s64 = sshll.u32 [#allocation8], 4
      %s65 = int_to_ptr.vmem [resolvable:$true] %s64
      %70 = dma.hbm_to_vmem [thread:$0]  %s5, 8192, %s65, [#allocation9], 256, 256, 16
    $region25: #{tpu_custom_call.1} parent=1 // pred_fallthru
      _
    // Predicated region
    $region26: #{tpu_custom_call.1} parent=1 // pred_check
      _
    $region27: #{tpu_custom_call.1} parent=1 // pred_check_branch
      %72 = sbr.rel (0) target = $region29
    $region28: #{tpu_custom_call.1} parent=1 // pred_region
      _
    $region29: #{tpu_custom_call.1} parent=1 // pred_fallthru
      _
    // Predicated region
    $region30: #{tpu_custom_call.1} parent=1 // pred_check
      _
    $region31: #{tpu_custom_call.1} parent=1 // pred_check_branch
      %74 = sbr.rel (0) target = $region33
    $region32: #{tpu_custom_call.1} parent=1 // pred_region
      %s76 = ssub.s32 32768, 32768
      %77 = vsyncadd [#allocation9], %s76
      %s78 = sshll.u32 [#allocation10], 4
      %s79 = int_to_ptr.vmem [resolvable:$true] %s78
      %84 = dma.hbm_to_vmem [thread:$0]  %s7, 32768, %s79, [#allocation9], 512, 512, 32
    $region33: #{tpu_custom_call.1} parent=1 // pred_fallthru
      _
    // Predicated region
    $region34: #{tpu_custom_call.1} parent=1 // pred_check
      _
    $region35: #{tpu_custom_call.1} parent=1 // pred_check_branch
      %86 = sbr.rel (0) target = $region37
    $region36: #{tpu_custom_call.1} parent=1 // pred_region
      _
    $region37: #{tpu_custom_call.1} parent=1 // pred_fallthru
      _
    // Predicated region
    $region38: #{tpu_custom_call.1} parent=1 // pred_check
      _
    $region39: #{tpu_custom_call.1} parent=1 // pred_check_branch
      %88 = sbr.rel (0) target = $region41
    $region40: #{tpu_custom_call.1} parent=1 // pred_region
      %s90 = ssub.s32 8192, 8192
      %91 = vsyncadd [#allocation12], %s90
      %s92 = sshll.u32 [#allocation11], 4
      %s93 = int_to_ptr.vmem [resolvable:$true] %s92
      %98 = dma.hbm_to_vmem [thread:$0]  %s9, 8192, %s93, [#allocation12], 64, 64, 4
    $region41: #{tpu_custom_call.1} parent=1 // pred_fallthru
      _
    // Predicated region
    $region42: #{tpu_custom_call.1} parent=1 // pred_check
      _
    $region43: #{tpu_custom_call.1} parent=1 // pred_check_branch
      %100 = sbr.rel (0) target = $region45
    $region44: #{tpu_custom_call.1} parent=1 // pred_region
      _
    $region45: #{tpu_custom_call.1} parent=1 // pred_fallthru
      _
    // Predicated region
    $region46: #{tpu_custom_call.1} parent=1 // pred_check
      _
    $region47: #{tpu_custom_call.1} parent=1 // pred_check_branch
      %102 = sbr.rel (0) target = $region49
    $region48: #{tpu_custom_call.1} parent=1 // pred_region
      %103 = dma.done [#allocation3], 64
    $region49: #{tpu_custom_call.1} parent=1 // pred_fallthru
      _
    // Predicated region
    $region50: #{tpu_custom_call.1} parent=1 // pred_check
      _
    $region51: #{tpu_custom_call.1} parent=1 // pred_check_branch
      %105 = sbr.rel (0) target = $region53
    $region52: #{tpu_custom_call.1} parent=1 // pred_region
      %106 = dma.done [#allocation6], 1024
    $region53: #{tpu_custom_call.1} parent=1 // pred_fallthru
      _
    // Predicated region
    $region54: #{tpu_custom_call.1} parent=1 // pred_check
      _
    $region55: #{tpu_custom_call.1} parent=1 // pred_check_branch
      %108 = sbr.rel (0) target = $region57
    $region56: #{tpu_custom_call.1} parent=1 // pred_region
      %109 = dma.done [#allocation6], 2048
    $region57: #{tpu_custom_call.1} parent=1 // pred_fallthru
      _
    // Predicated region
    $region58: #{tpu_custom_call.1} parent=1 // pred_check
      _
    $region59: #{tpu_custom_call.1} parent=1 // pred_check_branch
      %111 = sbr.rel (0) target = $region61
    $region60: #{tpu_custom_call.1} parent=1 // pred_region
      %112 = dma.done [#allocation9], 8192
    $region61: #{tpu_custom_call.1} parent=1 // pred_fallthru
      _
    // Predicated region
    $region62: #{tpu_custom_call.1} parent=1 // pred_check
      _
    $region63: #{tpu_custom_call.1} parent=1 // pred_check_branch
      %114 = sbr.rel (0) target = $region65
    $region64: #{tpu_custom_call.1} parent=1 // pred_region
      %115 = dma.done [#allocation9], 32768
    $region65: #{tpu_custom_call.1} parent=1 // pred_fallthru
      _
    // Predicated region
    $region66: #{tpu_custom_call.1} parent=1 // pred_check
      _
    $region67: #{tpu_custom_call.1} parent=1 // pred_check_branch
      %117 = sbr.rel (0) target = $region69
    $region68: #{tpu_custom_call.1} parent=1 // pred_region
      %118 = dma.done [#allocation12], 8192
    $region69: #{tpu_custom_call.1} parent=1 // pred_fallthru
      _
    %v121 = vld [vmem:[#allocation2] sm:$0xf]
    %v122 = vld [vmem:[#allocation5] sm:$0xf]
    %v123 = vld [vmem:[#allocation5 + $0x4] sm:$0xf]
    %v124 = vld [vmem:[#allocation5 + $0x8] sm:$0xf]
    %v125 = vld [vmem:[#allocation5 + $0xc] sm:$0xf]
    %v126 = vld [vmem:[#allocation5 + $0x10] sm:$0xf]
    %v127 = vld [vmem:[#allocation5 + $0x14] sm:$0xf]
    %v128 = vld [vmem:[#allocation5 + $0x18] sm:$0xf]
    %v129 = vld [vmem:[#allocation5 + $0x1c] sm:$0xf]
    %v130 = vld [vmem:[#allocation5 + $0x20] sm:$0xf]
    %v131 = vld [vmem:[#allocation5 + $0x24] sm:$0xf]
    %v132 = vld [vmem:[#allocation5 + $0x28] sm:$0xf]
    %v133 = vld [vmem:[#allocation5 + $0x2c] sm:$0xf]
    %v134 = vld [vmem:[#allocation5 + $0x30] sm:$0xf]
    %v135 = vld [vmem:[#allocation5 + $0x34] sm:$0xf]
    %v136 = vld [vmem:[#allocation5 + $0x38] sm:$0xf]
    %v137 = vld [vmem:[#allocation5 + $0x3c] sm:$0xf]
    %v154 = vunpack.c.l.b16 %v122
    %v155 = vunpack.c.l.b16 %v123
    %v156 = vunpack.c.l.b16 %v124
    %v157 = vunpack.c.l.b16 %v125
    %v158 = vunpack.c.l.b16 %v126
    %v159 = vunpack.c.l.b16 %v127
    %v160 = vunpack.c.l.b16 %v128
    %v161 = vunpack.c.l.b16 %v129
    %v162 = vunpack.c.l.b16 %v130
    %v163 = vunpack.c.l.b16 %v131
    %v164 = vunpack.c.l.b16 %v132
    %v165 = vunpack.c.l.b16 %v133
    %v166 = vunpack.c.l.b16 %v134
    %v167 = vunpack.c.l.b16 %v135
    %v168 = vunpack.c.l.b16 %v136
    %v169 = vunpack.c.l.b16 %v137
    %v170 = vpack.c.b16 %v155, %v154
    %v171 = vpack.c.b16 %v157, %v156
    %v172 = vpack.c.b16 %v159, %v158
    %v173 = vpack.c.b16 %v161, %v160
    %v174 = vpack.c.b16 %v163, %v162
    %v175 = vpack.c.b16 %v165, %v164
    %v176 = vpack.c.b16 %v167, %v166
    %v177 = vpack.c.b16 %v169, %v168
    %186 = vmatprep.subr.bf16.mxu0 0
    %187 = vmatpush1.bf16.msra.mxu0 %v170
    %188 = vmatprep.subr.bf16.mxu0 0
    %189 = vmatpush1.bf16.msra.mxu0 %v171
    %190 = vmatprep.subr.bf16.mxu0 0
    %191 = vmatpush1.bf16.msra.mxu0 %v172
    %192 = vmatprep.subr.bf16.mxu0 0
    %193 = vmatpush1.bf16.msra.mxu0 %v173
    %194 = vmatprep.subr.bf16.mxu0 0
    %195 = vmatpush1.bf16.msra.mxu0 %v174
    %196 = vmatprep.subr.bf16.mxu0 0
    %197 = vmatpush1.bf16.msra.mxu0 %v175
    %198 = vmatprep.subr.bf16.mxu0 0
    %199 = vmatpush1.bf16.msra.mxu0 %v176
    %200 = vmatprep.subr.bf16.mxu0 0
    %201 = vmatpush1.bf16.msra.mxu0 %v177
    %202 = vmatprep.subr.bf16.mxu0 0
    %203 = vmatpush1.bf16.msra.mxu0 0
    %204 = vmatprep.subr.bf16.mxu0 0
    %205 = vmatpush1.bf16.msra.mxu0 0
    %206 = vmatprep.subr.bf16.mxu0 0
    %207 = vmatpush1.bf16.msra.mxu0 0
    %208 = vmatprep.subr.bf16.mxu0 0
    %209 = vmatpush1.bf16.msra.mxu0 0
    %210 = vmatprep.subr.bf16.mxu0 0
    %211 = vmatpush1.bf16.msra.mxu0 0
    %212 = vmatprep.subr.bf16.mxu0 0
    %213 = vmatpush1.bf16.msra.mxu0 0
    %214 = vmatprep.subr.bf16.mxu0 0
    %215 = vmatpush1.bf16.msra.mxu0 0
    %216 = vmatprep.subr.bf16.mxu0 0
    %217 = vmatpush1.bf16.msra.mxu0 0
    %218 = vmatprep.mubr.bf16.mxu0 0
    %219 = vmatmul.mubr.bf16.gmra.mrb[0].mxu0 %v121
    %v220 = vpop.f32.mrb[0].mxu0
    %v221 = vadd.f32 0.0, %v220
    %v222 = vpop.f32.mrb[0].mxu0
    %v223 = vpop.f32.mrb[0].mxu0
    %v224 = vpop.f32.mrb[0].mxu0
    %225 = vdwg.mxu0
    %v226 = vpack.c.bf16 %v221, %v221
    %v227 = vld [vmem:[%s2] sm:$0x1]
    %v229 = vpack.i.b16 %v227, %v227
    %v231 = vlaneseq
    %v232 = vshrl.u32 %v231, 7
    %v233 = vsub.s32 0, %v232
    %v234 = vrot.slane %v229, %v233
    %v235 = vadd.bf16 %v226, %v234
    %v236 = vmul.bf16 %v235, 1045249613
    %v237 = vmax.bf16 %v235, %v236
    %v238 = vld [vmem:[#allocation7] sm:$0xff]
    %v239 = vld [vmem:[#allocation7 + $0x8] sm:$0xff]
    %v240 = vld [vmem:[#allocation7 + $0x10] sm:$0xff]
    %v241 = vld [vmem:[#allocation7 + $0x18] sm:$0xff]
    %v242 = vld [vmem:[#allocation7 + $0x20] sm:$0xff]
    %v243 = vld [vmem:[#allocation7 + $0x28] sm:$0xff]
    %v244 = vld [vmem:[#allocation7 + $0x30] sm:$0xff]
    %v245 = vld [vmem:[#allocation7 + $0x38] sm:$0xff]
    %v246 = vld [vmem:[#allocation7 + $0x40] sm:$0xff]
    %v247 = vld [vmem:[#allocation7 + $0x48] sm:$0xff]
    %v248 = vld [vmem:[#allocation7 + $0x50] sm:$0xff]
    %v249 = vld [vmem:[#allocation7 + $0x58] sm:$0xff]
    %v250 = vld [vmem:[#allocation7 + $0x60] sm:$0xff]
    %v251 = vld [vmem:[#allocation7 + $0x68] sm:$0xff]
    %v252 = vld [vmem:[#allocation7 + $0x70] sm:$0xff]
    %v253 = vld [vmem:[#allocation7 + $0x78] sm:$0xff]
    %v270 = vunpack.c.l.b16 %v238
    %v271 = vunpack.c.h.b16 %v238
    %v272 = vunpack.c.l.b16 %v239
    %v273 = vunpack.c.h.b16 %v239
    %v274 = vunpack.c.l.b16 %v240
    %v275 = vunpack.c.h.b16 %v240
    %v276 = vunpack.c.l.b16 %v241
    %v277 = vunpack.c.h.b16 %v241
    %v278 = vunpack.c.l.b16 %v242
    %v279 = vunpack.c.h.b16 %v242
    %v280 = vunpack.c.l.b16 %v243
    %v281 = vunpack.c.h.b16 %v243
    %v282 = vunpack.c.l.b16 %v244
    %v283 = vunpack.c.h.b16 %v244
    %v284 = vunpack.c.l.b16 %v245
    %v285 = vunpack.c.h.b16 %v245
    %v286 = vunpack.c.l.b16 %v246
    %v287 = vunpack.c.h.b16 %v246
    %v288 = vunpack.c.l.b16 %v247
    %v289 = vunpack.c.h.b16 %v247
    %v290 = vunpack.c.l.b16 %v248
    %v291 = vunpack.c.h.b16 %v248
    %v292 = vunpack.c.l.b16 %v249
    %v293 = vunpack.c.h.b16 %v249
    %v294 = vunpack.c.l.b16 %v250
    %v295 = vunpack.c.h.b16 %v250
    %v296 = vunpack.c.l.b16 %v251
    %v297 = vunpack.c.h.b16 %v251
    %v298 = vunpack.c.l.b16 %v252
    %v299 = vunpack.c.h.b16 %v252
    %v300 = vunpack.c.l.b16 %v253
    %v301 = vunpack.c.h.b16 %v253
    %v302 = vpack.c.b16 %v272, %v270
    %v303 = vpack.c.b16 %v273, %v271
    %v304 = vpack.c.b16 %v276, %v274
    %v305 = vpack.c.b16 %v277, %v275
    %v306 = vpack.c.b16 %v280, %v278
    %v307 = vpack.c.b16 %v281, %v279
    %v308 = vpack.c.b16 %v284, %v282
    %v309 = vpack.c.b16 %v285, %v283
    %v310 = vpack.c.b16 %v288, %v286
    %v311 = vpack.c.b16 %v289, %v287
    %v312 = vpack.c.b16 %v292, %v290
    %v313 = vpack.c.b16 %v293, %v291
    %v314 = vpack.c.b16 %v296, %v294
    %v315 = vpack.c.b16 %v297, %v295
    %v316 = vpack.c.b16 %v300, %v298
    %v317 = vpack.c.b16 %v301, %v299
    %334 = vmatprep.subr.bf16.mxu0 %v303
    %335 = vmatpush1.bf16.msra.mxu0 %v302
    %336 = vmatprep.subr.bf16.mxu0 %v305
    %337 = vmatpush1.bf16.msra.mxu0 %v304
    %338 = vmatprep.subr.bf16.mxu0 %v307
    %339 = vmatpush1.bf16.msra.mxu0 %v306
    %340 = vmatprep.subr.bf16.mxu0 %v309
    %341 = vmatpush1.bf16.msra.mxu0 %v308
    %342 = vmatprep.subr.bf16.mxu0 %v311
    %343 = vmatpush1.bf16.msra.mxu0 %v310
    %344 = vmatprep.subr.bf16.mxu0 %v313
    %345 = vmatpush1.bf16.msra.mxu0 %v312
    %346 = vmatprep.subr.bf16.mxu0 %v315
    %347 = vmatpush1.bf16.msra.mxu0 %v314
    %348 = vmatprep.subr.bf16.mxu0 %v317
    %349 = vmatpush1.bf16.msra.mxu0 %v316
    %350 = vmatprep.subr.bf16.mxu0 0
    %351 = vmatpush1.bf16.msra.mxu0 0
    %352 = vmatprep.subr.bf16.mxu0 0
    %353 = vmatpush1.bf16.msra.mxu0 0
    %354 = vmatprep.subr.bf16.mxu0 0
    %355 = vmatpush1.bf16.msra.mxu0 0
    %356 = vmatprep.subr.bf16.mxu0 0
    %357 = vmatpush1.bf16.msra.mxu0 0
    %358 = vmatprep.subr.bf16.mxu0 0
    %359 = vmatpush1.bf16.msra.mxu0 0
    %360 = vmatprep.subr.bf16.mxu0 0
    %361 = vmatpush1.bf16.msra.mxu0 0
    %362 = vmatprep.subr.bf16.mxu0 0
    %363 = vmatpush1.bf16.msra.mxu0 0
    %364 = vmatprep.subr.bf16.mxu0 0
    %365 = vmatpush1.bf16.msra.mxu0 0
    %366 = vmatprep.mubr.bf16.mxu0 0
    %367 = vmatmul.mubr.bf16.gmra.mrb[0].mxu0 %v237
    %v368 = vpop.f32.mrb[0].mxu0
    %v369 = vadd.f32 0.0, %v368
    %v370 = vpop.f32.mrb[0].mxu0
    %v371 = vadd.f32 0.0, %v370
    %v372 = vpop.f32.mrb[0].mxu0
    %v373 = vpop.f32.mrb[0].mxu0
    %374 = vdwg.mxu0
    %v375 = vpack.c.bf16 %v369, %v369
    %v376 = vpack.c.bf16 %v371, %v371
    %v377 = vld [vmem:[%s4] sm:$0x3]
    %v380 = vunpack.c.l.s4 1966171168
    %v381 = vunpack.c.0.s8 %v380
    %v382 = vlaneseq
    %v383 = vshrl.u32 %v382, 7
    %v384 = vsub.s32 %v381, %v383
    %v385 = vrot.slane %v377, %v384
    %v386 = vcombine.high %v385, %v385
    %v388 = vunpack.c.l.s4 1966171168
    %v389 = vunpack.c.0.s8 %v388
    %v390 = vlaneseq
    %v391 = vshrl.u32 %v390, 7
    %v392 = vsub.s32 %v389, %v391
    %v393 = vrot.slane %v385, %v392
    %v395 = vunpack.c.l.s4 1966171168
    %v396 = vunpack.c.0.s8 %v395
    %v397 = vlaneseq
    %v398 = vshrl.u32 %v397, 7
    %v399 = vsub.s32 %v396, %v398
    %v400 = vrot.slane %v386, %v399
    %v402 = vpack.i.b16 %v393, %v393
    %v404 = vlaneseq
    %v405 = vshrl.u32 %v404, 7
    %v406 = vsub.s32 0, %v405
    %v407 = vrot.slane %v402, %v406
    %v409 = vpack.i.b16 %v400, %v400
    %v411 = vlaneseq
    %v412 = vshrl.u32 %v411, 7
    %v413 = vsub.s32 0, %v412
    %v414 = vrot.slane %v409, %v413
    %v415 = vadd.bf16 %v375, %v407
    %v416 = vadd.bf16 %v376, %v414
    %v417 = vmul.bf16 %v415, 1045249613
    %v418 = vmul.bf16 %v416, 1045249613
    %v419 = vmax.bf16 %v415, %v417
    %v420 = vmax.bf16 %v416, %v418
    %v421 = vld [vmem:[#allocation8] sm:$0xff]
    %v422 = vld [vmem:[#allocation8 + $0x8] sm:$0xff]
    %v423 = vld [vmem:[#allocation8 + $0x10] sm:$0xff]
    %v424 = vld [vmem:[#allocation8 + $0x18] sm:$0xff]
    %v425 = vld [vmem:[#allocation8 + $0x20] sm:$0xff]
    %v426 = vld [vmem:[#allocation8 + $0x28] sm:$0xff]
    %v427 = vld [vmem:[#allocation8 + $0x30] sm:$0xff]
    %v428 = vld [vmem:[#allocation8 + $0x38] sm:$0xff]
    %v429 = vld [vmem:[#allocation8 + $0x40] sm:$0xff]
    %v430 = vld [vmem:[#allocation8 + $0x48] sm:$0xff]
    %v431 = vld [vmem:[#allocation8 + $0x50] sm:$0xff]
    %v432 = vld [vmem:[#allocation8 + $0x58] sm:$0xff]
    %v433 = vld [vmem:[#allocation8 + $0x60] sm:$0xff]
    %v434 = vld [vmem:[#allocation8 + $0x68] sm:$0xff]
    %v435 = vld [vmem:[#allocation8 + $0x70] sm:$0xff]
    %v436 = vld [vmem:[#allocation8 + $0x78] sm:$0xff]
    %v437 = vld [vmem:[#allocation8 + $0x80] sm:$0xff]
    %v438 = vld [vmem:[#allocation8 + $0x88] sm:$0xff]
    %v439 = vld [vmem:[#allocation8 + $0x90] sm:$0xff]
    %v440 = vld [vmem:[#allocation8 + $0x98] sm:$0xff]
    %v441 = vld [vmem:[#allocation8 + $0xa0] sm:$0xff]
    %v442 = vld [vmem:[#allocation8 + $0xa8] sm:$0xff]
    %v443 = vld [vmem:[#allocation8 + $0xb0] sm:$0xff]
    %v444 = vld [vmem:[#allocation8 + $0xb8] sm:$0xff]
    %v445 = vld [vmem:[#allocation8 + $0xc0] sm:$0xff]
    %v446 = vld [vmem:[#allocation8 + $0xc8] sm:$0xff]
    %v447 = vld [vmem:[#allocation8 + $0xd0] sm:$0xff]
    %v448 = vld [vmem:[#allocation8 + $0xd8] sm:$0xff]
    %v449 = vld [vmem:[#allocation8 + $0xe0] sm:$0xff]
    %v450 = vld [vmem:[#allocation8 + $0xe8] sm:$0xff]
    %v451 = vld [vmem:[#allocation8 + $0xf0] sm:$0xff]
    %v452 = vld [vmem:[#allocation8 + $0xf8] sm:$0xff]
    %v453 = vld [vmem:[#allocation8 + $0x100] sm:$0xff]
    %v454 = vld [vmem:[#allocation8 + $0x108] sm:$0xff]
    %v455 = vld [vmem:[#allocation8 + $0x110] sm:$0xff]
    %v456 = vld [vmem:[#allocation8 + $0x118] sm:$0xff]
    %v457 = vld [vmem:[#allocation8 + $0x120] sm:$0xff]
    %v458 = vld [vmem:[#allocation8 + $0x128] sm:$0xff]
    %v459 = vld [vmem:[#allocation8 + $0x130] sm:$0xff]
    %v460 = vld [vmem:[#allocation8 + $0x138] sm:$0xff]
    %v461 = vld [vmem:[#allocation8 + $0x140] sm:$0xff]
    %v462 = vld [vmem:[#allocation8 + $0x148] sm:$0xff]
    %v463 = vld [vmem:[#allocation8 + $0x150] sm:$0xff]
    %v464 = vld [vmem:[#allocation8 + $0x158] sm:$0xff]
    %v465 = vld [vmem:[#allocation8 + $0x160] sm:$0xff]
    %v466 = vld [vmem:[#allocation8 + $0x168] sm:$0xff]
    %v467 = vld [vmem:[#allocation8 + $0x170] sm:$0xff]
    %v468 = vld [vmem:[#allocation8 + $0x178] sm:$0xff]
    %v469 = vld [vmem:[#allocation8 + $0x180] sm:$0xff]
    %v470 = vld [vmem:[#allocation8 + $0x188] sm:$0xff]
    %v471 = vld [vmem:[#allocation8 + $0x190] sm:$0xff]
    %v472 = vld [vmem:[#allocation8 + $0x198] sm:$0xff]
    %v473 = vld [vmem:[#allocation8 + $0x1a0] sm:$0xff]
    %v474 = vld [vmem:[#allocation8 + $0x1a8] sm:$0xff]
    %v475 = vld [vmem:[#allocation8 + $0x1b0] sm:$0xff]
    %v476 = vld [vmem:[#allocation8 + $0x1b8] sm:$0xff]
    %v477 = vld [vmem:[#allocation8 + $0x1c0] sm:$0xff]
    %v478 = vld [vmem:[#allocation8 + $0x1c8] sm:$0xff]
    %v479 = vld [vmem:[#allocation8 + $0x1d0] sm:$0xff]
    %v480 = vld [vmem:[#allocation8 + $0x1d8] sm:$0xff]
    %v481 = vld [vmem:[#allocation8 + $0x1e0] sm:$0xff]
    %v482 = vld [vmem:[#allocation8 + $0x1e8] sm:$0xff]
    %v483 = vld [vmem:[#allocation8 + $0x1f0] sm:$0xff]
    %v484 = vld [vmem:[#allocation8 + $0x1f8] sm:$0xff]
    %v549 = vunpack.c.l.b16 %v421
    %v550 = vunpack.c.h.b16 %v421
    %v551 = vunpack.c.l.b16 %v422
    %v552 = vunpack.c.h.b16 %v422
    %v553 = vunpack.c.l.b16 %v423
    %v554 = vunpack.c.h.b16 %v423
    %v555 = vunpack.c.l.b16 %v424
    %v556 = vunpack.c.h.b16 %v424
    %v557 = vunpack.c.l.b16 %v425
    %v558 = vunpack.c.h.b16 %v425
    %v559 = vunpack.c.l.b16 %v426
    %v560 = vunpack.c.h.b16 %v426
    %v561 = vunpack.c.l.b16 %v427
    %v562 = vunpack.c.h.b16 %v427
    %v563 = vunpack.c.l.b16 %v428
    %v564 = vunpack.c.h.b16 %v428
    %v565 = vunpack.c.l.b16 %v429
    %v566 = vunpack.c.h.b16 %v429
    %v567 = vunpack.c.l.b16 %v430
    %v568 = vunpack.c.h.b16 %v430
    %v569 = vunpack.c.l.b16 %v431
    %v570 = vunpack.c.h.b16 %v431
    %v571 = vunpack.c.l.b16 %v432
    %v572 = vunpack.c.h.b16 %v432
    %v573 = vunpack.c.l.b16 %v433
    %v574 = vunpack.c.h.b16 %v433
    %v575 = vunpack.c.l.b16 %v434
    %v576 = vunpack.c.h.b16 %v434
    %v577 = vunpack.c.l.b16 %v435
    %v578 = vunpack.c.h.b16 %v435
    %v579 = vunpack.c.l.b16 %v436
    %v580 = vunpack.c.h.b16 %v436
    %v581 = vunpack.c.l.b16 %v437
    %v582 = vunpack.c.h.b16 %v437
    %v583 = vunpack.c.l.b16 %v438
    %v584 = vunpack.c.h.b16 %v438
    %v585 = vunpack.c.l.b16 %v439
    %v586 = vunpack.c.h.b16 %v439
    %v587 = vunpack.c.l.b16 %v440
    %v588 = vunpack.c.h.b16 %v440
    %v589 = vunpack.c.l.b16 %v441
    %v590 = vunpack.c.h.b16 %v441
    %v591 = vunpack.c.l.b16 %v442
    %v592 = vunpack.c.h.b16 %v442
    %v593 = vunpack.c.l.b16 %v443
    %v594 = vunpack.c.h.b16 %v443
    %v595 = vunpack.c.l.b16 %v444
    %v596 = vunpack.c.h.b16 %v444
    %v597 = vunpack.c.l.b16 %v445
    %v598 = vunpack.c.h.b16 %v445
    %v599 = vunpack.c.l.b16 %v446
    %v600 = vunpack.c.h.b16 %v446
    %v601 = vunpack.c.l.b16 %v447
    %v602 = vunpack.c.h.b16 %v447
    %v603 = vunpack.c.l.b16 %v448
    %v604 = vunpack.c.h.b16 %v448
    %v605 = vunpack.c.l.b16 %v449
    %v606 = vunpack.c.h.b16 %v449
    %v607 = vunpack.c.l.b16 %v450
    %v608 = vunpack.c.h.b16 %v450
    %v609 = vunpack.c.l.b16 %v451
    %v610 = vunpack.c.h.b16 %v451
    %v611 = vunpack.c.l.b16 %v452
    %v612 = vunpack.c.h.b16 %v452
    %v613 = vunpack.c.l.b16 %v453
    %v614 = vunpack.c.h.b16 %v453
    %v615 = vunpack.c.l.b16 %v454
    %v616 = vunpack.c.h.b16 %v454
    %v617 = vunpack.c.l.b16 %v455
    %v618 = vunpack.c.h.b16 %v455
    %v619 = vunpack.c.l.b16 %v456
    %v620 = vunpack.c.h.b16 %v456
    %v621 = vunpack.c.l.b16 %v457
    %v622 = vunpack.c.h.b16 %v457
    %v623 = vunpack.c.l.b16 %v458
    %v624 = vunpack.c.h.b16 %v458
    %v625 = vunpack.c.l.b16 %v459
    %v626 = vunpack.c.h.b16 %v459
    %v627 = vunpack.c.l.b16 %v460
    %v628 = vunpack.c.h.b16 %v460
    %v629 = vunpack.c.l.b16 %v461
    %v630 = vunpack.c.h.b16 %v461
    %v631 = vunpack.c.l.b16 %v462
    %v632 = vunpack.c.h.b16 %v462
    %v633 = vunpack.c.l.b16 %v463
    %v634 = vunpack.c.h.b16 %v463
    %v635 = vunpack.c.l.b16 %v464
    %v636 = vunpack.c.h.b16 %v464
    %v637 = vunpack.c.l.b16 %v465
    %v638 = vunpack.c.h.b16 %v465
    %v639 = vunpack.c.l.b16 %v466
    %v640 = vunpack.c.h.b16 %v466
    %v641 = vunpack.c.l.b16 %v467
    %v642 = vunpack.c.h.b16 %v467
    %v643 = vunpack.c.l.b16 %v468
    %v644 = vunpack.c.h.b16 %v468
    %v645 = vunpack.c.l.b16 %v469
    %v646 = vunpack.c.h.b16 %v469
    %v647 = vunpack.c.l.b16 %v470
    %v648 = vunpack.c.h.b16 %v470
    %v649 = vunpack.c.l.b16 %v471
    %v650 = vunpack.c.h.b16 %v471
    %v651 = vunpack.c.l.b16 %v472
    %v652 = vunpack.c.h.b16 %v472
    %v653 = vunpack.c.l.b16 %v473
    %v654 = vunpack.c.h.b16 %v473
    %v655 = vunpack.c.l.b16 %v474
    %v656 = vunpack.c.h.b16 %v474
    %v657 = vunpack.c.l.b16 %v475
    %v658 = vunpack.c.h.b16 %v475
    %v659 = vunpack.c.l.b16 %v476
    %v660 = vunpack.c.h.b16 %v476
    %v661 = vunpack.c.l.b16 %v477
    %v662 = vunpack.c.h.b16 %v477
    %v663 = vunpack.c.l.b16 %v478
    %v664 = vunpack.c.h.b16 %v478
    %v665 = vunpack.c.l.b16 %v479
    %v666 = vunpack.c.h.b16 %v479
    %v667 = vunpack.c.l.b16 %v480
    %v668 = vunpack.c.h.b16 %v480
    %v669 = vunpack.c.l.b16 %v481
    %v670 = vunpack.c.h.b16 %v481
    %v671 = vunpack.c.l.b16 %v482
    %v672 = vunpack.c.h.b16 %v482
    %v673 = vunpack.c.l.b16 %v483
    %v674 = vunpack.c.h.b16 %v483
    %v675 = vunpack.c.l.b16 %v484
    %v676 = vunpack.c.h.b16 %v484
    %v677 = vpack.c.b16 %v553, %v549
    %v678 = vpack.c.b16 %v554, %v550
    %v679 = vpack.c.b16 %v555, %v551
    %v680 = vpack.c.b16 %v556, %v552
    %v681 = vpack.c.b16 %v561, %v557
    %v682 = vpack.c.b16 %v562, %v558
    %v683 = vpack.c.b16 %v563, %v559
    %v684 = vpack.c.b16 %v564, %v560
    %v685 = vpack.c.b16 %v569, %v565
    %v686 = vpack.c.b16 %v570, %v566
    %v687 = vpack.c.b16 %v571, %v567
    %v688 = vpack.c.b16 %v572, %v568
    %v689 = vpack.c.b16 %v577, %v573
    %v690 = vpack.c.b16 %v578, %v574
    %v691 = vpack.c.b16 %v579, %v575
    %v692 = vpack.c.b16 %v580, %v576
    %v693 = vpack.c.b16 %v585, %v581
    %v694 = vpack.c.b16 %v586, %v582
    %v695 = vpack.c.b16 %v587, %v583
    %v696 = vpack.c.b16 %v588, %v584
    %v697 = vpack.c.b16 %v593, %v589
    %v698 = vpack.c.b16 %v594, %v590
    %v699 = vpack.c.b16 %v595, %v591
    %v700 = vpack.c.b16 %v596, %v592
    %v701 = vpack.c.b16 %v601, %v597
    %v702 = vpack.c.b16 %v602, %v598
    %v703 = vpack.c.b16 %v603, %v599
    %v704 = vpack.c.b16 %v604, %v600
    %v705 = vpack.c.b16 %v609, %v605
    %v706 = vpack.c.b16 %v610, %v606
    %v707 = vpack.c.b16 %v611, %v607
    %v708 = vpack.c.b16 %v612, %v608
    %v709 = vpack.c.b16 %v617, %v613
    %v710 = vpack.c.b16 %v618, %v614
    %v711 = vpack.c.b16 %v619, %v615
    %v712 = vpack.c.b16 %v620, %v616
    %v713 = vpack.c.b16 %v625, %v621
    %v714 = vpack.c.b16 %v626, %v622
    %v715 = vpack.c.b16 %v627, %v623
    %v716 = vpack.c.b16 %v628, %v624
    %v717 = vpack.c.b16 %v633, %v629
    %v718 = vpack.c.b16 %v634, %v630
    %v719 = vpack.c.b16 %v635, %v631
    %v720 = vpack.c.b16 %v636, %v632
    %v721 = vpack.c.b16 %v641, %v637
    %v722 = vpack.c.b16 %v642, %v638
    %v723 = vpack.c.b16 %v643, %v639
    %v724 = vpack.c.b16 %v644, %v640
    %v725 = vpack.c.b16 %v649, %v645
    %v726 = vpack.c.b16 %v650, %v646
    %v727 = vpack.c.b16 %v651, %v647
    %v728 = vpack.c.b16 %v652, %v648
    %v729 = vpack.c.b16 %v657, %v653
    %v730 = vpack.c.b16 %v658, %v654
    %v731 = vpack.c.b16 %v659, %v655
    %v732 = vpack.c.b16 %v660, %v656
    %v733 = vpack.c.b16 %v665, %v661
    %v734 = vpack.c.b16 %v666, %v662
    %v735 = vpack.c.b16 %v667, %v663
    %v736 = vpack.c.b16 %v668, %v664
    %v737 = vpack.c.b16 %v673, %v669
    %v738 = vpack.c.b16 %v674, %v670
    %v739 = vpack.c.b16 %v675, %v671
    %v740 = vpack.c.b16 %v676, %v672
    %805 = vmatprep.subr.bf16.mxu0 %v678
    %806 = vmatpush1.bf16.msra.mxu0 %v677
    %807 = vmatprep.subr.bf16.mxu0 %v682
    %808 = vmatpush1.bf16.msra.mxu0 %v681
    %809 = vmatprep.subr.bf16.mxu0 %v686
    %810 = vmatpush1.bf16.msra.mxu0 %v685
    %811 = vmatprep.subr.bf16.mxu0 %v690
    %812 = vmatpush1.bf16.msra.mxu0 %v689
    %813 = vmatprep.subr.bf16.mxu0 %v694
    %814 = vmatpush1.bf16.msra.mxu0 %v693
    %815 = vmatprep.subr.bf16.mxu0 %v698
    %816 = vmatpush1.bf16.msra.mxu0 %v697
    %817 = vmatprep.subr.bf16.mxu0 %v702
    %818 = vmatpush1.bf16.msra.mxu0 %v701
    %819 = vmatprep.subr.bf16.mxu0 %v706
    %820 = vmatpush1.bf16.msra.mxu0 %v705
    %821 = vmatprep.subr.bf16.mxu0 %v710
    %822 = vmatpush1.bf16.msra.mxu0 %v709
    %823 = vmatprep.subr.bf16.mxu0 %v714
    %824 = vmatpush1.bf16.msra.mxu0 %v713
    %825 = vmatprep.subr.bf16.mxu0 %v718
    %826 = vmatpush1.bf16.msra.mxu0 %v717
    %827 = vmatprep.subr.bf16.mxu0 %v722
    %828 = vmatpush1.bf16.msra.mxu0 %v721
    %829 = vmatprep.subr.bf16.mxu0 %v726
    %830 = vmatpush1.bf16.msra.mxu0 %v725
    %831 = vmatprep.subr.bf16.mxu0 %v730
    %832 = vmatpush1.bf16.msra.mxu0 %v729
    %833 = vmatprep.subr.bf16.mxu0 %v734
    %834 = vmatpush1.bf16.msra.mxu0 %v733
    %835 = vmatprep.subr.bf16.mxu0 %v738
    %836 = vmatpush1.bf16.msra.mxu0 %v737
    %837 = vmatprep.mubr.bf16.mxu0 %v420
    %838 = vmatmul.mubr.bf16.gmra.mrb[0].mxu0 %v419
    %v839 = vpop.f32.mrb[0].mxu0
    %v840 = vadd.f32 0.0, %v839
    %v841 = vpop.f32.mrb[0].mxu0
    %v842 = vadd.f32 0.0, %v841
    %v843 = vpop.f32.mrb[0].mxu0
    %v844 = vpop.f32.mrb[0].mxu0
    %845 = vdwg.mxu0
    %846 = vmatprep.subr.bf16.mxu0 %v680
    %847 = vmatpush1.bf16.msra.mxu0 %v679
    %848 = vmatprep.subr.bf16.mxu0 %v684
    %849 = vmatpush1.bf16.msra.mxu0 %v683
    %850 = vmatprep.subr.bf16.mxu0 %v688
    %851 = vmatpush1.bf16.msra.mxu0 %v687
    %852 = vmatprep.subr.bf16.mxu0 %v692
    %853 = vmatpush1.bf16.msra.mxu0 %v691
    %854 = vmatprep.subr.bf16.mxu0 %v696
    %855 = vmatpush1.bf16.msra.mxu0 %v695
    %856 = vmatprep.subr.bf16.mxu0 %v700
    %857 = vmatpush1.bf16.msra.mxu0 %v699
    %858 = vmatprep.subr.bf16.mxu0 %v704
    %859 = vmatpush1.bf16.msra.mxu0 %v703
    %860 = vmatprep.subr.bf16.mxu0 %v708
    %861 = vmatpush1.bf16.msra.mxu0 %v707
    %862 = vmatprep.subr.bf16.mxu0 %v712
    %863 = vmatpush1.bf16.msra.mxu0 %v711
    %864 = vmatprep.subr.bf16.mxu0 %v716
    %865 = vmatpush1.bf16.msra.mxu0 %v715
    %866 = vmatprep.subr.bf16.mxu0 %v720
    %867 = vmatpush1.bf16.msra.mxu0 %v719
    %868 = vmatprep.subr.bf16.mxu0 %v724
    %869 = vmatpush1.bf16.msra.mxu0 %v723
    %870 = vmatprep.subr.bf16.mxu0 %v728
    %871 = vmatpush1.bf16.msra.mxu0 %v727
    %872 = vmatprep.subr.bf16.mxu0 %v732
    %873 = vmatpush1.bf16.msra.mxu0 %v731
    %874 = vmatprep.subr.bf16.mxu0 %v736
    %875 = vmatpush1.bf16.msra.mxu0 %v735
    %876 = vmatprep.subr.bf16.mxu0 %v740
    %877 = vmatpush1.bf16.msra.mxu0 %v739
    %878 = vmatprep.mubr.bf16.mxu0 %v420
    %879 = vmatmul.mubr.bf16.gmra.mrb[0].mxu0 %v419
    %v880 = vpop.f32.mrb[0].mxu0
    %v881 = vadd.f32 0.0, %v880
    %v882 = vpop.f32.mrb[0].mxu0
    %v883 = vadd.f32 0.0, %v882
    %v884 = vpop.f32.mrb[0].mxu0
    %v885 = vpop.f32.mrb[0].mxu0
    %886 = vdwg.mxu0
    %v887 = vpack.c.bf16 %v840, %v840
    %v888 = vpack.c.bf16 %v842, %v842
    %v889 = vpack.c.bf16 %v881, %v881
    %v890 = vpack.c.bf16 %v883, %v883
    %v891 = vld [vmem:[%s6] sm:$0xf]
    %v894 = vunpack.c.l.s4 1966171168
    %v895 = vunpack.c.0.s8 %v894
    %v896 = vlaneseq
    %v897 = vshrl.u32 %v896, 7
    %v898 = vsub.s32 %v895, %v897
    %v899 = vrot.slane %v891, %v898
    %v900 = vcombine.high %v899, %v899
    %v902 = vunpack.c.l.s4 1966171168
    %v903 = vunpack.c.0.s8 %v902
    %v904 = vlaneseq
    %v905 = vshrl.u32 %v904, 7
    %v906 = vsub.s32 %v903, %v905
    %v907 = vrot.slane %v899, %v906
    %v909 = vunpack.c.l.s4 1966171168
    %v910 = vunpack.c.0.s8 %v909
    %v911 = vlaneseq
    %v912 = vshrl.u32 %v911, 7
    %v913 = vsub.s32 %v910, %v912
    %v914 = vrot.slane %v900, %v913
    %v915 = vcombine.high %v907, %v907
    %v916 = vcombine.high %v914, %v914
    %v918 = vpack.i.b16 %v907, %v907
    %v920 = vlaneseq
    %v921 = vshrl.u32 %v920, 7
    %v922 = vsub.s32 0, %v921
    %v923 = vrot.slane %v918, %v922
    %v925 = vpack.i.b16 %v914, %v914
    %v927 = vlaneseq
    %v928 = vshrl.u32 %v927, 7
    %v929 = vsub.s32 0, %v928
    %v930 = vrot.slane %v925, %v929
    %v932 = vpack.i.b16 %v915, %v915
    %v934 = vlaneseq
    %v935 = vshrl.u32 %v934, 7
    %v936 = vsub.s32 0, %v935
    %v937 = vrot.slane %v932, %v936
    %v939 = vpack.i.b16 %v916, %v916
    %v941 = vlaneseq
    %v942 = vshrl.u32 %v941, 7
    %v943 = vsub.s32 0, %v942
    %v944 = vrot.slane %v939, %v943
    %v945 = vadd.bf16 %v887, %v923
    %v946 = vadd.bf16 %v888, %v930
    %v947 = vadd.bf16 %v889, %v937
    %v948 = vadd.bf16 %v890, %v944
    %v949 = vmul.bf16 %v945, 1045249613
    %v950 = vmul.bf16 %v946, 1045249613
    %v951 = vmul.bf16 %v947, 1045249613
    %v952 = vmul.bf16 %v948, 1045249613
    %v953 = vmax.bf16 %v945, %v949
    %v954 = vmax.bf16 %v946, %v950
    %v955 = vmax.bf16 %v947, %v951
    %v956 = vmax.bf16 %v948, %v952
    %v957 = vld [vmem:[#allocation10] sm:$0xff]
    %v958 = vld [vmem:[#allocation10 + $0x8] sm:$0xff]
    %v959 = vld [vmem:[#allocation10 + $0x10] sm:$0xff]
    %v960 = vld [vmem:[#allocation10 + $0x18] sm:$0xff]
    %v961 = vld [vmem:[#allocation10 + $0x20] sm:$0xff]
    %v962 = vld [vmem:[#allocation10 + $0x28] sm:$0xff]
    %v963 = vld [vmem:[#allocation10 + $0x30] sm:$0xff]
    %v964 = vld [vmem:[#allocation10 + $0x38] sm:$0xff]
    %v965 = vld [vmem:[#allocation10 + $0x40] sm:$0xff]
    %v966 = vld [vmem:[#allocation10 + $0x48] sm:$0xff]
    %v967 = vld [vmem:[#allocation10 + $0x50] sm:$0xff]
    %v968 = vld [vmem:[#allocation10 + $0x58] sm:$0xff]
    %v969 = vld [vmem:[#allocation10 + $0x60] sm:$0xff]
    %v970 = vld [vmem:[#allocation10 + $0x68] sm:$0xff]
    %v971 = vld [vmem:[#allocation10 + $0x70] sm:$0xff]
    %v972 = vld [vmem:[#allocation10 + $0x78] sm:$0xff]
    %v973 = vld [vmem:[#allocation10 + $0x80] sm:$0xff]
    %v974 = vld [vmem:[#allocation10 + $0x88] sm:$0xff]
    %v975 = vld [vmem:[#allocation10 + $0x90] sm:$0xff]
    %v976 = vld [vmem:[#allocation10 + $0x98] sm:$0xff]
    %v977 = vld [vmem:[#allocation10 + $0xa0] sm:$0xff]
    %v978 = vld [vmem:[#allocation10 + $0xa8] sm:$0xff]
    %v979 = vld [vmem:[#allocation10 + $0xb0] sm:$0xff]
    %v980 = vld [vmem:[#allocation10 + $0xb8] sm:$0xff]
    %v981 = vld [vmem:[#allocation10 + $0xc0] sm:$0xff]
    %v982 = vld [vmem:[#allocation10 + $0xc8] sm:$0xff]
    %v983 = vld [vmem:[#allocation10 + $0xd0] sm:$0xff]
    %v984 = vld [vmem:[#allocation10 + $0xd8] sm:$0xff]
    %v985 = vld [vmem:[#allocation10 + $0xe0] sm:$0xff]
    %v986 = vld [vmem:[#allocation10 + $0xe8] sm:$0xff]
    %v987 = vld [vmem:[#allocation10 + $0xf0] sm:$0xff]
    %v988 = vld [vmem:[#allocation10 + $0xf8] sm:$0xff]
    %v989 = vld [vmem:[#allocation10 + $0x100] sm:$0xff]
    %v990 = vld [vmem:[#allocation10 + $0x108] sm:$0xff]
    %v991 = vld [vmem:[#allocation10 + $0x110] sm:$0xff]
    %v992 = vld [vmem:[#allocation10 + $0x118] sm:$0xff]
    %v993 = vld [vmem:[#allocation10 + $0x120] sm:$0xff]
    %v994 = vld [vmem:[#allocation10 + $0x128] sm:$0xff]
    %v995 = vld [vmem:[#allocation10 + $0x130] sm:$0xff]
    %v996 = vld [vmem:[#allocation10 + $0x138] sm:$0xff]
    %v997 = vld [vmem:[#allocation10 + $0x140] sm:$0xff]
    %v998 = vld [vmem:[#allocation10 + $0x148] sm:$0xff]
    %v999 = vld [vmem:[#allocation10 + $0x150] sm:$0xff]
    %v1000 = vld [vmem:[#allocation10 + $0x158] sm:$0xff]
    %v1001 = vld [vmem:[#allocation10 + $0x160] sm:$0xff]
    %v1002 = vld [vmem:[#allocation10 + $0x168] sm:$0xff]
    %v1003 = vld [vmem:[#allocation10 + $0x170] sm:$0xff]
    %v1004 = vld [vmem:[#allocation10 + $0x178] sm:$0xff]
    %v1005 = vld [vmem:[#allocation10 + $0x180] sm:$0xff]
    %v1006 = vld [vmem:[#allocation10 + $0x188] sm:$0xff]
    %v1007 = vld [vmem:[#allocation10 + $0x190] sm:$0xff]
    %v1008 = vld [vmem:[#allocation10 + $0x198] sm:$0xff]
    %v1009 = vld [vmem:[#allocation10 + $0x1a0] sm:$0xff]
    %v1010 = vld [vmem:[#allocation10 + $0x1a8] sm:$0xff]
    %v1011 = vld [vmem:[#allocation10 + $0x1b0] sm:$0xff]
    %v1012 = vld [vmem:[#allocation10 + $0x1b8] sm:$0xff]
    %v1013 = vld [vmem:[#allocation10 + $0x1c0] sm:$0xff]
    %v1014 = vld [vmem:[#allocation10 + $0x1c8] sm:$0xff]
    %v1015 = vld [vmem:[#allocation10 + $0x1d0] sm:$0xff]
    %v1016 = vld [vmem:[#allocation10 + $0x1d8] sm:$0xff]
    %v1017 = vld [vmem:[#allocation10 + $0x1e0] sm:$0xff]
    %v1018 = vld [vmem:[#allocation10 + $0x1e8] sm:$0xff]
    %v1019 = vld [vmem:[#allocation10 + $0x1f0] sm:$0xff]
    %v1020 = vld [vmem:[#allocation10 + $0x1f8] sm:$0xff]
    %v1021 = vld [vmem:[#allocation10 + $0x200] sm:$0xff]
    %v1022 = vld [vmem:[#allocation10 + $0x208] sm:$0xff]
    %v1023 = vld [vmem:[#allocation10 + $0x210] sm:$0xff]
    %v1024 = vld [vmem:[#allocation10 + $0x218] sm:$0xff]
    %v1025 = vld [vmem:[#allocation10 + $0x220] sm:$0xff]
    %v1026 = vld [vmem:[#allocation10 + $0x228] sm:$0xff]
    %v1027 = vld [vmem:[#allocation10 + $0x230] sm:$0xff]
    %v1028 = vld [vmem:[#allocation10 + $0x238] sm:$0xff]
    %v1029 = vld [vmem:[#allocation10 + $0x240] sm:$0xff]
    %v1030 = vld [vmem:[#allocation10 + $0x248] sm:$0xff]
    %v1031 = vld [vmem:[#allocation10 + $0x250] sm:$0xff]
    %v1032 = vld [vmem:[#allocation10 + $0x258] sm:$0xff]
    %v1033 = vld [vmem:[#allocation10 + $0x260] sm:$0xff]
    %v1034 = vld [vmem:[#allocation10 + $0x268] sm:$0xff]
    %v1035 = vld [vmem:[#allocation10 + $0x270] sm:$0xff]
    %v1036 = vld [vmem:[#allocation10 + $0x278] sm:$0xff]
    %v1037 = vld [vmem:[#allocation10 + $0x280] sm:$0xff]
    %v1038 = vld [vmem:[#allocation10 + $0x288] sm:$0xff]
    %v1039 = vld [vmem:[#allocation10 + $0x290] sm:$0xff]
    %v1040 = vld [vmem:[#allocation10 + $0x298] sm:$0xff]
    %v1041 = vld [vmem:[#allocation10 + $0x2a0] sm:$0xff]
    %v1042 = vld [vmem:[#allocation10 + $0x2a8] sm:$0xff]
    %v1043 = vld [vmem:[#allocation10 + $0x2b0] sm:$0xff]
    %v1044 = vld [vmem:[#allocation10 + $0x2b8] sm:$0xff]
    %v1045 = vld [vmem:[#allocation10 + $0x2c0] sm:$0xff]
    %v1046 = vld [vmem:[#allocation10 + $0x2c8] sm:$0xff]
    %v1047 = vld [vmem:[#allocation10 + $0x2d0] sm:$0xff]
    %v1048 = vld [vmem:[#allocation10 + $0x2d8] sm:$0xff]
    %v1049 = vld [vmem:[#allocation10 + $0x2e0] sm:$0xff]
    %v1050 = vld [vmem:[#allocation10 + $0x2e8] sm:$0xff]
    %v1051 = vld [vmem:[#allocation10 + $0x2f0] sm:$0xff]
    %v1052 = vld [vmem:[#allocation10 + $0x2f8] sm:$0xff]
    %v1053 = vld [vmem:[#allocation10 + $0x300] sm:$0xff]
    %v1054 = vld [vmem:[#allocation10 + $0x308] sm:$0xff]
    %v1055 = vld [vmem:[#allocation10 + $0x310] sm:$0xff]
    %v1056 = vld [vmem:[#allocation10 + $0x318] sm:$0xff]
    %v1057 = vld [vmem:[#allocation10 + $0x320] sm:$0xff]
    %v1058 = vld [vmem:[#allocation10 + $0x328] sm:$0xff]
    %v1059 = vld [vmem:[#allocation10 + $0x330] sm:$0xff]
    %v1060 = vld [vmem:[#allocation10 + $0x338] sm:$0xff]
    %v1061 = vld [vmem:[#allocation10 + $0x340] sm:$0xff]
    %v1062 = vld [vmem:[#allocation10 + $0x348] sm:$0xff]
    %v1063 = vld [vmem:[#allocation10 + $0x350] sm:$0xff]
    %v1064 = vld [vmem:[#allocation10 + $0x358] sm:$0xff]
    %v1065 = vld [vmem:[#allocation10 + $0x360] sm:$0xff]
    %v1066 = vld [vmem:[#allocation10 + $0x368] sm:$0xff]
    %v1067 = vld [vmem:[#allocation10 + $0x370] sm:$0xff]
    %v1068 = vld [vmem:[#allocation10 + $0x378] sm:$0xff]
    %v1069 = vld [vmem:[#allocation10 + $0x380] sm:$0xff]
    %v1070 = vld [vmem:[#allocation10 + $0x388] sm:$0xff]
    %v1071 = vld [vmem:[#allocation10 + $0x390] sm:$0xff]
    %v1072 = vld [vmem:[#allocation10 + $0x398] sm:$0xff]
    %v1073 = vld [vmem:[#allocation10 + $0x3a0] sm:$0xff]
    %v1074 = vld [vmem:[#allocation10 + $0x3a8] sm:$0xff]
    %v1075 = vld [vmem:[#allocation10 + $0x3b0] sm:$0xff]
    %v1076 = vld [vmem:[#allocation10 + $0x3b8] sm:$0xff]
    %v1077 = vld [vmem:[#allocation10 + $0x3c0] sm:$0xff]
    %v1078 = vld [vmem:[#allocation10 + $0x3c8] sm:$0xff]
    %v1079 = vld [vmem:[#allocation10 + $0x3d0] sm:$0xff]
    %v1080 = vld [vmem:[#allocation10 + $0x3d8] sm:$0xff]
    %v1081 = vld [vmem:[#allocation10 + $0x3e0] sm:$0xff]
    %v1082 = vld [vmem:[#allocation10 + $0x3e8] sm:$0xff]
    %v1083 = vld [vmem:[#allocation10 + $0x3f0] sm:$0xff]
    %v1084 = vld [vmem:[#allocation10 + $0x3f8] sm:$0xff]
    %v1085 = vld [vmem:[#allocation10 + $0x400] sm:$0xff]
    %v1086 = vld [vmem:[#allocation10 + $0x408] sm:$0xff]
    %v1087 = vld [vmem:[#allocation10 + $0x410] sm:$0xff]
    %v1088 = vld [vmem:[#allocation10 + $0x418] sm:$0xff]
    %v1089 = vld [vmem:[#allocation10 + $0x420] sm:$0xff]
    %v1090 = vld [vmem:[#allocation10 + $0x428] sm:$0xff]
    %v1091 = vld [vmem:[#allocation10 + $0x430] sm:$0xff]
    %v1092 = vld [vmem:[#allocation10 + $0x438] sm:$0xff]
    %v1093 = vld [vmem:[#allocation10 + $0x440] sm:$0xff]
    %v1094 = vld [vmem:[#allocation10 + $0x448] sm:$0xff]
    %v1095 = vld [vmem:[#allocation10 + $0x450] sm:$0xff]
    %v1096 = vld [vmem:[#allocation10 + $0x458] sm:$0xff]
    %v1097 = vld [vmem:[#allocation10 + $0x460] sm:$0xff]
    %v1098 = vld [vmem:[#allocation10 + $0x468] sm:$0xff]
    %v1099 = vld [vmem:[#allocation10 + $0x470] sm:$0xff]
    %v1100 = vld [vmem:[#allocation10 + $0x478] sm:$0xff]
    %v1101 = vld [vmem:[#allocation10 + $0x480] sm:$0xff]
    %v1102 = vld [vmem:[#allocation10 + $0x488] sm:$0xff]
    %v1103 = vld [vmem:[#allocation10 + $0x490] sm:$0xff]
    %v1104 = vld [vmem:[#allocation10 + $0x498] sm:$0xff]
    %v1105 = vld [vmem:[#allocation10 + $0x4a0] sm:$0xff]
    %v1106 = vld [vmem:[#allocation10 + $0x4a8] sm:$0xff]
    %v1107 = vld [vmem:[#allocation10 + $0x4b0] sm:$0xff]
    %v1108 = vld [vmem:[#allocation10 + $0x4b8] sm:$0xff]
    %v1109 = vld [vmem:[#allocation10 + $0x4c0] sm:$0xff]
    %v1110 = vld [vmem:[#allocation10 + $0x4c8] sm:$0xff]
    %v1111 = vld [vmem:[#allocation10 + $0x4d0] sm:$0xff]
    %v1112 = vld [vmem:[#allocation10 + $0x4d8] sm:$0xff]
    %v1113 = vld [vmem:[#allocation10 + $0x4e0] sm:$0xff]
    %v1114 = vld [vmem:[#allocation10 + $0x4e8] sm:$0xff]
    %v1115 = vld [vmem:[#allocation10 + $0x4f0] sm:$0xff]
    %v1116 = vld [vmem:[#allocation10 + $0x4f8] sm:$0xff]
    %v1117 = vld [vmem:[#allocation10 + $0x500] sm:$0xff]
    %v1118 = vld [vmem:[#allocation10 + $0x508] sm:$0xff]
    %v1119 = vld [vmem:[#allocation10 + $0x510] sm:$0xff]
    %v1120 = vld [vmem:[#allocation10 + $0x518] sm:$0xff]
    %v1121 = vld [vmem:[#allocation10 + $0x520] sm:$0xff]
    %v1122 = vld [vmem:[#allocation10 + $0x528] sm:$0xff]
    %v1123 = vld [vmem:[#allocation10 + $0x530] sm:$0xff]
    %v1124 = vld [vmem:[#allocation10 + $0x538] sm:$0xff]
    %v1125 = vld [vmem:[#allocation10 + $0x540] sm:$0xff]
    %v1126 = vld [vmem:[#allocation10 + $0x548] sm:$0xff]
    %v1127 = vld [vmem:[#allocation10 + $0x550] sm:$0xff]
    %v1128 = vld [vmem:[#allocation10 + $0x558] sm:$0xff]
    %v1129 = vld [vmem:[#allocation10 + $0x560] sm:$0xff]
    %v1130 = vld [vmem:[#allocation10 + $0x568] sm:$0xff]
    %v1131 = vld [vmem:[#allocation10 + $0x570] sm:$0xff]
    %v1132 = vld [vmem:[#allocation10 + $0x578] sm:$0xff]
    %v1133 = vld [vmem:[#allocation10 + $0x580] sm:$0xff]
    %v1134 = vld [vmem:[#allocation10 + $0x588] sm:$0xff]
    %v1135 = vld [vmem:[#allocation10 + $0x590] sm:$0xff]
    %v1136 = vld [vmem:[#allocation10 + $0x598] sm:$0xff]
    %v1137 = vld [vmem:[#allocation10 + $0x5a0] sm:$0xff]
    %v1138 = vld [vmem:[#allocation10 + $0x5a8] sm:$0xff]
    %v1139 = vld [vmem:[#allocation10 + $0x5b0] sm:$0xff]
    %v1140 = vld [vmem:[#allocation10 + $0x5b8] sm:$0xff]
    %v1141 = vld [vmem:[#allocation10 + $0x5c0] sm:$0xff]
    %v1142 = vld [vmem:[#allocation10 + $0x5c8] sm:$0xff]
    %v1143 = vld [vmem:[#allocation10 + $0x5d0] sm:$0xff]
    %v1144 = vld [vmem:[#allocation10 + $0x5d8] sm:$0xff]
    %v1145 = vld [vmem:[#allocation10 + $0x5e0] sm:$0xff]
    %v1146 = vld [vmem:[#allocation10 + $0x5e8] sm:$0xff]
    %v1147 = vld [vmem:[#allocation10 + $0x5f0] sm:$0xff]
    %v1148 = vld [vmem:[#allocation10 + $0x5f8] sm:$0xff]
    %v1149 = vld [vmem:[#allocation10 + $0x600] sm:$0xff]
    %v1150 = vld [vmem:[#allocation10 + $0x608] sm:$0xff]
    %v1151 = vld [vmem:[#allocation10 + $0x610] sm:$0xff]
    %v1152 = vld [vmem:[#allocation10 + $0x618] sm:$0xff]
    %v1153 = vld [vmem:[#allocation10 + $0x620] sm:$0xff]
    %v1154 = vld [vmem:[#allocation10 + $0x628] sm:$0xff]
    %v1155 = vld [vmem:[#allocation10 + $0x630] sm:$0xff]
    %v1156 = vld [vmem:[#allocation10 + $0x638] sm:$0xff]
    %v1157 = vld [vmem:[#allocation10 + $0x640] sm:$0xff]
    %v1158 = vld [vmem:[#allocation10 + $0x648] sm:$0xff]
    %v1159 = vld [vmem:[#allocation10 + $0x650] sm:$0xff]
    %v1160 = vld [vmem:[#allocation10 + $0x658] sm:$0xff]
    %v1161 = vld [vmem:[#allocation10 + $0x660] sm:$0xff]
    %v1162 = vld [vmem:[#allocation10 + $0x668] sm:$0xff]
    %v1163 = vld [vmem:[#allocation10 + $0x670] sm:$0xff]
    %v1164 = vld [vmem:[#allocation10 + $0x678] sm:$0xff]
    %v1165 = vld [vmem:[#allocation10 + $0x680] sm:$0xff]
    %v1166 = vld [vmem:[#allocation10 + $0x688] sm:$0xff]
    %v1167 = vld [vmem:[#allocation10 + $0x690] sm:$0xff]
    %v1168 = vld [vmem:[#allocation10 + $0x698] sm:$0xff]
    %v1169 = vld [vmem:[#allocation10 + $0x6a0] sm:$0xff]
    %v1170 = vld [vmem:[#allocation10 + $0x6a8] sm:$0xff]
    %v1171 = vld [vmem:[#allocation10 + $0x6b0] sm:$0xff]
    %v1172 = vld [vmem:[#allocation10 + $0x6b8] sm:$0xff]
    %v1173 = vld [vmem:[#allocation10 + $0x6c0] sm:$0xff]
    %v1174 = vld [vmem:[#allocation10 + $0x6c8] sm:$0xff]
    %v1175 = vld [vmem:[#allocation10 + $0x6d0] sm:$0xff]
    %v1176 = vld [vmem:[#allocation10 + $0x6d8] sm:$0xff]
    %v1177 = vld [vmem:[#allocation10 + $0x6e0] sm:$0xff]
    %v1178 = vld [vmem:[#allocation10 + $0x6e8] sm:$0xff]
    %v1179 = vld [vmem:[#allocation10 + $0x6f0] sm:$0xff]
    %v1180 = vld [vmem:[#allocation10 + $0x6f8] sm:$0xff]
    %v1181 = vld [vmem:[#allocation10 + $0x700] sm:$0xff]
    %v1182 = vld [vmem:[#allocation10 + $0x708] sm:$0xff]
    %v1183 = vld [vmem:[#allocation10 + $0x710] sm:$0xff]
    %v1184 = vld [vmem:[#allocation10 + $0x718] sm:$0xff]
    %v1185 = vld [vmem:[#allocation10 + $0x720] sm:$0xff]
    %v1186 = vld [vmem:[#allocation10 + $0x728] sm:$0xff]
    %v1187 = vld [vmem:[#allocation10 + $0x730] sm:$0xff]
    %v1188 = vld [vmem:[#allocation10 + $0x738] sm:$0xff]
    %v1189 = vld [vmem:[#allocation10 + $0x740] sm:$0xff]
    %v1190 = vld [vmem:[#allocation10 + $0x748] sm:$0xff]
    %v1191 = vld [vmem:[#allocation10 + $0x750] sm:$0xff]
    %v1192 = vld [vmem:[#allocation10 + $0x758] sm:$0xff]
    %v1193 = vld [vmem:[#allocation10 + $0x760] sm:$0xff]
    %v1194 = vld [vmem:[#allocation10 + $0x768] sm:$0xff]
    %v1195 = vld [vmem:[#allocation10 + $0x770] sm:$0xff]
    %v1196 = vld [vmem:[#allocation10 + $0x778] sm:$0xff]
    %v1197 = vld [vmem:[#allocation10 + $0x780] sm:$0xff]
    %v1198 = vld [vmem:[#allocation10 + $0x788] sm:$0xff]
    %v1199 = vld [vmem:[#allocation10 + $0x790] sm:$0xff]
    %v1200 = vld [vmem:[#allocation10 + $0x798] sm:$0xff]
    %v1201 = vld [vmem:[#allocation10 + $0x7a0] sm:$0xff]
    %v1202 = vld [vmem:[#allocation10 + $0x7a8] sm:$0xff]
    %v1203 = vld [vmem:[#allocation10 + $0x7b0] sm:$0xff]
    %v1204 = vld [vmem:[#allocation10 + $0x7b8] sm:$0xff]
    %v1205 = vld [vmem:[#allocation10 + $0x7c0] sm:$0xff]
    %v1206 = vld [vmem:[#allocation10 + $0x7c8] sm:$0xff]
    %v1207 = vld [vmem:[#allocation10 + $0x7d0] sm:$0xff]
    %v1208 = vld [vmem:[#allocation10 + $0x7d8] sm:$0xff]
    %v1209 = vld [vmem:[#allocation10 + $0x7e0] sm:$0xff]
    %v1210 = vld [vmem:[#allocation10 + $0x7e8] sm:$0xff]
    %v1211 = vld [vmem:[#allocation10 + $0x7f0] sm:$0xff]
    %v1212 = vld [vmem:[#allocation10 + $0x7f8] sm:$0xff]
    %v1469 = vunpack.c.l.b16 %v957
    %v1470 = vunpack.c.h.b16 %v957
    %v1471 = vunpack.c.l.b16 %v958
    %v1472 = vunpack.c.h.b16 %v958
    %v1473 = vunpack.c.l.b16 %v959
    %v1474 = vunpack.c.h.b16 %v959
    %v1475 = vunpack.c.l.b16 %v960
    %v1476 = vunpack.c.h.b16 %v960
    %v1477 = vunpack.c.l.b16 %v961
    %v1478 = vunpack.c.h.b16 %v961
    %v1479 = vunpack.c.l.b16 %v962
    %v1480 = vunpack.c.h.b16 %v962
    %v1481 = vunpack.c.l.b16 %v963
    %v1482 = vunpack.c.h.b16 %v963
    %v1483 = vunpack.c.l.b16 %v964
    %v1484 = vunpack.c.h.b16 %v964
    %v1485 = vunpack.c.l.b16 %v965
    %v1486 = vunpack.c.h.b16 %v965
    %v1487 = vunpack.c.l.b16 %v966
    %v1488 = vunpack.c.h.b16 %v966
    %v1489 = vunpack.c.l.b16 %v967
    %v1490 = vunpack.c.h.b16 %v967
    %v1491 = vunpack.c.l.b16 %v968
    %v1492 = vunpack.c.h.b16 %v968
    %v1493 = vunpack.c.l.b16 %v969
    %v1494 = vunpack.c.h.b16 %v969
    %v1495 = vunpack.c.l.b16 %v970
    %v1496 = vunpack.c.h.b16 %v970
    %v1497 = vunpack.c.l.b16 %v971
    %v1498 = vunpack.c.h.b16 %v971
    %v1499 = vunpack.c.l.b16 %v972
    %v1500 = vunpack.c.h.b16 %v972
    %v1501 = vunpack.c.l.b16 %v973
    %v1502 = vunpack.c.h.b16 %v973
    %v1503 = vunpack.c.l.b16 %v974
    %v1504 = vunpack.c.h.b16 %v974
    %v1505 = vunpack.c.l.b16 %v975
    %v1506 = vunpack.c.h.b16 %v975
    %v1507 = vunpack.c.l.b16 %v976
    %v1508 = vunpack.c.h.b16 %v976
    %v1509 = vunpack.c.l.b16 %v977
    %v1510 = vunpack.c.h.b16 %v977
    %v1511 = vunpack.c.l.b16 %v978
    %v1512 = vunpack.c.h.b16 %v978
    %v1513 = vunpack.c.l.b16 %v979
    %v1514 = vunpack.c.h.b16 %v979
    %v1515 = vunpack.c.l.b16 %v980
    %v1516 = vunpack.c.h.b16 %v980
    %v1517 = vunpack.c.l.b16 %v981
    %v1518 = vunpack.c.h.b16 %v981
    %v1519 = vunpack.c.l.b16 %v982
    %v1520 = vunpack.c.h.b16 %v982
    %v1521 = vunpack.c.l.b16 %v983
    %v1522 = vunpack.c.h.b16 %v983
    %v1523 = vunpack.c.l.b16 %v984
    %v1524 = vunpack.c.h.b16 %v984
    %v1525 = vunpack.c.l.b16 %v985
    %v1526 = vunpack.c.h.b16 %v985
    %v1527 = vunpack.c.l.b16 %v986
    %v1528 = vunpack.c.h.b16 %v986
    %v1529 = vunpack.c.l.b16 %v987
    %v1530 = vunpack.c.h.b16 %v987
    %v1531 = vunpack.c.l.b16 %v988
    %v1532 = vunpack.c.h.b16 %v988
    %v1533 = vunpack.c.l.b16 %v989
    %v1534 = vunpack.c.h.b16 %v989
    %v1535 = vunpack.c.l.b16 %v990
    %v1536 = vunpack.c.h.b16 %v990
    %v1537 = vunpack.c.l.b16 %v991
    %v1538 = vunpack.c.h.b16 %v991
    %v1539 = vunpack.c.l.b16 %v992
    %v1540 = vunpack.c.h.b16 %v992
    %v1541 = vunpack.c.l.b16 %v993
    %v1542 = vunpack.c.h.b16 %v993
    %v1543 = vunpack.c.l.b16 %v994
    %v1544 = vunpack.c.h.b16 %v994
    %v1545 = vunpack.c.l.b16 %v995
    %v1546 = vunpack.c.h.b16 %v995
    %v1547 = vunpack.c.l.b16 %v996
    %v1548 = vunpack.c.h.b16 %v996
    %v1549 = vunpack.c.l.b16 %v997
    %v1550 = vunpack.c.h.b16 %v997
    %v1551 = vunpack.c.l.b16 %v998
    %v1552 = vunpack.c.h.b16 %v998
    %v1553 = vunpack.c.l.b16 %v999
    %v1554 = vunpack.c.h.b16 %v999
    %v1555 = vunpack.c.l.b16 %v1000
    %v1556 = vunpack.c.h.b16 %v1000
    %v1557 = vunpack.c.l.b16 %v1001
    %v1558 = vunpack.c.h.b16 %v1001
    %v1559 = vunpack.c.l.b16 %v1002
    %v1560 = vunpack.c.h.b16 %v1002
    %v1561 = vunpack.c.l.b16 %v1003
    %v1562 = vunpack.c.h.b16 %v1003
    %v1563 = vunpack.c.l.b16 %v1004
    %v1564 = vunpack.c.h.b16 %v1004
    %v1565 = vunpack.c.l.b16 %v1005
    %v1566 = vunpack.c.h.b16 %v1005
    %v1567 = vunpack.c.l.b16 %v1006
    %v1568 = vunpack.c.h.b16 %v1006
    %v1569 = vunpack.c.l.b16 %v1007
    %v1570 = vunpack.c.h.b16 %v1007
    %v1571 = vunpack.c.l.b16 %v1008
    %v1572 = vunpack.c.h.b16 %v1008
    %v1573 = vunpack.c.l.b16 %v1009
    %v1574 = vunpack.c.h.b16 %v1009
    %v1575 = vunpack.c.l.b16 %v1010
    %v1576 = vunpack.c.h.b16 %v1010
    %v1577 = vunpack.c.l.b16 %v1011
    %v1578 = vunpack.c.h.b16 %v1011
    %v1579 = vunpack.c.l.b16 %v1012
    %v1580 = vunpack.c.h.b16 %v1012
    %v1581 = vunpack.c.l.b16 %v1013
    %v1582 = vunpack.c.h.b16 %v1013
    %v1583 = vunpack.c.l.b16 %v1014
    %v1584 = vunpack.c.h.b16 %v1014
    %v1585 = vunpack.c.l.b16 %v1015
    %v1586 = vunpack.c.h.b16 %v1015
    %v1587 = vunpack.c.l.b16 %v1016
    %v1588 = vunpack.c.h.b16 %v1016
    %v1589 = vunpack.c.l.b16 %v1017
    %v1590 = vunpack.c.h.b16 %v1017
    %v1591 = vunpack.c.l.b16 %v1018
    %v1592 = vunpack.c.h.b16 %v1018
    %v1593 = vunpack.c.l.b16 %v1019
    %v1594 = vunpack.c.h.b16 %v1019
    %v1595 = vunpack.c.l.b16 %v1020
    %v1596 = vunpack.c.h.b16 %v1020
    %v1597 = vunpack.c.l.b16 %v1021
    %v1598 = vunpack.c.h.b16 %v1021
    %v1599 = vunpack.c.l.b16 %v1022
    %v1600 = vunpack.c.h.b16 %v1022
    %v1601 = vunpack.c.l.b16 %v1023
    %v1602 = vunpack.c.h.b16 %v1023
    %v1603 = vunpack.c.l.b16 %v1024
    %v1604 = vunpack.c.h.b16 %v1024
    %v1605 = vunpack.c.l.b16 %v1025
    %v1606 = vunpack.c.h.b16 %v1025
    %v1607 = vunpack.c.l.b16 %v1026
    %v1608 = vunpack.c.h.b16 %v1026
    %v1609 = vunpack.c.l.b16 %v1027
    %v1610 = vunpack.c.h.b16 %v1027
    %v1611 = vunpack.c.l.b16 %v1028
    %v1612 = vunpack.c.h.b16 %v1028
    %v1613 = vunpack.c.l.b16 %v1029
    %v1614 = vunpack.c.h.b16 %v1029
    %v1615 = vunpack.c.l.b16 %v1030
    %v1616 = vunpack.c.h.b16 %v1030
    %v1617 = vunpack.c.l.b16 %v1031
    %v1618 = vunpack.c.h.b16 %v1031
    %v1619 = vunpack.c.l.b16 %v1032
    %v1620 = vunpack.c.h.b16 %v1032
    %v1621 = vunpack.c.l.b16 %v1033
    %v1622 = vunpack.c.h.b16 %v1033
    %v1623 = vunpack.c.l.b16 %v1034
    %v1624 = vunpack.c.h.b16 %v1034
    %v1625 = vunpack.c.l.b16 %v1035
    %v1626 = vunpack.c.h.b16 %v1035
    %v1627 = vunpack.c.l.b16 %v1036
    %v1628 = vunpack.c.h.b16 %v1036
    %v1629 = vunpack.c.l.b16 %v1037
    %v1630 = vunpack.c.h.b16 %v1037
    %v1631 = vunpack.c.l.b16 %v1038
    %v1632 = vunpack.c.h.b16 %v1038
    %v1633 = vunpack.c.l.b16 %v1039
    %v1634 = vunpack.c.h.b16 %v1039
    %v1635 = vunpack.c.l.b16 %v1040
    %v1636 = vunpack.c.h.b16 %v1040
    %v1637 = vunpack.c.l.b16 %v1041
    %v1638 = vunpack.c.h.b16 %v1041
    %v1639 = vunpack.c.l.b16 %v1042
    %v1640 = vunpack.c.h.b16 %v1042
    %v1641 = vunpack.c.l.b16 %v1043
    %v1642 = vunpack.c.h.b16 %v1043
    %v1643 = vunpack.c.l.b16 %v1044
    %v1644 = vunpack.c.h.b16 %v1044
    %v1645 = vunpack.c.l.b16 %v1045
    %v1646 = vunpack.c.h.b16 %v1045
    %v1647 = vunpack.c.l.b16 %v1046
    %v1648 = vunpack.c.h.b16 %v1046
    %v1649 = vunpack.c.l.b16 %v1047
    %v1650 = vunpack.c.h.b16 %v1047
    %v1651 = vunpack.c.l.b16 %v1048
    %v1652 = vunpack.c.h.b16 %v1048
    %v1653 = vunpack.c.l.b16 %v1049
    %v1654 = vunpack.c.h.b16 %v1049
    %v1655 = vunpack.c.l.b16 %v1050
    %v1656 = vunpack.c.h.b16 %v1050
    %v1657 = vunpack.c.l.b16 %v1051
    %v1658 = vunpack.c.h.b16 %v1051
    %v1659 = vunpack.c.l.b16 %v1052
    %v1660 = vunpack.c.h.b16 %v1052
    %v1661 = vunpack.c.l.b16 %v1053
    %v1662 = vunpack.c.h.b16 %v1053
    %v1663 = vunpack.c.l.b16 %v1054
    %v1664 = vunpack.c.h.b16 %v1054
    %v1665 = vunpack.c.l.b16 %v1055
    %v1666 = vunpack.c.h.b16 %v1055
    %v1667 = vunpack.c.l.b16 %v1056
    %v1668 = vunpack.c.h.b16 %v1056
    %v1669 = vunpack.c.l.b16 %v1057
    %v1670 = vunpack.c.h.b16 %v1057
    %v1671 = vunpack.c.l.b16 %v1058
    %v1672 = vunpack.c.h.b16 %v1058
    %v1673 = vunpack.c.l.b16 %v1059
    %v1674 = vunpack.c.h.b16 %v1059
    %v1675 = vunpack.c.l.b16 %v1060
    %v1676 = vunpack.c.h.b16 %v1060
    %v1677 = vunpack.c.l.b16 %v1061
    %v1678 = vunpack.c.h.b16 %v1061
    %v1679 = vunpack.c.l.b16 %v1062
    %v1680 = vunpack.c.h.b16 %v1062
    %v1681 = vunpack.c.l.b16 %v1063
    %v1682 = vunpack.c.h.b16 %v1063
    %v1683 = vunpack.c.l.b16 %v1064
    %v1684 = vunpack.c.h.b16 %v1064
    %v1685 = vunpack.c.l.b16 %v1065
    %v1686 = vunpack.c.h.b16 %v1065
    %v1687 = vunpack.c.l.b16 %v1066
    %v1688 = vunpack.c.h.b16 %v1066
    %v1689 = vunpack.c.l.b16 %v1067
    %v1690 = vunpack.c.h.b16 %v1067
    %v1691 = vunpack.c.l.b16 %v1068
    %v1692 = vunpack.c.h.b16 %v1068
    %v1693 = vunpack.c.l.b16 %v1069
    %v1694 = vunpack.c.h.b16 %v1069
    %v1695 = vunpack.c.l.b16 %v1070
    %v1696 = vunpack.c.h.b16 %v1070
    %v1697 = vunpack.c.l.b16 %v1071
    %v1698 = vunpack.c.h.b16 %v1071
    %v1699 = vunpack.c.l.b16 %v1072
    %v1700 = vunpack.c.h.b16 %v1072
    %v1701 = vunpack.c.l.b16 %v1073
    %v1702 = vunpack.c.h.b16 %v1073
    %v1703 = vunpack.c.l.b16 %v1074
    %v1704 = vunpack.c.h.b16 %v1074
    %v1705 = vunpack.c.l.b16 %v1075
    %v1706 = vunpack.c.h.b16 %v1075
    %v1707 = vunpack.c.l.b16 %v1076
    %v1708 = vunpack.c.h.b16 %v1076
    %v1709 = vunpack.c.l.b16 %v1077
    %v1710 = vunpack.c.h.b16 %v1077
    %v1711 = vunpack.c.l.b16 %v1078
    %v1712 = vunpack.c.h.b16 %v1078
    %v1713 = vunpack.c.l.b16 %v1079
    %v1714 = vunpack.c.h.b16 %v1079
    %v1715 = vunpack.c.l.b16 %v1080
    %v1716 = vunpack.c.h.b16 %v1080
    %v1717 = vunpack.c.l.b16 %v1081
    %v1718 = vunpack.c.h.b16 %v1081
    %v1719 = vunpack.c.l.b16 %v1082
    %v1720 = vunpack.c.h.b16 %v1082
    %v1721 = vunpack.c.l.b16 %v1083
    %v1722 = vunpack.c.h.b16 %v1083
    %v1723 = vunpack.c.l.b16 %v1084
    %v1724 = vunpack.c.h.b16 %v1084
    %v1725 = vunpack.c.l.b16 %v1085
    %v1726 = vunpack.c.h.b16 %v1085
    %v1727 = vunpack.c.l.b16 %v1086
    %v1728 = vunpack.c.h.b16 %v1086
    %v1729 = vunpack.c.l.b16 %v1087
    %v1730 = vunpack.c.h.b16 %v1087
    %v1731 = vunpack.c.l.b16 %v1088
    %v1732 = vunpack.c.h.b16 %v1088
    %v1733 = vunpack.c.l.b16 %v1089
    %v1734 = vunpack.c.h.b16 %v1089
    %v1735 = vunpack.c.l.b16 %v1090
    %v1736 = vunpack.c.h.b16 %v1090
    %v1737 = vunpack.c.l.b16 %v1091
    %v1738 = vunpack.c.h.b16 %v1091
    %v1739 = vunpack.c.l.b16 %v1092
    %v1740 = vunpack.c.h.b16 %v1092
    %v1741 = vunpack.c.l.b16 %v1093
    %v1742 = vunpack.c.h.b16 %v1093
    %v1743 = vunpack.c.l.b16 %v1094
    %v1744 = vunpack.c.h.b16 %v1094
    %v1745 = vunpack.c.l.b16 %v1095
    %v1746 = vunpack.c.h.b16 %v1095
    %v1747 = vunpack.c.l.b16 %v1096
    %v1748 = vunpack.c.h.b16 %v1096
    %v1749 = vunpack.c.l.b16 %v1097
    %v1750 = vunpack.c.h.b16 %v1097
    %v1751 = vunpack.c.l.b16 %v1098
    %v1752 = vunpack.c.h.b16 %v1098
    %v1753 = vunpack.c.l.b16 %v1099
    %v1754 = vunpack.c.h.b16 %v1099
    %v1755 = vunpack.c.l.b16 %v1100
    %v1756 = vunpack.c.h.b16 %v1100
    %v1757 = vunpack.c.l.b16 %v1101
    %v1758 = vunpack.c.h.b16 %v1101
    %v1759 = vunpack.c.l.b16 %v1102
    %v1760 = vunpack.c.h.b16 %v1102
    %v1761 = vunpack.c.l.b16 %v1103
    %v1762 = vunpack.c.h.b16 %v1103
    %v1763 = vunpack.c.l.b16 %v1104
    %v1764 = vunpack.c.h.b16 %v1104
    %v1765 = vunpack.c.l.b16 %v1105
    %v1766 = vunpack.c.h.b16 %v1105
    %v1767 = vunpack.c.l.b16 %v1106
    %v1768 = vunpack.c.h.b16 %v1106
    %v1769 = vunpack.c.l.b16 %v1107
    %v1770 = vunpack.c.h.b16 %v1107
    %v1771 = vunpack.c.l.b16 %v1108
    %v1772 = vunpack.c.h.b16 %v1108
    %v1773 = vunpack.c.l.b16 %v1109
    %v1774 = vunpack.c.h.b16 %v1109
    %v1775 = vunpack.c.l.b16 %v1110
    %v1776 = vunpack.c.h.b16 %v1110
    %v1777 = vunpack.c.l.b16 %v1111
    %v1778 = vunpack.c.h.b16 %v1111
    %v1779 = vunpack.c.l.b16 %v1112
    %v1780 = vunpack.c.h.b16 %v1112
    %v1781 = vunpack.c.l.b16 %v1113
    %v1782 = vunpack.c.h.b16 %v1113
    %v1783 = vunpack.c.l.b16 %v1114
    %v1784 = vunpack.c.h.b16 %v1114
    %v1785 = vunpack.c.l.b16 %v1115
    %v1786 = vunpack.c.h.b16 %v1115
    %v1787 = vunpack.c.l.b16 %v1116
    %v1788 = vunpack.c.h.b16 %v1116
    %v1789 = vunpack.c.l.b16 %v1117
    %v1790 = vunpack.c.h.b16 %v1117
    %v1791 = vunpack.c.l.b16 %v1118
    %v1792 = vunpack.c.h.b16 %v1118
    %v1793 = vunpack.c.l.b16 %v1119
    %v1794 = vunpack.c.h.b16 %v1119
    %v1795 = vunpack.c.l.b16 %v1120
    %v1796 = vunpack.c.h.b16 %v1120
    %v1797 = vunpack.c.l.b16 %v1121
    %v1798 = vunpack.c.h.b16 %v1121
    %v1799 = vunpack.c.l.b16 %v1122
    %v1800 = vunpack.c.h.b16 %v1122
    %v1801 = vunpack.c.l.b16 %v1123
    %v1802 = vunpack.c.h.b16 %v1123
    %v1803 = vunpack.c.l.b16 %v1124
    %v1804 = vunpack.c.h.b16 %v1124
    %v1805 = vunpack.c.l.b16 %v1125
    %v1806 = vunpack.c.h.b16 %v1125
    %v1807 = vunpack.c.l.b16 %v1126
    %v1808 = vunpack.c.h.b16 %v1126
    %v1809 = vunpack.c.l.b16 %v1127
    %v1810 = vunpack.c.h.b16 %v1127
    %v1811 = vunpack.c.l.b16 %v1128
    %v1812 = vunpack.c.h.b16 %v1128
    %v1813 = vunpack.c.l.b16 %v1129
    %v1814 = vunpack.c.h.b16 %v1129
    %v1815 = vunpack.c.l.b16 %v1130
    %v1816 = vunpack.c.h.b16 %v1130
    %v1817 = vunpack.c.l.b16 %v1131
    %v1818 = vunpack.c.h.b16 %v1131
    %v1819 = vunpack.c.l.b16 %v1132
    %v1820 = vunpack.c.h.b16 %v1132
    %v1821 = vunpack.c.l.b16 %v1133
    %v1822 = vunpack.c.h.b16 %v1133
    %v1823 = vunpack.c.l.b16 %v1134
    %v1824 = vunpack.c.h.b16 %v1134
    %v1825 = vunpack.c.l.b16 %v1135
    %v1826 = vunpack.c.h.b16 %v1135
    %v1827 = vunpack.c.l.b16 %v1136
    %v1828 = vunpack.c.h.b16 %v1136
    %v1829 = vunpack.c.l.b16 %v1137
    %v1830 = vunpack.c.h.b16 %v1137
    %v1831 = vunpack.c.l.b16 %v1138
    %v1832 = vunpack.c.h.b16 %v1138
    %v1833 = vunpack.c.l.b16 %v1139
    %v1834 = vunpack.c.h.b16 %v1139
    %v1835 = vunpack.c.l.b16 %v1140
    %v1836 = vunpack.c.h.b16 %v1140
    %v1837 = vunpack.c.l.b16 %v1141
    %v1838 = vunpack.c.h.b16 %v1141
    %v1839 = vunpack.c.l.b16 %v1142
    %v1840 = vunpack.c.h.b16 %v1142
    %v1841 = vunpack.c.l.b16 %v1143
    %v1842 = vunpack.c.h.b16 %v1143
    %v1843 = vunpack.c.l.b16 %v1144
    %v1844 = vunpack.c.h.b16 %v1144
    %v1845 = vunpack.c.l.b16 %v1145
    %v1846 = vunpack.c.h.b16 %v1145
    %v1847 = vunpack.c.l.b16 %v1146
    %v1848 = vunpack.c.h.b16 %v1146
    %v1849 = vunpack.c.l.b16 %v1147
    %v1850 = vunpack.c.h.b16 %v1147
    %v1851 = vunpack.c.l.b16 %v1148
    %v1852 = vunpack.c.h.b16 %v1148
    %v1853 = vunpack.c.l.b16 %v1149
    %v1854 = vunpack.c.h.b16 %v1149
    %v1855 = vunpack.c.l.b16 %v1150
    %v1856 = vunpack.c.h.b16 %v1150
    %v1857 = vunpack.c.l.b16 %v1151
    %v1858 = vunpack.c.h.b16 %v1151
    %v1859 = vunpack.c.l.b16 %v1152
    %v1860 = vunpack.c.h.b16 %v1152
    %v1861 = vunpack.c.l.b16 %v1153
    %v1862 = vunpack.c.h.b16 %v1153
    %v1863 = vunpack.c.l.b16 %v1154
    %v1864 = vunpack.c.h.b16 %v1154
    %v1865 = vunpack.c.l.b16 %v1155
    %v1866 = vunpack.c.h.b16 %v1155
    %v1867 = vunpack.c.l.b16 %v1156
    %v1868 = vunpack.c.h.b16 %v1156
    %v1869 = vunpack.c.l.b16 %v1157
    %v1870 = vunpack.c.h.b16 %v1157
    %v1871 = vunpack.c.l.b16 %v1158
    %v1872 = vunpack.c.h.b16 %v1158
    %v1873 = vunpack.c.l.b16 %v1159
    %v1874 = vunpack.c.h.b16 %v1159
    %v1875 = vunpack.c.l.b16 %v1160
    %v1876 = vunpack.c.h.b16 %v1160
    %v1877 = vunpack.c.l.b16 %v1161
    %v1878 = vunpack.c.h.b16 %v1161
    %v1879 = vunpack.c.l.b16 %v1162
    %v1880 = vunpack.c.h.b16 %v1162
    %v1881 = vunpack.c.l.b16 %v1163
    %v1882 = vunpack.c.h.b16 %v1163
    %v1883 = vunpack.c.l.b16 %v1164
    %v1884 = vunpack.c.h.b16 %v1164
    %v1885 = vunpack.c.l.b16 %v1165
    %v1886 = vunpack.c.h.b16 %v1165
    %v1887 = vunpack.c.l.b16 %v1166
    %v1888 = vunpack.c.h.b16 %v1166
    %v1889 = vunpack.c.l.b16 %v1167
    %v1890 = vunpack.c.h.b16 %v1167
    %v1891 = vunpack.c.l.b16 %v1168
    %v1892 = vunpack.c.h.b16 %v1168
    %v1893 = vunpack.c.l.b16 %v1169
    %v1894 = vunpack.c.h.b16 %v1169
    %v1895 = vunpack.c.l.b16 %v1170
    %v1896 = vunpack.c.h.b16 %v1170
    %v1897 = vunpack.c.l.b16 %v1171
    %v1898 = vunpack.c.h.b16 %v1171
    %v1899 = vunpack.c.l.b16 %v1172
    %v1900 = vunpack.c.h.b16 %v1172
    %v1901 = vunpack.c.l.b16 %v1173
    %v1902 = vunpack.c.h.b16 %v1173
    %v1903 = vunpack.c.l.b16 %v1174
    %v1904 = vunpack.c.h.b16 %v1174
    %v1905 = vunpack.c.l.b16 %v1175
    %v1906 = vunpack.c.h.b16 %v1175
    %v1907 = vunpack.c.l.b16 %v1176
    %v1908 = vunpack.c.h.b16 %v1176
    %v1909 = vunpack.c.l.b16 %v1177
    %v1910 = vunpack.c.h.b16 %v1177
    %v1911 = vunpack.c.l.b16 %v1178
    %v1912 = vunpack.c.h.b16 %v1178
    %v1913 = vunpack.c.l.b16 %v1179
    %v1914 = vunpack.c.h.b16 %v1179
    %v1915 = vunpack.c.l.b16 %v1180
    %v1916 = vunpack.c.h.b16 %v1180
    %v1917 = vunpack.c.l.b16 %v1181
    %v1918 = vunpack.c.h.b16 %v1181
    %v1919 = vunpack.c.l.b16 %v1182
    %v1920 = vunpack.c.h.b16 %v1182
    %v1921 = vunpack.c.l.b16 %v1183
    %v1922 = vunpack.c.h.b16 %v1183
    %v1923 = vunpack.c.l.b16 %v1184
    %v1924 = vunpack.c.h.b16 %v1184
    %v1925 = vunpack.c.l.b16 %v1185
    %v1926 = vunpack.c.h.b16 %v1185
    %v1927 = vunpack.c.l.b16 %v1186
    %v1928 = vunpack.c.h.b16 %v1186
    %v1929 = vunpack.c.l.b16 %v1187
    %v1930 = vunpack.c.h.b16 %v1187
    %v1931 = vunpack.c.l.b16 %v1188
    %v1932 = vunpack.c.h.b16 %v1188
    %v1933 = vunpack.c.l.b16 %v1189
    %v1934 = vunpack.c.h.b16 %v1189
    %v1935 = vunpack.c.l.b16 %v1190
    %v1936 = vunpack.c.h.b16 %v1190
    %v1937 = vunpack.c.l.b16 %v1191
    %v1938 = vunpack.c.h.b16 %v1191
    %v1939 = vunpack.c.l.b16 %v1192
    %v1940 = vunpack.c.h.b16 %v1192
    %v1941 = vunpack.c.l.b16 %v1193
    %v1942 = vunpack.c.h.b16 %v1193
    %v1943 = vunpack.c.l.b16 %v1194
    %v1944 = vunpack.c.h.b16 %v1194
    %v1945 = vunpack.c.l.b16 %v1195
    %v1946 = vunpack.c.h.b16 %v1195
    %v1947 = vunpack.c.l.b16 %v1196
    %v1948 = vunpack.c.h.b16 %v1196
    %v1949 = vunpack.c.l.b16 %v1197
    %v1950 = vunpack.c.h.b16 %v1197
    %v1951 = vunpack.c.l.b16 %v1198
    %v1952 = vunpack.c.h.b16 %v1198
    %v1953 = vunpack.c.l.b16 %v1199
    %v1954 = vunpack.c.h.b16 %v1199
    %v1955 = vunpack.c.l.b16 %v1200
    %v1956 = vunpack.c.h.b16 %v1200
    %v1957 = vunpack.c.l.b16 %v1201
    %v1958 = vunpack.c.h.b16 %v1201
    %v1959 = vunpack.c.l.b16 %v1202
    %v1960 = vunpack.c.h.b16 %v1202
    %v1961 = vunpack.c.l.b16 %v1203
    %v1962 = vunpack.c.h.b16 %v1203
    %v1963 = vunpack.c.l.b16 %v1204
    %v1964 = vunpack.c.h.b16 %v1204
    %v1965 = vunpack.c.l.b16 %v1205
    %v1966 = vunpack.c.h.b16 %v1205
    %v1967 = vunpack.c.l.b16 %v1206
    %v1968 = vunpack.c.h.b16 %v1206
    %v1969 = vunpack.c.l.b16 %v1207
    %v1970 = vunpack.c.h.b16 %v1207
    %v1971 = vunpack.c.l.b16 %v1208
    %v1972 = vunpack.c.h.b16 %v1208
    %v1973 = vunpack.c.l.b16 %v1209
    %v1974 = vunpack.c.h.b16 %v1209
    %v1975 = vunpack.c.l.b16 %v1210
    %v1976 = vunpack.c.h.b16 %v1210
    %v1977 = vunpack.c.l.b16 %v1211
    %v1978 = vunpack.c.h.b16 %v1211
    %v1979 = vunpack.c.l.b16 %v1212
    %v1980 = vunpack.c.h.b16 %v1212
    %v1981 = vpack.c.b16 %v1477, %v1469
    %v1982 = vpack.c.b16 %v1478, %v1470
    %v1983 = vpack.c.b16 %v1479, %v1471
    %v1984 = vpack.c.b16 %v1480, %v1472
    %v1985 = vpack.c.b16 %v1481, %v1473
    %v1986 = vpack.c.b16 %v1482, %v1474
    %v1987 = vpack.c.b16 %v1483, %v1475
    %v1988 = vpack.c.b16 %v1484, %v1476
    %v1989 = vpack.c.b16 %v1493, %v1485
    %v1990 = vpack.c.b16 %v1494, %v1486
    %v1991 = vpack.c.b16 %v1495, %v1487
    %v1992 = vpack.c.b16 %v1496, %v1488
    %v1993 = vpack.c.b16 %v1497, %v1489
    %v1994 = vpack.c.b16 %v1498, %v1490
    %v1995 = vpack.c.b16 %v1499, %v1491
    %v1996 = vpack.c.b16 %v1500, %v1492
    %v1997 = vpack.c.b16 %v1509, %v1501
    %v1998 = vpack.c.b16 %v1510, %v1502
    %v1999 = vpack.c.b16 %v1511, %v1503
    %v2000 = vpack.c.b16 %v1512, %v1504
    %v2001 = vpack.c.b16 %v1513, %v1505
    %v2002 = vpack.c.b16 %v1514, %v1506
    %v2003 = vpack.c.b16 %v1515, %v1507
    %v2004 = vpack.c.b16 %v1516, %v1508
    %v2005 = vpack.c.b16 %v1525, %v1517
    %v2006 = vpack.c.b16 %v1526, %v1518
    %v2007 = vpack.c.b16 %v1527, %v1519
    %v2008 = vpack.c.b16 %v1528, %v1520
    %v2009 = vpack.c.b16 %v1529, %v1521
    %v2010 = vpack.c.b16 %v1530, %v1522
    %v2011 = vpack.c.b16 %v1531, %v1523
    %v2012 = vpack.c.b16 %v1532, %v1524
    %v2013 = vpack.c.b16 %v1541, %v1533
    %v2014 = vpack.c.b16 %v1542, %v1534
    %v2015 = vpack.c.b16 %v1543, %v1535
    %v2016 = vpack.c.b16 %v1544, %v1536
    %v2017 = vpack.c.b16 %v1545, %v1537
    %v2018 = vpack.c.b16 %v1546, %v1538
    %v2019 = vpack.c.b16 %v1547, %v1539
    %v2020 = vpack.c.b16 %v1548, %v1540
    %v2021 = vpack.c.b16 %v1557, %v1549
    %v2022 = vpack.c.b16 %v1558, %v1550
    %v2023 = vpack.c.b16 %v1559, %v1551
    %v2024 = vpack.c.b16 %v1560, %v1552
    %v2025 = vpack.c.b16 %v1561, %v1553
    %v2026 = vpack.c.b16 %v1562, %v1554
    %v2027 = vpack.c.b16 %v1563, %v1555
    %v2028 = vpack.c.b16 %v1564, %v1556
    %v2029 = vpack.c.b16 %v1573, %v1565
    %v2030 = vpack.c.b16 %v1574, %v1566
    %v2031 = vpack.c.b16 %v1575, %v1567
    %v2032 = vpack.c.b16 %v1576, %v1568
    %v2033 = vpack.c.b16 %v1577, %v1569
    %v2034 = vpack.c.b16 %v1578, %v1570
    %v2035 = vpack.c.b16 %v1579, %v1571
    %v2036 = vpack.c.b16 %v1580, %v1572
    %v2037 = vpack.c.b16 %v1589, %v1581
    %v2038 = vpack.c.b16 %v1590, %v1582
    %v2039 = vpack.c.b16 %v1591, %v1583
    %v2040 = vpack.c.b16 %v1592, %v1584
    %v2041 = vpack.c.b16 %v1593, %v1585
    %v2042 = vpack.c.b16 %v1594, %v1586
    %v2043 = vpack.c.b16 %v1595, %v1587
    %v2044 = vpack.c.b16 %v1596, %v1588
    %v2045 = vpack.c.b16 %v1605, %v1597
    %v2046 = vpack.c.b16 %v1606, %v1598
    %v2047 = vpack.c.b16 %v1607, %v1599
    %v2048 = vpack.c.b16 %v1608, %v1600
    %v2049 = vpack.c.b16 %v1609, %v1601
    %v2050 = vpack.c.b16 %v1610, %v1602
    %v2051 = vpack.c.b16 %v1611, %v1603
    %v2052 = vpack.c.b16 %v1612, %v1604
    %v2053 = vpack.c.b16 %v1621, %v1613
    %v2054 = vpack.c.b16 %v1622, %v1614
    %v2055 = vpack.c.b16 %v1623, %v1615
    %v2056 = vpack.c.b16 %v1624, %v1616
    %v2057 = vpack.c.b16 %v1625, %v1617
    %v2058 = vpack.c.b16 %v1626, %v1618
    %v2059 = vpack.c.b16 %v1627, %v1619
    %v2060 = vpack.c.b16 %v1628, %v1620
    %v2061 = vpack.c.b16 %v1637, %v1629
    %v2062 = vpack.c.b16 %v1638, %v1630
    %v2063 = vpack.c.b16 %v1639, %v1631
    %v2064 = vpack.c.b16 %v1640, %v1632
    %v2065 = vpack.c.b16 %v1641, %v1633
    %v2066 = vpack.c.b16 %v1642, %v1634
    %v2067 = vpack.c.b16 %v1643, %v1635
    %v2068 = vpack.c.b16 %v1644, %v1636
    %v2069 = vpack.c.b16 %v1653, %v1645
    %v2070 = vpack.c.b16 %v1654, %v1646
    %v2071 = vpack.c.b16 %v1655, %v1647
    %v2072 = vpack.c.b16 %v1656, %v1648
    %v2073 = vpack.c.b16 %v1657, %v1649
    %v2074 = vpack.c.b16 %v1658, %v1650
    %v2075 = vpack.c.b16 %v1659, %v1651
    %v2076 = vpack.c.b16 %v1660, %v1652
    %v2077 = vpack.c.b16 %v1669, %v1661
    %v2078 = vpack.c.b16 %v1670, %v1662
    %v2079 = vpack.c.b16 %v1671, %v1663
    %v2080 = vpack.c.b16 %v1672, %v1664
    %v2081 = vpack.c.b16 %v1673, %v1665
    %v2082 = vpack.c.b16 %v1674, %v1666
    %v2083 = vpack.c.b16 %v1675, %v1667
    %v2084 = vpack.c.b16 %v1676, %v1668
    %v2085 = vpack.c.b16 %v1685, %v1677
    %v2086 = vpack.c.b16 %v1686, %v1678
    %v2087 = vpack.c.b16 %v1687, %v1679
    %v2088 = vpack.c.b16 %v1688, %v1680
    %v2089 = vpack.c.b16 %v1689, %v1681
    %v2090 = vpack.c.b16 %v1690, %v1682
    %v2091 = vpack.c.b16 %v1691, %v1683
    %v2092 = vpack.c.b16 %v1692, %v1684
    %v2093 = vpack.c.b16 %v1701, %v1693
    %v2094 = vpack.c.b16 %v1702, %v1694
    %v2095 = vpack.c.b16 %v1703, %v1695
    %v2096 = vpack.c.b16 %v1704, %v1696
    %v2097 = vpack.c.b16 %v1705, %v1697
    %v2098 = vpack.c.b16 %v1706, %v1698
    %v2099 = vpack.c.b16 %v1707, %v1699
    %v2100 = vpack.c.b16 %v1708, %v1700
    %v2101 = vpack.c.b16 %v1717, %v1709
    %v2102 = vpack.c.b16 %v1718, %v1710
    %v2103 = vpack.c.b16 %v1719, %v1711
    %v2104 = vpack.c.b16 %v1720, %v1712
    %v2105 = vpack.c.b16 %v1721, %v1713
    %v2106 = vpack.c.b16 %v1722, %v1714
    %v2107 = vpack.c.b16 %v1723, %v1715
    %v2108 = vpack.c.b16 %v1724, %v1716
    %v2109 = vpack.c.b16 %v1733, %v1725
    %v2110 = vpack.c.b16 %v1734, %v1726
    %v2111 = vpack.c.b16 %v1735, %v1727
    %v2112 = vpack.c.b16 %v1736, %v1728
    %v2113 = vpack.c.b16 %v1737, %v1729
    %v2114 = vpack.c.b16 %v1738, %v1730
    %v2115 = vpack.c.b16 %v1739, %v1731
    %v2116 = vpack.c.b16 %v1740, %v1732
    %v2117 = vpack.c.b16 %v1749, %v1741
    %v2118 = vpack.c.b16 %v1750, %v1742
    %v2119 = vpack.c.b16 %v1751, %v1743
    %v2120 = vpack.c.b16 %v1752, %v1744
    %v2121 = vpack.c.b16 %v1753, %v1745
    %v2122 = vpack.c.b16 %v1754, %v1746
    %v2123 = vpack.c.b16 %v1755, %v1747
    %v2124 = vpack.c.b16 %v1756, %v1748
    %v2125 = vpack.c.b16 %v1765, %v1757
    %v2126 = vpack.c.b16 %v1766, %v1758
    %v2127 = vpack.c.b16 %v1767, %v1759
    %v2128 = vpack.c.b16 %v1768, %v1760
    %v2129 = vpack.c.b16 %v1769, %v1761
    %v2130 = vpack.c.b16 %v1770, %v1762
    %v2131 = vpack.c.b16 %v1771, %v1763
    %v2132 = vpack.c.b16 %v1772, %v1764
    %v2133 = vpack.c.b16 %v1781, %v1773
    %v2134 = vpack.c.b16 %v1782, %v1774
    %v2135 = vpack.c.b16 %v1783, %v1775
    %v2136 = vpack.c.b16 %v1784, %v1776
    %v2137 = vpack.c.b16 %v1785, %v1777
    %v2138 = vpack.c.b16 %v1786, %v1778
    %v2139 = vpack.c.b16 %v1787, %v1779
    %v2140 = vpack.c.b16 %v1788, %v1780
    %v2141 = vpack.c.b16 %v1797, %v1789
    %v2142 = vpack.c.b16 %v1798, %v1790
    %v2143 = vpack.c.b16 %v1799, %v1791
    %v2144 = vpack.c.b16 %v1800, %v1792
    %v2145 = vpack.c.b16 %v1801, %v1793
    %v2146 = vpack.c.b16 %v1802, %v1794
    %v2147 = vpack.c.b16 %v1803, %v1795
    %v2148 = vpack.c.b16 %v1804, %v1796
    %v2149 = vpack.c.b16 %v1813, %v1805
    %v2150 = vpack.c.b16 %v1814, %v1806
    %v2151 = vpack.c.b16 %v1815, %v1807
    %v2152 = vpack.c.b16 %v1816, %v1808
    %v2153 = vpack.c.b16 %v1817, %v1809
    %v2154 = vpack.c.b16 %v1818, %v1810
    %v2155 = vpack.c.b16 %v1819, %v1811
    %v2156 = vpack.c.b16 %v1820, %v1812
    %v2157 = vpack.c.b16 %v1829, %v1821
    %v2158 = vpack.c.b16 %v1830, %v1822
    %v2159 = vpack.c.b16 %v1831, %v1823
    %v2160 = vpack.c.b16 %v1832, %v1824
    %v2161 = vpack.c.b16 %v1833, %v1825
    %v2162 = vpack.c.b16 %v1834, %v1826
    %v2163 = vpack.c.b16 %v1835, %v1827
    %v2164 = vpack.c.b16 %v1836, %v1828
    %v2165 = vpack.c.b16 %v1845, %v1837
    %v2166 = vpack.c.b16 %v1846, %v1838
    %v2167 = vpack.c.b16 %v1847, %v1839
    %v2168 = vpack.c.b16 %v1848, %v1840
    %v2169 = vpack.c.b16 %v1849, %v1841
    %v2170 = vpack.c.b16 %v1850, %v1842
    %v2171 = vpack.c.b16 %v1851, %v1843
    %v2172 = vpack.c.b16 %v1852, %v1844
    %v2173 = vpack.c.b16 %v1861, %v1853
    %v2174 = vpack.c.b16 %v1862, %v1854
    %v2175 = vpack.c.b16 %v1863, %v1855
    %v2176 = vpack.c.b16 %v1864, %v1856
    %v2177 = vpack.c.b16 %v1865, %v1857
    %v2178 = vpack.c.b16 %v1866, %v1858
    %v2179 = vpack.c.b16 %v1867, %v1859
    %v2180 = vpack.c.b16 %v1868, %v1860
    %v2181 = vpack.c.b16 %v1877, %v1869
    %v2182 = vpack.c.b16 %v1878, %v1870
    %v2183 = vpack.c.b16 %v1879, %v1871
    %v2184 = vpack.c.b16 %v1880, %v1872
    %v2185 = vpack.c.b16 %v1881, %v1873
    %v2186 = vpack.c.b16 %v1882, %v1874
    %v2187 = vpack.c.b16 %v1883, %v1875
    %v2188 = vpack.c.b16 %v1884, %v1876
    %v2189 = vpack.c.b16 %v1893, %v1885
    %v2190 = vpack.c.b16 %v1894, %v1886
    %v2191 = vpack.c.b16 %v1895, %v1887
    %v2192 = vpack.c.b16 %v1896, %v1888
    %v2193 = vpack.c.b16 %v1897, %v1889
    %v2194 = vpack.c.b16 %v1898, %v1890
    %v2195 = vpack.c.b16 %v1899, %v1891
    %v2196 = vpack.c.b16 %v1900, %v1892
    %v2197 = vpack.c.b16 %v1909, %v1901
    %v2198 = vpack.c.b16 %v1910, %v1902
    %v2199 = vpack.c.b16 %v1911, %v1903
    %v2200 = vpack.c.b16 %v1912, %v1904
    %v2201 = vpack.c.b16 %v1913, %v1905
    %v2202 = vpack.c.b16 %v1914, %v1906
    %v2203 = vpack.c.b16 %v1915, %v1907
    %v2204 = vpack.c.b16 %v1916, %v1908
    %v2205 = vpack.c.b16 %v1925, %v1917
    %v2206 = vpack.c.b16 %v1926, %v1918
    %v2207 = vpack.c.b16 %v1927, %v1919
    %v2208 = vpack.c.b16 %v1928, %v1920
    %v2209 = vpack.c.b16 %v1929, %v1921
    %v2210 = vpack.c.b16 %v1930, %v1922
    %v2211 = vpack.c.b16 %v1931, %v1923
    %v2212 = vpack.c.b16 %v1932, %v1924
    %v2213 = vpack.c.b16 %v1941, %v1933
    %v2214 = vpack.c.b16 %v1942, %v1934
    %v2215 = vpack.c.b16 %v1943, %v1935
    %v2216 = vpack.c.b16 %v1944, %v1936
    %v2217 = vpack.c.b16 %v1945, %v1937
    %v2218 = vpack.c.b16 %v1946, %v1938
    %v2219 = vpack.c.b16 %v1947, %v1939
    %v2220 = vpack.c.b16 %v1948, %v1940
    %v2221 = vpack.c.b16 %v1957, %v1949
    %v2222 = vpack.c.b16 %v1958, %v1950
    %v2223 = vpack.c.b16 %v1959, %v1951
    %v2224 = vpack.c.b16 %v1960, %v1952
    %v2225 = vpack.c.b16 %v1961, %v1953
    %v2226 = vpack.c.b16 %v1962, %v1954
    %v2227 = vpack.c.b16 %v1963, %v1955
    %v2228 = vpack.c.b16 %v1964, %v1956
    %v2229 = vpack.c.b16 %v1973, %v1965
    %v2230 = vpack.c.b16 %v1974, %v1966
    %v2231 = vpack.c.b16 %v1975, %v1967
    %v2232 = vpack.c.b16 %v1976, %v1968
    %v2233 = vpack.c.b16 %v1977, %v1969
    %v2234 = vpack.c.b16 %v1978, %v1970
    %v2235 = vpack.c.b16 %v1979, %v1971
    %v2236 = vpack.c.b16 %v1980, %v1972
    %2493 = vmatprep.subr.bf16.mxu0 %v1982
    %2494 = vmatpush1.bf16.msra.mxu0 %v1981
    %2495 = vmatprep.subr.bf16.mxu0 %v1990
    %2496 = vmatpush1.bf16.msra.mxu0 %v1989
    %2497 = vmatprep.subr.bf16.mxu0 %v1998
    %2498 = vmatpush1.bf16.msra.mxu0 %v1997
    %2499 = vmatprep.subr.bf16.mxu0 %v2006
    %2500 = vmatpush1.bf16.msra.mxu0 %v2005
    %2501 = vmatprep.subr.bf16.mxu0 %v2014
    %2502 = vmatpush1.bf16.msra.mxu0 %v2013
    %2503 = vmatprep.subr.bf16.mxu0 %v2022
    %2504 = vmatpush1.bf16.msra.mxu0 %v2021
    %2505 = vmatprep.subr.bf16.mxu0 %v2030
    %2506 = vmatpush1.bf16.msra.mxu0 %v2029
    %2507 = vmatprep.subr.bf16.mxu0 %v2038
    %2508 = vmatpush1.bf16.msra.mxu0 %v2037
    %2509 = vmatprep.subr.bf16.mxu0 %v2046
    %2510 = vmatpush1.bf16.msra.mxu0 %v2045
    %2511 = vmatprep.subr.bf16.mxu0 %v2054
    %2512 = vmatpush1.bf16.msra.mxu0 %v2053
    %2513 = vmatprep.subr.bf16.mxu0 %v2062
    %2514 = vmatpush1.bf16.msra.mxu0 %v2061
    %2515 = vmatprep.subr.bf16.mxu0 %v2070
    %2516 = vmatpush1.bf16.msra.mxu0 %v2069
    %2517 = vmatprep.subr.bf16.mxu0 %v2078
    %2518 = vmatpush1.bf16.msra.mxu0 %v2077
    %2519 = vmatprep.subr.bf16.mxu0 %v2086
    %2520 = vmatpush1.bf16.msra.mxu0 %v2085
    %2521 = vmatprep.subr.bf16.mxu0 %v2094
    %2522 = vmatpush1.bf16.msra.mxu0 %v2093
    %2523 = vmatprep.subr.bf16.mxu0 %v2102
    %2524 = vmatpush1.bf16.msra.mxu0 %v2101
    %2525 = vmatprep.mubr.bf16.mxu0 %v954
    %2526 = vmatmul.mubr.bf16.gmra.mrb[0].mxu0 %v953
    %v2527 = vpop.f32.mrb[0].mxu0
    %v2528 = vadd.f32 0.0, %v2527
    %v2529 = vpop.f32.mrb[0].mxu0
    %v2530 = vadd.f32 0.0, %v2529
    %v2531 = vpop.f32.mrb[0].mxu0
    %v2532 = vpop.f32.mrb[0].mxu0
    %2533 = vdwg.mxu0
    %2534 = vmatprep.subr.bf16.mxu0 %v2110
    %2535 = vmatpush1.bf16.msra.mxu0 %v2109
    %2536 = vmatprep.subr.bf16.mxu0 %v2118
    %2537 = vmatpush1.bf16.msra.mxu0 %v2117
    %2538 = vmatprep.subr.bf16.mxu0 %v2126
    %2539 = vmatpush1.bf16.msra.mxu0 %v2125
    %2540 = vmatprep.subr.bf16.mxu0 %v2134
    %2541 = vmatpush1.bf16.msra.mxu0 %v2133
    %2542 = vmatprep.subr.bf16.mxu0 %v2142
    %2543 = vmatpush1.bf16.msra.mxu0 %v2141
    %2544 = vmatprep.subr.bf16.mxu0 %v2150
    %2545 = vmatpush1.bf16.msra.mxu0 %v2149
    %2546 = vmatprep.subr.bf16.mxu0 %v2158
    %2547 = vmatpush1.bf16.msra.mxu0 %v2157
    %2548 = vmatprep.subr.bf16.mxu0 %v2166
    %2549 = vmatpush1.bf16.msra.mxu0 %v2165
    %2550 = vmatprep.subr.bf16.mxu0 %v2174
    %2551 = vmatpush1.bf16.msra.mxu0 %v2173
    %2552 = vmatprep.subr.bf16.mxu0 %v2182
    %2553 = vmatpush1.bf16.msra.mxu0 %v2181
    %2554 = vmatprep.subr.bf16.mxu0 %v2190
    %2555 = vmatpush1.bf16.msra.mxu0 %v2189
    %2556 = vmatprep.subr.bf16.mxu0 %v2198
    %2557 = vmatpush1.bf16.msra.mxu0 %v2197
    %2558 = vmatprep.subr.bf16.mxu0 %v2206
    %2559 = vmatpush1.bf16.msra.mxu0 %v2205
    %2560 = vmatprep.subr.bf16.mxu0 %v2214
    %2561 = vmatpush1.bf16.msra.mxu0 %v2213
    %2562 = vmatprep.subr.bf16.mxu0 %v2222
    %2563 = vmatpush1.bf16.msra.mxu0 %v2221
    %2564 = vmatprep.subr.bf16.mxu0 %v2230
    %2565 = vmatpush1.bf16.msra.mxu0 %v2229
    %2566 = vmatprep.mubr.bf16.mxu0 %v956
    %2567 = vmatmul.mubr.bf16.gmra.mrb[0].mxu0 %v955
    %v2568 = vpop.f32.mrb[0].mxu0
    %v2569 = vadd.f32 %v2528, %v2568
    %v2570 = vpop.f32.mrb[0].mxu0
    %v2571 = vadd.f32 %v2530, %v2570
    %v2572 = vpop.f32.mrb[0].mxu0
    %v2573 = vpop.f32.mrb[0].mxu0
    %2574 = vdwg.mxu0
    %2575 = vmatprep.subr.bf16.mxu0 %v1984
    %2576 = vmatpush1.bf16.msra.mxu0 %v1983
    %2577 = vmatprep.subr.bf16.mxu0 %v1992
    %2578 = vmatpush1.bf16.msra.mxu0 %v1991
    %2579 = vmatprep.subr.bf16.mxu0 %v2000
    %2580 = vmatpush1.bf16.msra.mxu0 %v1999
    %2581 = vmatprep.subr.bf16.mxu0 %v2008
    %2582 = vmatpush1.bf16.msra.mxu0 %v2007
    %2583 = vmatprep.subr.bf16.mxu0 %v2016
    %2584 = vmatpush1.bf16.msra.mxu0 %v2015
    %2585 = vmatprep.subr.bf16.mxu0 %v2024
    %2586 = vmatpush1.bf16.msra.mxu0 %v2023
    %2587 = vmatprep.subr.bf16.mxu0 %v2032
    %2588 = vmatpush1.bf16.msra.mxu0 %v2031
    %2589 = vmatprep.subr.bf16.mxu0 %v2040
    %2590 = vmatpush1.bf16.msra.mxu0 %v2039
    %2591 = vmatprep.subr.bf16.mxu0 %v2048
    %2592 = vmatpush1.bf16.msra.mxu0 %v2047
    %2593 = vmatprep.subr.bf16.mxu0 %v2056
    %2594 = vmatpush1.bf16.msra.mxu0 %v2055
    %2595 = vmatprep.subr.bf16.mxu0 %v2064
    %2596 = vmatpush1.bf16.msra.mxu0 %v2063
    %2597 = vmatprep.subr.bf16.mxu0 %v2072
    %2598 = vmatpush1.bf16.msra.mxu0 %v2071
    %2599 = vmatprep.subr.bf16.mxu0 %v2080
    %2600 = vmatpush1.bf16.msra.mxu0 %v2079
    %2601 = vmatprep.subr.bf16.mxu0 %v2088
    %2602 = vmatpush1.bf16.msra.mxu0 %v2087
    %2603 = vmatprep.subr.bf16.mxu0 %v2096
    %2604 = vmatpush1.bf16.msra.mxu0 %v2095
    %2605 = vmatprep.subr.bf16.mxu0 %v2104
    %2606 = vmatpush1.bf16.msra.mxu0 %v2103
    %2607 = vmatprep.mubr.bf16.mxu0 %v954
    %2608 = vmatmul.mubr.bf16.gmra.mrb[0].mxu0 %v953
    %v2609 = vpop.f32.mrb[0].mxu0
    %v2610 = vadd.f32 0.0, %v2609
    %v2611 = vpop.f32.mrb[0].mxu0
    %v2612 = vadd.f32 0.0, %v2611
    %v2613 = vpop.f32.mrb[0].mxu0
    %v2614 = vpop.f32.mrb[0].mxu0
    %2615 = vdwg.mxu0
    %2616 = vmatprep.subr.bf16.mxu0 %v2112
    %2617 = vmatpush1.bf16.msra.mxu0 %v2111
    %2618 = vmatprep.subr.bf16.mxu0 %v2120
    %2619 = vmatpush1.bf16.msra.mxu0 %v2119
    %2620 = vmatprep.subr.bf16.mxu0 %v2128
    %2621 = vmatpush1.bf16.msra.mxu0 %v2127
    %2622 = vmatprep.subr.bf16.mxu0 %v2136
    %2623 = vmatpush1.bf16.msra.mxu0 %v2135
    %2624 = vmatprep.subr.bf16.mxu0 %v2144
    %2625 = vmatpush1.bf16.msra.mxu0 %v2143
    %2626 = vmatprep.subr.bf16.mxu0 %v2152
    %2627 = vmatpush1.bf16.msra.mxu0 %v2151
    %2628 = vmatprep.subr.bf16.mxu0 %v2160
    %2629 = vmatpush1.bf16.msra.mxu0 %v2159
    %2630 = vmatprep.subr.bf16.mxu0 %v2168
    %2631 = vmatpush1.bf16.msra.mxu0 %v2167
    %2632 = vmatprep.subr.bf16.mxu0 %v2176
    %2633 = vmatpush1.bf16.msra.mxu0 %v2175
    %2634 = vmatprep.subr.bf16.mxu0 %v2184
    %2635 = vmatpush1.bf16.msra.mxu0 %v2183
    %2636 = vmatprep.subr.bf16.mxu0 %v2192
    %2637 = vmatpush1.bf16.msra.mxu0 %v2191
    %2638 = vmatprep.subr.bf16.mxu0 %v2200
    %2639 = vmatpush1.bf16.msra.mxu0 %v2199
    %2640 = vmatprep.subr.bf16.mxu0 %v2208
    %2641 = vmatpush1.bf16.msra.mxu0 %v2207
    %2642 = vmatprep.subr.bf16.mxu0 %v2216
    %2643 = vmatpush1.bf16.msra.mxu0 %v2215
    %2644 = vmatprep.subr.bf16.mxu0 %v2224
    %2645 = vmatpush1.bf16.msra.mxu0 %v2223
    %2646 = vmatprep.subr.bf16.mxu0 %v2232
    %2647 = vmatpush1.bf16.msra.mxu0 %v2231
    %2648 = vmatprep.mubr.bf16.mxu0 %v956
    %2649 = vmatmul.mubr.bf16.gmra.mrb[0].mxu0 %v955
    %v2650 = vpop.f32.mrb[0].mxu0
    %v2651 = vadd.f32 %v2610, %v2650
    %v2652 = vpop.f32.mrb[0].mxu0
    %v2653 = vadd.f32 %v2612, %v2652
    %v2654 = vpop.f32.mrb[0].mxu0
    %v2655 = vpop.f32.mrb[0].mxu0
    %2656 = vdwg.mxu0
    %2657 = vmatprep.subr.bf16.mxu0 %v1986
    %2658 = vmatpush1.bf16.msra.mxu0 %v1985
    %2659 = vmatprep.subr.bf16.mxu0 %v1994
    %2660 = vmatpush1.bf16.msra.mxu0 %v1993
    %2661 = vmatprep.subr.bf16.mxu0 %v2002
    %2662 = vmatpush1.bf16.msra.mxu0 %v2001
    %2663 = vmatprep.subr.bf16.mxu0 %v2010
    %2664 = vmatpush1.bf16.msra.mxu0 %v2009
    %2665 = vmatprep.subr.bf16.mxu0 %v2018
    %2666 = vmatpush1.bf16.msra.mxu0 %v2017
    %2667 = vmatprep.subr.bf16.mxu0 %v2026
    %2668 = vmatpush1.bf16.msra.mxu0 %v2025
    %2669 = vmatprep.subr.bf16.mxu0 %v2034
    %2670 = vmatpush1.bf16.msra.mxu0 %v2033
    %2671 = vmatprep.subr.bf16.mxu0 %v2042
    %2672 = vmatpush1.bf16.msra.mxu0 %v2041
    %2673 = vmatprep.subr.bf16.mxu0 %v2050
    %2674 = vmatpush1.bf16.msra.mxu0 %v2049
    %2675 = vmatprep.subr.bf16.mxu0 %v2058
    %2676 = vmatpush1.bf16.msra.mxu0 %v2057
    %2677 = vmatprep.subr.bf16.mxu0 %v2066
    %2678 = vmatpush1.bf16.msra.mxu0 %v2065
    %2679 = vmatprep.subr.bf16.mxu0 %v2074
    %2680 = vmatpush1.bf16.msra.mxu0 %v2073
    %2681 = vmatprep.subr.bf16.mxu0 %v2082
    %2682 = vmatpush1.bf16.msra.mxu0 %v2081
    %2683 = vmatprep.subr.bf16.mxu0 %v2090
    %2684 = vmatpush1.bf16.msra.mxu0 %v2089
    %2685 = vmatprep.subr.bf16.mxu0 %v2098
    %2686 = vmatpush1.bf16.msra.mxu0 %v2097
    %2687 = vmatprep.subr.bf16.mxu0 %v2106
    %2688 = vmatpush1.bf16.msra.mxu0 %v2105
    %2689 = vmatprep.mubr.bf16.mxu0 %v954
    %2690 = vmatmul.mubr.bf16.gmra.mrb[0].mxu0 %v953
    %v2691 = vpop.f32.mrb[0].mxu0
    %v2692 = vadd.f32 0.0, %v2691
    %v2693 = vpop.f32.mrb[0].mxu0
    %v2694 = vadd.f32 0.0, %v2693
    %v2695 = vpop.f32.mrb[0].mxu0
    %v2696 = vpop.f32.mrb[0].mxu0
    %2697 = vdwg.mxu0
    %2698 = vmatprep.subr.bf16.mxu0 %v2114
    %2699 = vmatpush1.bf16.msra.mxu0 %v2113
    %2700 = vmatprep.subr.bf16.mxu0 %v2122
    %2701 = vmatpush1.bf16.msra.mxu0 %v2121
    %2702 = vmatprep.subr.bf16.mxu0 %v2130
    %2703 = vmatpush1.bf16.msra.mxu0 %v2129
    %2704 = vmatprep.subr.bf16.mxu0 %v2138
    %2705 = vmatpush1.bf16.msra.mxu0 %v2137
    %2706 = vmatprep.subr.bf16.mxu0 %v2146
    %2707 = vmatpush1.bf16.msra.mxu0 %v2145
    %2708 = vmatprep.subr.bf16.mxu0 %v2154
    %2709 = vmatpush1.bf16.msra.mxu0 %v2153
    %2710 = vmatprep.subr.bf16.mxu0 %v2162
    %2711 = vmatpush1.bf16.msra.mxu0 %v2161
    %2712 = vmatprep.subr.bf16.mxu0 %v2170
    %2713 = vmatpush1.bf16.msra.mxu0 %v2169
    %2714 = vmatprep.subr.bf16.mxu0 %v2178
    %2715 = vmatpush1.bf16.msra.mxu0 %v2177
    %2716 = vmatprep.subr.bf16.mxu0 %v2186
    %2717 = vmatpush1.bf16.msra.mxu0 %v2185
    %2718 = vmatprep.subr.bf16.mxu0 %v2194
    %2719 = vmatpush1.bf16.msra.mxu0 %v2193
    %2720 = vmatprep.subr.bf16.mxu0 %v2202
    %2721 = vmatpush1.bf16.msra.mxu0 %v2201
    %2722 = vmatprep.subr.bf16.mxu0 %v2210
    %2723 = vmatpush1.bf16.msra.mxu0 %v2209
    %2724 = vmatprep.subr.bf16.mxu0 %v2218
    %2725 = vmatpush1.bf16.msra.mxu0 %v2217
    %2726 = vmatprep.subr.bf16.mxu0 %v2226
    %2727 = vmatpush1.bf16.msra.mxu0 %v2225
    %2728 = vmatprep.subr.bf16.mxu0 %v2234
    %2729 = vmatpush1.bf16.msra.mxu0 %v2233
    %2730 = vmatprep.mubr.bf16.mxu0 %v956
    %2731 = vmatmul.mubr.bf16.gmra.mrb[0].mxu0 %v955
    %v2732 = vpop.f32.mrb[0].mxu0
    %v2733 = vadd.f32 %v2692, %v2732
    %v2734 = vpop.f32.mrb[0].mxu0
    %v2735 = vadd.f32 %v2694, %v2734
    %v2736 = vpop.f32.mrb[0].mxu0
    %v2737 = vpop.f32.mrb[0].mxu0
    %2738 = vdwg.mxu0
    %2739 = vmatprep.subr.bf16.mxu0 %v1988
    %2740 = vmatpush1.bf16.msra.mxu0 %v1987
    %2741 = vmatprep.subr.bf16.mxu0 %v1996
    %2742 = vmatpush1.bf16.msra.mxu0 %v1995
    %2743 = vmatprep.subr.bf16.mxu0 %v2004
    %2744 = vmatpush1.bf16.msra.mxu0 %v2003
    %2745 = vmatprep.subr.bf16.mxu0 %v2012
    %2746 = vmatpush1.bf16.msra.mxu0 %v2011
    %2747 = vmatprep.subr.bf16.mxu0 %v2020
    %2748 = vmatpush1.bf16.msra.mxu0 %v2019
    %2749 = vmatprep.subr.bf16.mxu0 %v2028
    %2750 = vmatpush1.bf16.msra.mxu0 %v2027
    %2751 = vmatprep.subr.bf16.mxu0 %v2036
    %2752 = vmatpush1.bf16.msra.mxu0 %v2035
    %2753 = vmatprep.subr.bf16.mxu0 %v2044
    %2754 = vmatpush1.bf16.msra.mxu0 %v2043
    %2755 = vmatprep.subr.bf16.mxu0 %v2052
    %2756 = vmatpush1.bf16.msra.mxu0 %v2051
    %2757 = vmatprep.subr.bf16.mxu0 %v2060
    %2758 = vmatpush1.bf16.msra.mxu0 %v2059
    %2759 = vmatprep.subr.bf16.mxu0 %v2068
    %2760 = vmatpush1.bf16.msra.mxu0 %v2067
    %2761 = vmatprep.subr.bf16.mxu0 %v2076
    %2762 = vmatpush1.bf16.msra.mxu0 %v2075
    %2763 = vmatprep.subr.bf16.mxu0 %v2084
    %2764 = vmatpush1.bf16.msra.mxu0 %v2083
    %2765 = vmatprep.subr.bf16.mxu0 %v2092
    %2766 = vmatpush1.bf16.msra.mxu0 %v2091
    %2767 = vmatprep.subr.bf16.mxu0 %v2100
    %2768 = vmatpush1.bf16.msra.mxu0 %v2099
    %2769 = vmatprep.subr.bf16.mxu0 %v2108
    %2770 = vmatpush1.bf16.msra.mxu0 %v2107
    %2771 = vmatprep.mubr.bf16.mxu0 %v954
    %2772 = vmatmul.mubr.bf16.gmra.mrb[0].mxu0 %v953
    %v2773 = vpop.f32.mrb[0].mxu0
    %v2774 = vadd.f32 0.0, %v2773
    %v2775 = vpop.f32.mrb[0].mxu0
    %v2776 = vadd.f32 0.0, %v2775
    %v2777 = vpop.f32.mrb[0].mxu0
    %v2778 = vpop.f32.mrb[0].mxu0
    %2779 = vdwg.mxu0
    %2780 = vmatprep.subr.bf16.mxu0 %v2116
    %2781 = vmatpush1.bf16.msra.mxu0 %v2115
    %2782 = vmatprep.subr.bf16.mxu0 %v2124
    %2783 = vmatpush1.bf16.msra.mxu0 %v2123
    %2784 = vmatprep.subr.bf16.mxu0 %v2132
    %2785 = vmatpush1.bf16.msra.mxu0 %v2131
    %2786 = vmatprep.subr.bf16.mxu0 %v2140
    %2787 = vmatpush1.bf16.msra.mxu0 %v2139
    %2788 = vmatprep.subr.bf16.mxu0 %v2148
    %2789 = vmatpush1.bf16.msra.mxu0 %v2147
    %2790 = vmatprep.subr.bf16.mxu0 %v2156
    %2791 = vmatpush1.bf16.msra.mxu0 %v2155
    %2792 = vmatprep.subr.bf16.mxu0 %v2164
    %2793 = vmatpush1.bf16.msra.mxu0 %v2163
    %2794 = vmatprep.subr.bf16.mxu0 %v2172
    %2795 = vmatpush1.bf16.msra.mxu0 %v2171
    %2796 = vmatprep.subr.bf16.mxu0 %v2180
    %2797 = vmatpush1.bf16.msra.mxu0 %v2179
    %2798 = vmatprep.subr.bf16.mxu0 %v2188
    %2799 = vmatpush1.bf16.msra.mxu0 %v2187
    %2800 = vmatprep.subr.bf16.mxu0 %v2196
    %2801 = vmatpush1.bf16.msra.mxu0 %v2195
    %2802 = vmatprep.subr.bf16.mxu0 %v2204
    %2803 = vmatpush1.bf16.msra.mxu0 %v2203
    %2804 = vmatprep.subr.bf16.mxu0 %v2212
    %2805 = vmatpush1.bf16.msra.mxu0 %v2211
    %2806 = vmatprep.subr.bf16.mxu0 %v2220
    %2807 = vmatpush1.bf16.msra.mxu0 %v2219
    %2808 = vmatprep.subr.bf16.mxu0 %v2228
    %2809 = vmatpush1.bf16.msra.mxu0 %v2227
    %2810 = vmatprep.subr.bf16.mxu0 %v2236
    %2811 = vmatpush1.bf16.msra.mxu0 %v2235
    %2812 = vmatprep.mubr.bf16.mxu0 %v956
    %2813 = vmatmul.mubr.bf16.gmra.mrb[0].mxu0 %v955
    %v2814 = vpop.f32.mrb[0].mxu0
    %v2815 = vadd.f32 %v2774, %v2814
    %v2816 = vpop.f32.mrb[0].mxu0
    %v2817 = vadd.f32 %v2776, %v2816
    %v2818 = vpop.f32.mrb[0].mxu0
    %v2819 = vpop.f32.mrb[0].mxu0
    %2820 = vdwg.mxu0
    %v2821 = vpack.c.bf16 %v2569, %v2569
    %v2822 = vpack.c.bf16 %v2571, %v2571
    %v2823 = vpack.c.bf16 %v2651, %v2651
    %v2824 = vpack.c.bf16 %v2653, %v2653
    %v2825 = vpack.c.bf16 %v2733, %v2733
    %v2826 = vpack.c.bf16 %v2735, %v2735
    %v2827 = vpack.c.bf16 %v2815, %v2815
    %v2828 = vpack.c.bf16 %v2817, %v2817
    %v2829 = vld [vmem:[%s8] sm:$0xff]
    %v2831 = vcombine.high %v2829, %v2829
    %v2833 = vunpack.c.l.s4 1966171168
    %v2834 = vunpack.c.0.s8 %v2833
    %v2835 = vlaneseq
    %v2836 = vshrl.u32 %v2835, 7
    %v2837 = vsub.s32 %v2834, %v2836
    %v2838 = vrot.slane %v2829, %v2837
    %v2840 = vunpack.c.l.s4 1966171168
    %v2841 = vunpack.c.0.s8 %v2840
    %v2842 = vlaneseq
    %v2843 = vshrl.u32 %v2842, 7
    %v2844 = vsub.s32 %v2841, %v2843
    %v2845 = vrot.slane %v2831, %v2844
    %v2846 = vcombine.high %v2838, %v2838
    %v2847 = vcombine.high %v2845, %v2845
    %v2849 = vunpack.c.l.s4 1966171168
    %v2850 = vunpack.c.0.s8 %v2849
    %v2851 = vlaneseq
    %v2852 = vshrl.u32 %v2851, 7
    %v2853 = vsub.s32 %v2850, %v2852
    %v2854 = vrot.slane %v2838, %v2853
    %v2856 = vunpack.c.l.s4 1966171168
    %v2857 = vunpack.c.0.s8 %v2856
    %v2858 = vlaneseq
    %v2859 = vshrl.u32 %v2858, 7
    %v2860 = vsub.s32 %v2857, %v2859
    %v2861 = vrot.slane %v2845, %v2860
    %v2863 = vunpack.c.l.s4 1966171168
    %v2864 = vunpack.c.0.s8 %v2863
    %v2865 = vlaneseq
    %v2866 = vshrl.u32 %v2865, 7
    %v2867 = vsub.s32 %v2864, %v2866
    %v2868 = vrot.slane %v2846, %v2867
    %v2870 = vunpack.c.l.s4 1966171168
    %v2871 = vunpack.c.0.s8 %v2870
    %v2872 = vlaneseq
    %v2873 = vshrl.u32 %v2872, 7
    %v2874 = vsub.s32 %v2871, %v2873
    %v2875 = vrot.slane %v2847, %v2874
    %v2876 = vcombine.high %v2854, %v2854
    %v2877 = vcombine.high %v2861, %v2861
    %v2878 = vcombine.high %v2868, %v2868
    %v2879 = vcombine.high %v2875, %v2875
    %v2881 = vpack.i.b16 %v2854, %v2854
    %v2883 = vlaneseq
    %v2884 = vshrl.u32 %v2883, 7
    %v2885 = vsub.s32 0, %v2884
    %v2886 = vrot.slane %v2881, %v2885
    %v2888 = vpack.i.b16 %v2868, %v2868
    %v2890 = vlaneseq
    %v2891 = vshrl.u32 %v2890, 7
    %v2892 = vsub.s32 0, %v2891
    %v2893 = vrot.slane %v2888, %v2892
    %v2895 = vpack.i.b16 %v2876, %v2876
    %v2897 = vlaneseq
    %v2898 = vshrl.u32 %v2897, 7
    %v2899 = vsub.s32 0, %v2898
    %v2900 = vrot.slane %v2895, %v2899
    %v2902 = vpack.i.b16 %v2878, %v2878
    %v2904 = vlaneseq
    %v2905 = vshrl.u32 %v2904, 7
    %v2906 = vsub.s32 0, %v2905
    %v2907 = vrot.slane %v2902, %v2906
    %v2909 = vpack.i.b16 %v2861, %v2861
    %v2911 = vlaneseq
    %v2912 = vshrl.u32 %v2911, 7
    %v2913 = vsub.s32 0, %v2912
    %v2914 = vrot.slane %v2909, %v2913
    %v2916 = vpack.i.b16 %v2875, %v2875
    %v2918 = vlaneseq
    %v2919 = vshrl.u32 %v2918, 7
    %v2920 = vsub.s32 0, %v2919
    %v2921 = vrot.slane %v2916, %v2920
    %v2923 = vpack.i.b16 %v2877, %v2877
    %v2925 = vlaneseq
    %v2926 = vshrl.u32 %v2925, 7
    %v2927 = vsub.s32 0, %v2926
    %v2928 = vrot.slane %v2923, %v2927
    %v2930 = vpack.i.b16 %v2879, %v2879
    %v2932 = vlaneseq
    %v2933 = vshrl.u32 %v2932, 7
    %v2934 = vsub.s32 0, %v2933
    %v2935 = vrot.slane %v2930, %v2934
    %v2936 = vadd.bf16 %v2821, %v2886
    %v2937 = vadd.bf16 %v2822, %v2893
    %v2938 = vadd.bf16 %v2823, %v2900
    %v2939 = vadd.bf16 %v2824, %v2907
    %v2940 = vadd.bf16 %v2825, %v2914
    %v2941 = vadd.bf16 %v2826, %v2921
    %v2942 = vadd.bf16 %v2827, %v2928
    %v2943 = vadd.bf16 %v2828, %v2935
    %v2944 = vmul.bf16 %v2936, 1045249613
    %v2945 = vmul.bf16 %v2937, 1045249613
    %v2946 = vmul.bf16 %v2938, 1045249613
    %v2947 = vmul.bf16 %v2939, 1045249613
    %v2948 = vmul.bf16 %v2940, 1045249613
    %v2949 = vmul.bf16 %v2941, 1045249613
    %v2950 = vmul.bf16 %v2942, 1045249613
    %v2951 = vmul.bf16 %v2943, 1045249613
    %v2952 = vmax.bf16 %v2936, %v2944
    %v2953 = vmax.bf16 %v2937, %v2945
    %v2954 = vmax.bf16 %v2938, %v2946
    %v2955 = vmax.bf16 %v2939, %v2947
    %v2956 = vmax.bf16 %v2940, %v2948
    %v2957 = vmax.bf16 %v2941, %v2949
    %v2958 = vmax.bf16 %v2942, %v2950
    %v2959 = vmax.bf16 %v2943, %v2951
    %v2960 = vld [vmem:[#allocation11] sm:$0xf]
    %v2961 = vld [vmem:[#allocation11 + $0x4] sm:$0xf]
    %v2962 = vld [vmem:[#allocation11 + $0x8] sm:$0xf]
    %v2963 = vld [vmem:[#allocation11 + $0xc] sm:$0xf]
    %v2964 = vld [vmem:[#allocation11 + $0x10] sm:$0xf]
    %v2965 = vld [vmem:[#allocation11 + $0x14] sm:$0xf]
    %v2966 = vld [vmem:[#allocation11 + $0x18] sm:$0xf]
    %v2967 = vld [vmem:[#allocation11 + $0x1c] sm:$0xf]
    %v2968 = vld [vmem:[#allocation11 + $0x20] sm:$0xf]
    %v2969 = vld [vmem:[#allocation11 + $0x24] sm:$0xf]
    %v2970 = vld [vmem:[#allocation11 + $0x28] sm:$0xf]
    %v2971 = vld [vmem:[#allocation11 + $0x2c] sm:$0xf]
    %v2972 = vld [vmem:[#allocation11 + $0x30] sm:$0xf]
    %v2973 = vld [vmem:[#allocation11 + $0x34] sm:$0xf]
    %v2974 = vld [vmem:[#allocation11 + $0x38] sm:$0xf]
    %v2975 = vld [vmem:[#allocation11 + $0x3c] sm:$0xf]
    %v2976 = vld [vmem:[#allocation11 + $0x40] sm:$0xf]
    %v2977 = vld [vmem:[#allocation11 + $0x44] sm:$0xf]
    %v2978 = vld [vmem:[#allocation11 + $0x48] sm:$0xf]
    %v2979 = vld [vmem:[#allocation11 + $0x4c] sm:$0xf]
    %v2980 = vld [vmem:[#allocation11 + $0x50] sm:$0xf]
    %v2981 = vld [vmem:[#allocation11 + $0x54] sm:$0xf]
    %v2982 = vld [vmem:[#allocation11 + $0x58] sm:$0xf]
    %v2983 = vld [vmem:[#allocation11 + $0x5c] sm:$0xf]
    %v2984 = vld [vmem:[#allocation11 + $0x60] sm:$0xf]
    %v2985 = vld [vmem:[#allocation11 + $0x64] sm:$0xf]
    %v2986 = vld [vmem:[#allocation11 + $0x68] sm:$0xf]
    %v2987 = vld [vmem:[#allocation11 + $0x6c] sm:$0xf]
    %v2988 = vld [vmem:[#allocation11 + $0x70] sm:$0xf]
    %v2989 = vld [vmem:[#allocation11 + $0x74] sm:$0xf]
    %v2990 = vld [vmem:[#allocation11 + $0x78] sm:$0xf]
    %v2991 = vld [vmem:[#allocation11 + $0x7c] sm:$0xf]
    %v2992 = vld [vmem:[#allocation11 + $0x80] sm:$0xf]
    %v2993 = vld [vmem:[#allocation11 + $0x84] sm:$0xf]
    %v2994 = vld [vmem:[#allocation11 + $0x88] sm:$0xf]
    %v2995 = vld [vmem:[#allocation11 + $0x8c] sm:$0xf]
    %v2996 = vld [vmem:[#allocation11 + $0x90] sm:$0xf]
    %v2997 = vld [vmem:[#allocation11 + $0x94] sm:$0xf]
    %v2998 = vld [vmem:[#allocation11 + $0x98] sm:$0xf]
    %v2999 = vld [vmem:[#allocation11 + $0x9c] sm:$0xf]
    %v3000 = vld [vmem:[#allocation11 + $0xa0] sm:$0xf]
    %v3001 = vld [vmem:[#allocation11 + $0xa4] sm:$0xf]
    %v3002 = vld [vmem:[#allocation11 + $0xa8] sm:$0xf]
    %v3003 = vld [vmem:[#allocation11 + $0xac] sm:$0xf]
    %v3004 = vld [vmem:[#allocation11 + $0xb0] sm:$0xf]
    %v3005 = vld [vmem:[#allocation11 + $0xb4] sm:$0xf]
    %v3006 = vld [vmem:[#allocation11 + $0xb8] sm:$0xf]
    %v3007 = vld [vmem:[#allocation11 + $0xbc] sm:$0xf]
    %v3008 = vld [vmem:[#allocation11 + $0xc0] sm:$0xf]
    %v3009 = vld [vmem:[#allocation11 + $0xc4] sm:$0xf]
    %v3010 = vld [vmem:[#allocation11 + $0xc8] sm:$0xf]
    %v3011 = vld [vmem:[#allocation11 + $0xcc] sm:$0xf]
    %v3012 = vld [vmem:[#allocation11 + $0xd0] sm:$0xf]
    %v3013 = vld [vmem:[#allocation11 + $0xd4] sm:$0xf]
    %v3014 = vld [vmem:[#allocation11 + $0xd8] sm:$0xf]
    %v3015 = vld [vmem:[#allocation11 + $0xdc] sm:$0xf]
    %v3016 = vld [vmem:[#allocation11 + $0xe0] sm:$0xf]
    %v3017 = vld [vmem:[#allocation11 + $0xe4] sm:$0xf]
    %v3018 = vld [vmem:[#allocation11 + $0xe8] sm:$0xf]
    %v3019 = vld [vmem:[#allocation11 + $0xec] sm:$0xf]
    %v3020 = vld [vmem:[#allocation11 + $0xf0] sm:$0xf]
    %v3021 = vld [vmem:[#allocation11 + $0xf4] sm:$0xf]
    %v3022 = vld [vmem:[#allocation11 + $0xf8] sm:$0xf]
    %v3023 = vld [vmem:[#allocation11 + $0xfc] sm:$0xf]
    %v3024 = vld [vmem:[#allocation11 + $0x100] sm:$0xf]
    %v3025 = vld [vmem:[#allocation11 + $0x104] sm:$0xf]
    %v3026 = vld [vmem:[#allocation11 + $0x108] sm:$0xf]
    %v3027 = vld [vmem:[#allocation11 + $0x10c] sm:$0xf]
    %v3028 = vld [vmem:[#allocation11 + $0x110] sm:$0xf]
    %v3029 = vld [vmem:[#allocation11 + $0x114] sm:$0xf]
    %v3030 = vld [vmem:[#allocation11 + $0x118] sm:$0xf]
    %v3031 = vld [vmem:[#allocation11 + $0x11c] sm:$0xf]
    %v3032 = vld [vmem:[#allocation11 + $0x120] sm:$0xf]
    %v3033 = vld [vmem:[#allocation11 + $0x124] sm:$0xf]
    %v3034 = vld [vmem:[#allocation11 + $0x128] sm:$0xf]
    %v3035 = vld [vmem:[#allocation11 + $0x12c] sm:$0xf]
    %v3036 = vld [vmem:[#allocation11 + $0x130] sm:$0xf]
    %v3037 = vld [vmem:[#allocation11 + $0x134] sm:$0xf]
    %v3038 = vld [vmem:[#allocation11 + $0x138] sm:$0xf]
    %v3039 = vld [vmem:[#allocation11 + $0x13c] sm:$0xf]
    %v3040 = vld [vmem:[#allocation11 + $0x140] sm:$0xf]
    %v3041 = vld [vmem:[#allocation11 + $0x144] sm:$0xf]
    %v3042 = vld [vmem:[#allocation11 + $0x148] sm:$0xf]
    %v3043 = vld [vmem:[#allocation11 + $0x14c] sm:$0xf]
    %v3044 = vld [vmem:[#allocation11 + $0x150] sm:$0xf]
    %v3045 = vld [vmem:[#allocation11 + $0x154] sm:$0xf]
    %v3046 = vld [vmem:[#allocation11 + $0x158] sm:$0xf]
    %v3047 = vld [vmem:[#allocation11 + $0x15c] sm:$0xf]
    %v3048 = vld [vmem:[#allocation11 + $0x160] sm:$0xf]
    %v3049 = vld [vmem:[#allocation11 + $0x164] sm:$0xf]
    %v3050 = vld [vmem:[#allocation11 + $0x168] sm:$0xf]
    %v3051 = vld [vmem:[#allocation11 + $0x16c] sm:$0xf]
    %v3052 = vld [vmem:[#allocation11 + $0x170] sm:$0xf]
    %v3053 = vld [vmem:[#allocation11 + $0x174] sm:$0xf]
    %v3054 = vld [vmem:[#allocation11 + $0x178] sm:$0xf]
    %v3055 = vld [vmem:[#allocation11 + $0x17c] sm:$0xf]
    %v3056 = vld [vmem:[#allocation11 + $0x180] sm:$0xf]
    %v3057 = vld [vmem:[#allocation11 + $0x184] sm:$0xf]
    %v3058 = vld [vmem:[#allocation11 + $0x188] sm:$0xf]
    %v3059 = vld [vmem:[#allocation11 + $0x18c] sm:$0xf]
    %v3060 = vld [vmem:[#allocation11 + $0x190] sm:$0xf]
    %v3061 = vld [vmem:[#allocation11 + $0x194] sm:$0xf]
    %v3062 = vld [vmem:[#allocation11 + $0x198] sm:$0xf]
    %v3063 = vld [vmem:[#allocation11 + $0x19c] sm:$0xf]
    %v3064 = vld [vmem:[#allocation11 + $0x1a0] sm:$0xf]
    %v3065 = vld [vmem:[#allocation11 + $0x1a4] sm:$0xf]
    %v3066 = vld [vmem:[#allocation11 + $0x1a8] sm:$0xf]
    %v3067 = vld [vmem:[#allocation11 + $0x1ac] sm:$0xf]
    %v3068 = vld [vmem:[#allocation11 + $0x1b0] sm:$0xf]
    %v3069 = vld [vmem:[#allocation11 + $0x1b4] sm:$0xf]
    %v3070 = vld [vmem:[#allocation11 + $0x1b8] sm:$0xf]
    %v3071 = vld [vmem:[#allocation11 + $0x1bc] sm:$0xf]
    %v3072 = vld [vmem:[#allocation11 + $0x1c0] sm:$0xf]
    %v3073 = vld [vmem:[#allocation11 + $0x1c4] sm:$0xf]
    %v3074 = vld [vmem:[#allocation11 + $0x1c8] sm:$0xf]
    %v3075 = vld [vmem:[#allocation11 + $0x1cc] sm:$0xf]
    %v3076 = vld [vmem:[#allocation11 + $0x1d0] sm:$0xf]
    %v3077 = vld [vmem:[#allocation11 + $0x1d4] sm:$0xf]
    %v3078 = vld [vmem:[#allocation11 + $0x1d8] sm:$0xf]
    %v3079 = vld [vmem:[#allocation11 + $0x1dc] sm:$0xf]
    %v3080 = vld [vmem:[#allocation11 + $0x1e0] sm:$0xf]
    %v3081 = vld [vmem:[#allocation11 + $0x1e4] sm:$0xf]
    %v3082 = vld [vmem:[#allocation11 + $0x1e8] sm:$0xf]
    %v3083 = vld [vmem:[#allocation11 + $0x1ec] sm:$0xf]
    %v3084 = vld [vmem:[#allocation11 + $0x1f0] sm:$0xf]
    %v3085 = vld [vmem:[#allocation11 + $0x1f4] sm:$0xf]
    %v3086 = vld [vmem:[#allocation11 + $0x1f8] sm:$0xf]
    %v3087 = vld [vmem:[#allocation11 + $0x1fc] sm:$0xf]
    %v3088 = vld [vmem:[%s10] sm:$0x1]
    %v3090 = vlaneseq
    %v3091 = vshrl.u32 %v3090, 7
    %v3092 = vsub.s32 0, %v3091
    %v3093 = vrot.slane %v3088, %v3092
    %v3223 = vunpack.c.l.b16 %v2960
    %v3224 = vunpack.c.l.b16 %v2961
    %v3225 = vunpack.c.l.b16 %v2962
    %v3226 = vunpack.c.l.b16 %v2963
    %v3227 = vunpack.c.l.b16 %v2964
    %v3228 = vunpack.c.l.b16 %v2965
    %v3229 = vunpack.c.l.b16 %v2966
    %v3230 = vunpack.c.l.b16 %v2967
    %v3231 = vunpack.c.l.b16 %v2968
    %v3232 = vunpack.c.l.b16 %v2969
    %v3233 = vunpack.c.l.b16 %v2970
    %v3234 = vunpack.c.l.b16 %v2971
    %v3235 = vunpack.c.l.b16 %v2972
    %v3236 = vunpack.c.l.b16 %v2973
    %v3237 = vunpack.c.l.b16 %v2974
    %v3238 = vunpack.c.l.b16 %v2975
    %v3239 = vunpack.c.l.b16 %v2976
    %v3240 = vunpack.c.l.b16 %v2977
    %v3241 = vunpack.c.l.b16 %v2978
    %v3242 = vunpack.c.l.b16 %v2979
    %v3243 = vunpack.c.l.b16 %v2980
    %v3244 = vunpack.c.l.b16 %v2981
    %v3245 = vunpack.c.l.b16 %v2982
    %v3246 = vunpack.c.l.b16 %v2983
    %v3247 = vunpack.c.l.b16 %v2984
    %v3248 = vunpack.c.l.b16 %v2985
    %v3249 = vunpack.c.l.b16 %v2986
    %v3250 = vunpack.c.l.b16 %v2987
    %v3251 = vunpack.c.l.b16 %v2988
    %v3252 = vunpack.c.l.b16 %v2989
    %v3253 = vunpack.c.l.b16 %v2990
    %v3254 = vunpack.c.l.b16 %v2991
    %v3255 = vunpack.c.l.b16 %v2992
    %v3256 = vunpack.c.l.b16 %v2993
    %v3257 = vunpack.c.l.b16 %v2994
    %v3258 = vunpack.c.l.b16 %v2995
    %v3259 = vunpack.c.l.b16 %v2996
    %v3260 = vunpack.c.l.b16 %v2997
    %v3261 = vunpack.c.l.b16 %v2998
    %v3262 = vunpack.c.l.b16 %v2999
    %v3263 = vunpack.c.l.b16 %v3000
    %v3264 = vunpack.c.l.b16 %v3001
    %v3265 = vunpack.c.l.b16 %v3002
    %v3266 = vunpack.c.l.b16 %v3003
    %v3267 = vunpack.c.l.b16 %v3004
    %v3268 = vunpack.c.l.b16 %v3005
    %v3269 = vunpack.c.l.b16 %v3006
    %v3270 = vunpack.c.l.b16 %v3007
    %v3271 = vunpack.c.l.b16 %v3008
    %v3272 = vunpack.c.l.b16 %v3009
    %v3273 = vunpack.c.l.b16 %v3010
    %v3274 = vunpack.c.l.b16 %v3011
    %v3275 = vunpack.c.l.b16 %v3012
    %v3276 = vunpack.c.l.b16 %v3013
    %v3277 = vunpack.c.l.b16 %v3014
    %v3278 = vunpack.c.l.b16 %v3015
    %v3279 = vunpack.c.l.b16 %v3016
    %v3280 = vunpack.c.l.b16 %v3017
    %v3281 = vunpack.c.l.b16 %v3018
    %v3282 = vunpack.c.l.b16 %v3019
    %v3283 = vunpack.c.l.b16 %v3020
    %v3284 = vunpack.c.l.b16 %v3021
    %v3285 = vunpack.c.l.b16 %v3022
    %v3286 = vunpack.c.l.b16 %v3023
    %v3287 = vunpack.c.l.b16 %v3024
    %v3288 = vunpack.c.l.b16 %v3025
    %v3289 = vunpack.c.l.b16 %v3026
    %v3290 = vunpack.c.l.b16 %v3027
    %v3291 = vunpack.c.l.b16 %v3028
    %v3292 = vunpack.c.l.b16 %v3029
    %v3293 = vunpack.c.l.b16 %v3030
    %v3294 = vunpack.c.l.b16 %v3031
    %v3295 = vunpack.c.l.b16 %v3032
    %v3296 = vunpack.c.l.b16 %v3033
    %v3297 = vunpack.c.l.b16 %v3034
    %v3298 = vunpack.c.l.b16 %v3035
    %v3299 = vunpack.c.l.b16 %v3036
    %v3300 = vunpack.c.l.b16 %v3037
    %v3301 = vunpack.c.l.b16 %v3038
    %v3302 = vunpack.c.l.b16 %v3039
    %v3303 = vunpack.c.l.b16 %v3040
    %v3304 = vunpack.c.l.b16 %v3041
    %v3305 = vunpack.c.l.b16 %v3042
    %v3306 = vunpack.c.l.b16 %v3043
    %v3307 = vunpack.c.l.b16 %v3044
    %v3308 = vunpack.c.l.b16 %v3045
    %v3309 = vunpack.c.l.b16 %v3046
    %v3310 = vunpack.c.l.b16 %v3047
    %v3311 = vunpack.c.l.b16 %v3048
    %v3312 = vunpack.c.l.b16 %v3049
    %v3313 = vunpack.c.l.b16 %v3050
    %v3314 = vunpack.c.l.b16 %v3051
    %v3315 = vunpack.c.l.b16 %v3052
    %v3316 = vunpack.c.l.b16 %v3053
    %v3317 = vunpack.c.l.b16 %v3054
    %v3318 = vunpack.c.l.b16 %v3055
    %v3319 = vunpack.c.l.b16 %v3056
    %v3320 = vunpack.c.l.b16 %v3057
    %v3321 = vunpack.c.l.b16 %v3058
    %v3322 = vunpack.c.l.b16 %v3059
    %v3323 = vunpack.c.l.b16 %v3060
    %v3324 = vunpack.c.l.b16 %v3061
    %v3325 = vunpack.c.l.b16 %v3062
    %v3326 = vunpack.c.l.b16 %v3063
    %v3327 = vunpack.c.l.b16 %v3064
    %v3328 = vunpack.c.l.b16 %v3065
    %v3329 = vunpack.c.l.b16 %v3066
    %v3330 = vunpack.c.l.b16 %v3067
    %v3331 = vunpack.c.l.b16 %v3068
    %v3332 = vunpack.c.l.b16 %v3069
    %v3333 = vunpack.c.l.b16 %v3070
    %v3334 = vunpack.c.l.b16 %v3071
    %v3335 = vunpack.c.l.b16 %v3072
    %v3336 = vunpack.c.l.b16 %v3073
    %v3337 = vunpack.c.l.b16 %v3074
    %v3338 = vunpack.c.l.b16 %v3075
    %v3339 = vunpack.c.l.b16 %v3076
    %v3340 = vunpack.c.l.b16 %v3077
    %v3341 = vunpack.c.l.b16 %v3078
    %v3342 = vunpack.c.l.b16 %v3079
    %v3343 = vunpack.c.l.b16 %v3080
    %v3344 = vunpack.c.l.b16 %v3081
    %v3345 = vunpack.c.l.b16 %v3082
    %v3346 = vunpack.c.l.b16 %v3083
    %v3347 = vunpack.c.l.b16 %v3084
    %v3348 = vunpack.c.l.b16 %v3085
    %v3349 = vunpack.c.l.b16 %v3086
    %v3350 = vunpack.c.l.b16 %v3087
    %v3351 = vpack.c.b16 %v3224, %v3223
    %v3352 = vpack.c.b16 %v3226, %v3225
    %v3353 = vpack.c.b16 %v3228, %v3227
    %v3354 = vpack.c.b16 %v3230, %v3229
    %v3355 = vpack.c.b16 %v3232, %v3231
    %v3356 = vpack.c.b16 %v3234, %v3233
    %v3357 = vpack.c.b16 %v3236, %v3235
    %v3358 = vpack.c.b16 %v3238, %v3237
    %v3359 = vpack.c.b16 %v3240, %v3239
    %v3360 = vpack.c.b16 %v3242, %v3241
    %v3361 = vpack.c.b16 %v3244, %v3243
    %v3362 = vpack.c.b16 %v3246, %v3245
    %v3363 = vpack.c.b16 %v3248, %v3247
    %v3364 = vpack.c.b16 %v3250, %v3249
    %v3365 = vpack.c.b16 %v3252, %v3251
    %v3366 = vpack.c.b16 %v3254, %v3253
    %v3367 = vpack.c.b16 %v3256, %v3255
    %v3368 = vpack.c.b16 %v3258, %v3257
    %v3369 = vpack.c.b16 %v3260, %v3259
    %v3370 = vpack.c.b16 %v3262, %v3261
    %v3371 = vpack.c.b16 %v3264, %v3263
    %v3372 = vpack.c.b16 %v3266, %v3265
    %v3373 = vpack.c.b16 %v3268, %v3267
    %v3374 = vpack.c.b16 %v3270, %v3269
    %v3375 = vpack.c.b16 %v3272, %v3271
    %v3376 = vpack.c.b16 %v3274, %v3273
    %v3377 = vpack.c.b16 %v3276, %v3275
    %v3378 = vpack.c.b16 %v3278, %v3277
    %v3379 = vpack.c.b16 %v3280, %v3279
    %v3380 = vpack.c.b16 %v3282, %v3281
    %v3381 = vpack.c.b16 %v3284, %v3283
    %v3382 = vpack.c.b16 %v3286, %v3285
    %v3383 = vpack.c.b16 %v3288, %v3287
    %v3384 = vpack.c.b16 %v3290, %v3289
    %v3385 = vpack.c.b16 %v3292, %v3291
    %v3386 = vpack.c.b16 %v3294, %v3293
    %v3387 = vpack.c.b16 %v3296, %v3295
    %v3388 = vpack.c.b16 %v3298, %v3297
    %v3389 = vpack.c.b16 %v3300, %v3299
    %v3390 = vpack.c.b16 %v3302, %v3301
    %v3391 = vpack.c.b16 %v3304, %v3303
    %v3392 = vpack.c.b16 %v3306, %v3305
    %v3393 = vpack.c.b16 %v3308, %v3307
    %v3394 = vpack.c.b16 %v3310, %v3309
    %v3395 = vpack.c.b16 %v3312, %v3311
    %v3396 = vpack.c.b16 %v3314, %v3313
    %v3397 = vpack.c.b16 %v3316, %v3315
    %v3398 = vpack.c.b16 %v3318, %v3317
    %v3399 = vpack.c.b16 %v3320, %v3319
    %v3400 = vpack.c.b16 %v3322, %v3321
    %v3401 = vpack.c.b16 %v3324, %v3323
    %v3402 = vpack.c.b16 %v3326, %v3325
    %v3403 = vpack.c.b16 %v3328, %v3327
    %v3404 = vpack.c.b16 %v3330, %v3329
    %v3405 = vpack.c.b16 %v3332, %v3331
    %v3406 = vpack.c.b16 %v3334, %v3333
    %v3407 = vpack.c.b16 %v3336, %v3335
    %v3408 = vpack.c.b16 %v3338, %v3337
    %v3409 = vpack.c.b16 %v3340, %v3339
    %v3410 = vpack.c.b16 %v3342, %v3341
    %v3411 = vpack.c.b16 %v3344, %v3343
    %v3412 = vpack.c.b16 %v3346, %v3345
    %v3413 = vpack.c.b16 %v3348, %v3347
    %v3414 = vpack.c.b16 %v3350, %v3349
    %3479 = vmatprep.subr.bf16.mxu0 0
    %3480 = vmatpush1.bf16.msra.mxu0 %v3351
    %3481 = vmatprep.subr.bf16.mxu0 0
    %3482 = vmatpush1.bf16.msra.mxu0 %v3352
    %3483 = vmatprep.subr.bf16.mxu0 0
    %3484 = vmatpush1.bf16.msra.mxu0 %v3353
    %3485 = vmatprep.subr.bf16.mxu0 0
    %3486 = vmatpush1.bf16.msra.mxu0 %v3354
    %3487 = vmatprep.subr.bf16.mxu0 0
    %3488 = vmatpush1.bf16.msra.mxu0 %v3355
    %3489 = vmatprep.subr.bf16.mxu0 0
    %3490 = vmatpush1.bf16.msra.mxu0 %v3356
    %3491 = vmatprep.subr.bf16.mxu0 0
    %3492 = vmatpush1.bf16.msra.mxu0 %v3357
    %3493 = vmatprep.subr.bf16.mxu0 0
    %3494 = vmatpush1.bf16.msra.mxu0 %v3358
    %3495 = vmatprep.subr.bf16.mxu0 0
    %3496 = vmatpush1.bf16.msra.mxu0 %v3359
    %3497 = vmatprep.subr.bf16.mxu0 0
    %3498 = vmatpush1.bf16.msra.mxu0 %v3360
    %3499 = vmatprep.subr.bf16.mxu0 0
    %3500 = vmatpush1.bf16.msra.mxu0 %v3361
    %3501 = vmatprep.subr.bf16.mxu0 0
    %3502 = vmatpush1.bf16.msra.mxu0 %v3362
    %3503 = vmatprep.subr.bf16.mxu0 0
    %3504 = vmatpush1.bf16.msra.mxu0 %v3363
    %3505 = vmatprep.subr.bf16.mxu0 0
    %3506 = vmatpush1.bf16.msra.mxu0 %v3364
    %3507 = vmatprep.subr.bf16.mxu0 0
    %3508 = vmatpush1.bf16.msra.mxu0 %v3365
    %3509 = vmatprep.subr.bf16.mxu0 0
    %3510 = vmatpush1.bf16.msra.mxu0 %v3366
    %3511 = vmatprep.mubr.bf16.mxu0 %v2953
    %3512 = vmatmul.mubr.bf16.gmra.mrb[0].mxu0 %v2952
    %v3513 = vpop.f32.mrb[0].mxu0
    %v3514 = vadd.f32 %v3093, %v3513
    %v3515 = vpop.f32.mrb[0].mxu0
    %v3516 = vpop.f32.mrb[0].mxu0
    %v3517 = vpop.f32.mrb[0].mxu0
    %3518 = vdwg.mxu0
    %3519 = vmatprep.subr.bf16.mxu0 0
    %3520 = vmatpush1.bf16.msra.mxu0 %v3367
    %3521 = vmatprep.subr.bf16.mxu0 0
    %3522 = vmatpush1.bf16.msra.mxu0 %v3368
    %3523 = vmatprep.subr.bf16.mxu0 0
    %3524 = vmatpush1.bf16.msra.mxu0 %v3369
    %3525 = vmatprep.subr.bf16.mxu0 0
    %3526 = vmatpush1.bf16.msra.mxu0 %v3370
    %3527 = vmatprep.subr.bf16.mxu0 0
    %3528 = vmatpush1.bf16.msra.mxu0 %v3371
    %3529 = vmatprep.subr.bf16.mxu0 0
    %3530 = vmatpush1.bf16.msra.mxu0 %v3372
    %3531 = vmatprep.subr.bf16.mxu0 0
    %3532 = vmatpush1.bf16.msra.mxu0 %v3373
    %3533 = vmatprep.subr.bf16.mxu0 0
    %3534 = vmatpush1.bf16.msra.mxu0 %v3374
    %3535 = vmatprep.subr.bf16.mxu0 0
    %3536 = vmatpush1.bf16.msra.mxu0 %v3375
    %3537 = vmatprep.subr.bf16.mxu0 0
    %3538 = vmatpush1.bf16.msra.mxu0 %v3376
    %3539 = vmatprep.subr.bf16.mxu0 0
    %3540 = vmatpush1.bf16.msra.mxu0 %v3377
    %3541 = vmatprep.subr.bf16.mxu0 0
    %3542 = vmatpush1.bf16.msra.mxu0 %v3378
    %3543 = vmatprep.subr.bf16.mxu0 0
    %3544 = vmatpush1.bf16.msra.mxu0 %v3379
    %3545 = vmatprep.subr.bf16.mxu0 0
    %3546 = vmatpush1.bf16.msra.mxu0 %v3380
    %3547 = vmatprep.subr.bf16.mxu0 0
    %3548 = vmatpush1.bf16.msra.mxu0 %v3381
    %3549 = vmatprep.subr.bf16.mxu0 0
    %3550 = vmatpush1.bf16.msra.mxu0 %v3382
    %3551 = vmatprep.mubr.bf16.mxu0 %v2955
    %3552 = vmatmul.mubr.bf16.gmra.mrb[0].mxu0 %v2954
    %v3553 = vpop.f32.mrb[0].mxu0
    %v3554 = vadd.f32 %v3514, %v3553
    %v3555 = vpop.f32.mrb[0].mxu0
    %v3556 = vpop.f32.mrb[0].mxu0
    %v3557 = vpop.f32.mrb[0].mxu0
    %3558 = vdwg.mxu0
    %3559 = vmatprep.subr.bf16.mxu0 0
    %3560 = vmatpush1.bf16.msra.mxu0 %v3383
    %3561 = vmatprep.subr.bf16.mxu0 0
    %3562 = vmatpush1.bf16.msra.mxu0 %v3384
    %3563 = vmatprep.subr.bf16.mxu0 0
    %3564 = vmatpush1.bf16.msra.mxu0 %v3385
    %3565 = vmatprep.subr.bf16.mxu0 0
    %3566 = vmatpush1.bf16.msra.mxu0 %v3386
    %3567 = vmatprep.subr.bf16.mxu0 0
    %3568 = vmatpush1.bf16.msra.mxu0 %v3387
    %3569 = vmatprep.subr.bf16.mxu0 0
    %3570 = vmatpush1.bf16.msra.mxu0 %v3388
    %3571 = vmatprep.subr.bf16.mxu0 0
    %3572 = vmatpush1.bf16.msra.mxu0 %v3389
    %3573 = vmatprep.subr.bf16.mxu0 0
    %3574 = vmatpush1.bf16.msra.mxu0 %v3390
    %3575 = vmatprep.subr.bf16.mxu0 0
    %3576 = vmatpush1.bf16.msra.mxu0 %v3391
    %3577 = vmatprep.subr.bf16.mxu0 0
    %3578 = vmatpush1.bf16.msra.mxu0 %v3392
    %3579 = vmatprep.subr.bf16.mxu0 0
    %3580 = vmatpush1.bf16.msra.mxu0 %v3393
    %3581 = vmatprep.subr.bf16.mxu0 0
    %3582 = vmatpush1.bf16.msra.mxu0 %v3394
    %3583 = vmatprep.subr.bf16.mxu0 0
    %3584 = vmatpush1.bf16.msra.mxu0 %v3395
    %3585 = vmatprep.subr.bf16.mxu0 0
    %3586 = vmatpush1.bf16.msra.mxu0 %v3396
    %3587 = vmatprep.subr.bf16.mxu0 0
    %3588 = vmatpush1.bf16.msra.mxu0 %v3397
    %3589 = vmatprep.subr.bf16.mxu0 0
    %3590 = vmatpush1.bf16.msra.mxu0 %v3398
    %3591 = vmatprep.mubr.bf16.mxu0 %v2957
    %3592 = vmatmul.mubr.bf16.gmra.mrb[0].mxu0 %v2956
    %v3593 = vpop.f32.mrb[0].mxu0
    %v3594 = vadd.f32 %v3554, %v3593
    %v3595 = vpop.f32.mrb[0].mxu0
    %v3596 = vpop.f32.mrb[0].mxu0
    %v3597 = vpop.f32.mrb[0].mxu0
    %3598 = vdwg.mxu0
    %3599 = vmatprep.subr.bf16.mxu0 0
    %3600 = vmatpush1.bf16.msra.mxu0 %v3399
    %3601 = vmatprep.subr.bf16.mxu0 0
    %3602 = vmatpush1.bf16.msra.mxu0 %v3400
    %3603 = vmatprep.subr.bf16.mxu0 0
    %3604 = vmatpush1.bf16.msra.mxu0 %v3401
    %3605 = vmatprep.subr.bf16.mxu0 0
    %3606 = vmatpush1.bf16.msra.mxu0 %v3402
    %3607 = vmatprep.subr.bf16.mxu0 0
    %3608 = vmatpush1.bf16.msra.mxu0 %v3403
    %3609 = vmatprep.subr.bf16.mxu0 0
    %3610 = vmatpush1.bf16.msra.mxu0 %v3404
    %3611 = vmatprep.subr.bf16.mxu0 0
    %3612 = vmatpush1.bf16.msra.mxu0 %v3405
    %3613 = vmatprep.subr.bf16.mxu0 0
    %3614 = vmatpush1.bf16.msra.mxu0 %v3406
    %3615 = vmatprep.subr.bf16.mxu0 0
    %3616 = vmatpush1.bf16.msra.mxu0 %v3407
    %3617 = vmatprep.subr.bf16.mxu0 0
    %3618 = vmatpush1.bf16.msra.mxu0 %v3408
    %3619 = vmatprep.subr.bf16.mxu0 0
    %3620 = vmatpush1.bf16.msra.mxu0 %v3409
    %3621 = vmatprep.subr.bf16.mxu0 0
    %3622 = vmatpush1.bf16.msra.mxu0 %v3410
    %3623 = vmatprep.subr.bf16.mxu0 0
    %3624 = vmatpush1.bf16.msra.mxu0 %v3411
    %3625 = vmatprep.subr.bf16.mxu0 0
    %3626 = vmatpush1.bf16.msra.mxu0 %v3412
    %3627 = vmatprep.subr.bf16.mxu0 0
    %3628 = vmatpush1.bf16.msra.mxu0 %v3413
    %3629 = vmatprep.subr.bf16.mxu0 0
    %3630 = vmatpush1.bf16.msra.mxu0 %v3414
    %3631 = vmatprep.mubr.bf16.mxu0 %v2959
    %3632 = vmatmul.mubr.bf16.gmra.mrb[0].mxu0 %v2958
    %v3633 = vpop.f32.mrb[0].mxu0
    %v3634 = vadd.f32 %v3594, %v3633
    %v3635 = vpop.f32.mrb[0].mxu0
    %v3636 = vpop.f32.mrb[0].mxu0
    %v3637 = vpop.f32.mrb[0].mxu0
    %3638 = vdwg.mxu0
    %v3639 = vtanh.pop %v3634
    %3640 = vst [vmem:[#allocation13] sm:$0xff] %v3639
    // Predicated region
    $region70: #{tpu_custom_call.1} parent=1 // pred_check
      _
    $region71: #{tpu_custom_call.1} parent=1 // pred_check_branch
      %3642 = sbr.rel (0) target = $region73
    $region72: #{tpu_custom_call.1} parent=1 // pred_region
      %s3644 = ssub.s32 128, 128
      %3645 = vsyncadd [#allocation4], %s3644
      %s3647 = sshll.u32 [#allocation13], 4
      %s3648 = int_to_ptr.vmem [resolvable:$true] %s3647
      %3650 = dma.vmem_to_hbm [thread:$0]  %s3648, 128, %s11, [#allocation4]
    $region73: #{tpu_custom_call.1} parent=1 // pred_fallthru
      _
    // Predicated region
    $region74: #{tpu_custom_call.1} parent=1 // pred_check
      _
    $region75: #{tpu_custom_call.1} parent=1 // pred_check_branch
      %3652 = sbr.rel (0) target = $region77
    $region76: #{tpu_custom_call.1} parent=1 // pred_region
      %3653 = dma.done [#allocation4], 128
    $region77: #{tpu_custom_call.1} parent=1 // pred_fallthru
      _
    %3654 = vsyncpa [#allocation3], 1
    %3655 = vsyncpa [#allocation6], 1
    %3656 = vsyncpa [#allocation9], 1
    %3657 = vsyncpa [#allocation12], 1
    %3658 = vsyncpa [#allocation4], 1

</llo_original>
